<compile_context>
chip_gen: v7x
topology: tpu7x:2x2x1
jax: 0.10.0
libtpu: 0.0.40
codegen_flags: <defaults>
</compile_context>

<pallas_src>
import functools

import jax
import jax.numpy as jnp
from jax.experimental import pallas as pl
from jax.experimental.pallas import tpu as pltpu


# ----------------------------- kernel helpers -------------------------------

def _rms(v, w_ref):
    """T5 LayerNorm (RMSNorm, no mean subtraction), f32 math."""
    var = jnp.mean(v * v, axis=-1, keepdims=True)
    return v * jax.lax.rsqrt(var + 1e-6) * w_ref[...].astype(jnp.float32)


def _softmax(s):
    s = s - jnp.max(s, axis=-1, keepdims=True)
    p = jnp.exp(s)
    return p * pl.reciprocal(jnp.sum(p, axis=-1, keepdims=True), approx=True)


# ----------------------------- Pallas kernels ------------------------------

def _t5_stack_kernel(x_emb_ref, enc_ref, mask_ref, fin_ln_ref,
                     sa_ln_ref, sa_qkv_ref, sa_o_ref,
                     ca_ln_ref, ca_q_ref, ca_kv_ref, ca_o_ref,
                     ff_ln_ref, ff_wi_ref, ff_wo_ref,
                     x_ref, xn_ref, sk_ref, sv_ref, ck_ref, cv_ref,
                     *, n_heads, d_head):
    """One T5 decoder layer per grid step; activation x stays resident in VMEM
    across the L (layer) grid axis; layer-l+1 weights are prefetched by the
    Pallas pipeline while layer l computes."""
    H, dh = n_heads, d_head
    inner = H * dh
    bf16 = jnp.bfloat16
    neg = jnp.float32(-1e9)

    l = pl.program_id(1)
    n_layers = pl.num_programs(1)

    # Initialize the resident activation block from the embeddings.
    @pl.when(l == 0)
    def _():
        x_ref[...] = x_emb_ref[...]

    x = x_ref[...]                         # (T, D) f32, resident across layers
    enc_b = enc_ref[...].astype(bf16)      # (S, D)
    T = x.shape[0]
    S = enc_b.shape[0]

    # ---------------- self attention ----------------
    h = _rms(x, sa_ln_ref)
    qkv = jnp.dot(h.astype(bf16), sa_qkv_ref[...],
                  preferred_element_type=jnp.float32)          # (T, 3*inner)

    # Lane-dense KV-cache writebacks (full H*dh lanes per store).
    sk_ref[...] = qkv[:, inner:2 * inner].astype(sk_ref.dtype)
    sv_ref[...] = qkv[:, 2 * inner:].astype(sv_ref.dtype)

    qkv_b = qkv.astype(bf16)                                   # cast once
    q3 = qkv_b[:, :inner].reshape(T, H, dh)
    k3 = qkv_b[:, inner:2 * inner].reshape(T, H, dh)
    v3 = qkv_b[:, 2 * inner:].reshape(T, H, dh)

    # Causal additive bias generated in-kernel (no HBM bias tensor).
    rows = jax.lax.broadcasted_iota(jnp.int32, (T, T), 0)
    cols = jax.lax.broadcasted_iota(jnp.int32, (T, T), 1)
    causal = jnp.where(rows >= cols, 0.0, neg)                 # (T, T)

    # Batched-over-heads attention; T5 does NOT scale scores by 1/sqrt(d_head).
    s = jnp.einsum('qhd,khd->hqk', q3, k3,
                   preferred_element_type=jnp.float32) + causal
    p = _softmax(s)
    a = jnp.einsum('hqk,khd->hqd', p.astype(bf16), v3,
                   preferred_element_type=jnp.float32)         # (H, T, dh)
    a = jnp.swapaxes(a, 0, 1).reshape(T, inner)
    x = x + jnp.dot(a.astype(bf16), sa_o_ref[...],
                    preferred_element_type=jnp.float32)

    # ---------------- cross attention ----------------
    h = _rms(x, ca_ln_ref)
    q = jnp.dot(h.astype(bf16), ca_q_ref[...],
                preferred_element_type=jnp.float32)            # (T, inner)
    kv = jnp.dot(enc_b, ca_kv_ref[...],
                 preferred_element_type=jnp.float32)           # (S, 2*inner)

    ck_ref[...] = kv[:, :inner].astype(ck_ref.dtype)
    cv_ref[...] = kv[:, inner:].astype(cv_ref.dtype)

    kv_b = kv.astype(bf16)
    q3 = q.astype(bf16).reshape(T, H, dh)
    k3 = kv_b[:, :inner].reshape(S, H, dh)
    v3 = kv_b[:, inner:].reshape(S, H, dh)

    # Encoder padding bias from the small (1, S) mask block.
    cross_bias = (1.0 - mask_ref[...].astype(jnp.float32)) * neg   # (1, S)

    s = jnp.einsum('qhd,khd->hqk', q3, k3,
                   preferred_element_type=jnp.float32) + cross_bias
    p = _softmax(s)
    a = jnp.einsum('hqk,khd->hqd', p.astype(bf16), v3,
                   preferred_element_type=jnp.float32)         # (H, T, dh)
    a = jnp.swapaxes(a, 0, 1).reshape(T, inner)
    x = x + jnp.dot(a.astype(bf16), ca_o_ref[...],
                    preferred_element_type=jnp.float32)

    # ---------------- feed forward (dense-relu-dense) ----------------
    h = _rms(x, ff_ln_ref)
    hh = jnp.dot(h.astype(bf16), ff_wi_ref[...],
                 preferred_element_type=jnp.float32)
    hh = jnp.maximum(hh, 0.0)
    x = x + jnp.dot(hh.astype(bf16), ff_wo_ref[...],
                    preferred_element_type=jnp.float32)

    x_ref[...] = x

    # Final rmsnorm (tied-embedding d_model**-0.5 folded into fin_ln weight),
    # emitted bf16 so the lm-head kernel streams half the activation bytes and
    # does not recompute the norm per vocab tile.
    @pl.when(l == n_layers - 1)
    def _():
        xn_ref[...] = _rms(x, fin_ln_ref).astype(xn_ref.dtype)


def _lm_head_kernel(xn_ref, w_ref, o_ref):
    """Pure bf16 matmul tile: (T, D) @ (D, tv) -> (T, tv) f32."""
    o_ref[...] = jnp.dot(xn_ref[...], w_ref[...],
                         preferred_element_type=jnp.float32).astype(o_ref.dtype)


# ----------------------------- pallas_call wrappers -------------------------

def t5_stack(x_emb, enc, mask, p, fin_ln, *, n_heads, d_head):
    """Runs the whole decoder stack in one pallas_call.

    x_emb: (B,T,D) f32, enc: (B,S,D) f32, mask: (B,1,S) f32,
    p: stacked per-layer weights (leading L axis), fin_ln: (1,D) f32.
    Returns (x_final, xn_bf16, self_k, self_v, cross_k, cross_v) with the
    caches as lane-dense (L, B, seq, H*dh) slabs."""
    B, T, D = x_emb.shape
    S = enc.shape[1]
    L = p["sa_qkv"].shape[0]
    H, dh = n_heads, d_head
    inner = H * dh
    F = p["ff_wi"].shape[-1]

    kernel = functools.partial(_t5_stack_kernel, n_heads=H, d_head=dh)

    # Advisory cost estimate (helps XLA schedule around the custom call).
    flops_layer = (2 * T * D * 3 * inner + 4 * T * T * inner + 2 * T * inner * D
                   + 2 * T * D * inner + 2 * S * D * 2 * inner + 4 * T * S * inner
                   + 2 * T * inner * D + 4 * T * D * F)
    weight_bytes = 2 * (D * 3 * inner + 3 * inner * D + D * inner + D * 2 * inner
                        + D * F + F * D)
    cost = pl.CostEstimate(
        flops=B * L * flops_layer,
        transcendentals=B * L * (H * T * T + H * T * S),
        bytes_accessed=(B * L * weight_bytes
                        + B * (T * D * 4 + S * D * 4 + S * 4)
                        + B * (T * D * 4 + T * D * 2)
                        + L * B * (2 * T * inner + 2 * S * inner) * 4),
    )

    out_shape = (
        jax.ShapeDtypeStruct((B, T, D), jnp.float32),       # resident x carrier
        jax.ShapeDtypeStruct((B, T, D), jnp.bfloat16),      # final-norm x (bf16)
        jax.ShapeDtypeStruct((L, B, T, inner), jnp.float32),  # self K (lane-dense)
        jax.ShapeDtypeStruct((L, B, T, inner), jnp.float32),  # self V
        jax.ShapeDtypeStruct((L, B, S, inner), jnp.float32),  # cross K
        jax.ShapeDtypeStruct((L, B, S, inner), jnp.float32),  # cross V
    )

    return pl.pallas_call(
        kernel,
        grid=(B, L),                       # L innermost -> weight DMA pipelined
        out_shape=out_shape,
        in_specs=[
            pl.BlockSpec((None, T, D), lambda b, l: (b, 0, 0)),       # x_emb
            pl.BlockSpec((None, S, D), lambda b, l: (b, 0, 0)),       # enc
            pl.BlockSpec((None, 1, S), lambda b, l: (b, 0, 0)),       # mask
            pl.BlockSpec((1, D), lambda b, l: (0, 0)),                # fin_ln
            pl.BlockSpec((None, 1, D), lambda b, l: (l, 0, 0)),       # sa_ln
            pl.BlockSpec((None, D, 3 * inner), lambda b, l: (l, 0, 0)),  # sa_qkv
            pl.BlockSpec((None, inner, D), lambda b, l: (l, 0, 0)),   # sa_o
            pl.BlockSpec((None, 1, D), lambda b, l: (l, 0, 0)),       # ca_ln
            pl.BlockSpec((None, D, inner), lambda b, l: (l, 0, 0)),   # ca_q
            pl.BlockSpec((None, D, 2 * inner), lambda b, l: (l, 0, 0)),  # ca_kv
            pl.BlockSpec((None, inner, D), lambda b, l: (l, 0, 0)),   # ca_o
            pl.BlockSpec((None, 1, D), lambda b, l: (l, 0, 0)),       # ff_ln
            pl.BlockSpec((None, D, F), lambda b, l: (l, 0, 0)),       # ff_wi
            pl.BlockSpec((None, F, D), lambda b, l: (l, 0, 0)),       # ff_wo
        ],
        out_specs=(
            pl.BlockSpec((None, T, D), lambda b, l: (b, 0, 0)),       # x (resident)
            pl.BlockSpec((None, T, D), lambda b, l: (b, 0, 0)),       # xn (resident)
            pl.BlockSpec((None, None, T, inner), lambda b, l: (l, b, 0, 0)),
            pl.BlockSpec((None, None, T, inner), lambda b, l: (l, b, 0, 0)),
            pl.BlockSpec((None, None, S, inner), lambda b, l: (l, b, 0, 0)),
            pl.BlockSpec((None, None, S, inner), lambda b, l: (l, b, 0, 0)),
        ),
        compiler_params=pltpu.CompilerParams(
            dimension_semantics=("parallel", "arbitrary"),
            # Raised vs. 16/32 MiB defaults; conservative enough for v7x's
            # 64 MiB physical VMEM.  Tune per generation at real T5 sizes.
            vmem_limit_bytes=64 * 1024 * 1024),
        cost_estimate=cost,
    )(x_emb, enc, mask, fin_ln,
      p["sa_ln"], p["sa_qkv"], p["sa_o"],
      p["ca_ln"], p["ca_q"], p["ca_kv"], p["ca_o"],
      p["ff_ln"], p["ff_wi"], p["ff_wo"])


def t5_lm_head(xn, lm_head, *, tv_max=2048):
    """lm head on the pre-normalized bf16 activations, tiled over (batch, vocab)."""
    B, T, D = xn.shape
    V = lm_head.shape[1]
    tv = V if V <= tv_max else tv_max      # lane-dense vocab tile

    cost = pl.CostEstimate(
        flops=2 * B * T * D * V,
        transcendentals=0,
        bytes_accessed=B * T * D * 2 + B * D * V * 2 + B * T * V * 4,
    )
    return pl.pallas_call(
        _lm_head_kernel,
        grid=(B, pl.cdiv(V, tv)),
        out_shape=jax.ShapeDtypeStruct((B, T, V), jnp.float32),
        in_specs=[
            pl.BlockSpec((None, T, D), lambda b, j: (b, 0, 0)),
            pl.BlockSpec((D, tv), lambda b, j: (0, j)),
        ],
        out_specs=pl.BlockSpec((None, T, tv), lambda b, j: (b, 0, j)),
        compiler_params=pltpu.CompilerParams(
            dimension_semantics=("parallel", "parallel"),
            vmem_limit_bytes=64 * 1024 * 1024),
        cost_estimate=cost,
    )(xn, lm_head)


# ----------------------------- Model glue ----------------------------------

def make_params(key, *, vocab, d_model, d_ff, n_heads, d_head, n_layers):
    """Stacked (leading L axis) deterministic synthetic T5 decoder weights."""
    inner = n_heads * d_head
    L = n_layers

    def nrm(k, shape, scale=0.02, dtype=jnp.bfloat16):
        return (scale * jax.random.normal(k, shape, jnp.float32)).astype(dtype)

    ks = iter(jax.random.split(key, 9))
    return {
        "embed": nrm(next(ks), (vocab, d_model), dtype=jnp.float32),
        "final_ln": jnp.ones((1, d_model), jnp.float32),
        "lm_head": nrm(next(ks), (d_model, vocab)),                 # bf16
        "sa_ln": jnp.ones((L, 1, d_model), jnp.float32),
        "sa_qkv": nrm(next(ks), (L, d_model, 3 * inner)),           # [q|k|v]
        "sa_o": nrm(next(ks), (L, inner, d_model)),
        "ca_ln": jnp.ones((L, 1, d_model), jnp.float32),
        "ca_q": nrm(next(ks), (L, d_model, inner)),
        "ca_kv": nrm(next(ks), (L, d_model, 2 * inner)),            # [k|v]
        "ca_o": nrm(next(ks), (L, inner, d_model)),
        "ff_ln": jnp.ones((L, 1, d_model), jnp.float32),
        "ff_wi": nrm(next(ks), (L, d_model, d_ff)),
        "ff_wo": nrm(next(ks), (L, d_ff, d_model)),
    }


def t5_decoder_init(params, input_ids, encoder_attention_mask,
                    encoder_hidden_states, *, n_heads, d_head):
    """Mirrors the ONNX decoder-init session: returns (logits, past_key_values)."""
    B, T = input_ids.shape
    S = encoder_hidden_states.shape[1]
    D = encoder_hidden_states.shape[2]
    L = params["sa_qkv"].shape[0]
    H, dh = n_heads, d_head

    x = jnp.take(params["embed"], input_ids, axis=0)           # (B, T, D) f32
    enc = encoder_hidden_states.astype(jnp.float32)             # (B, S, D)
    mask = encoder_attention_mask.astype(jnp.float32).reshape(B, 1, S)
    # Fold T5 tied-embedding rescale into the final rmsnorm weight.
    fin_ln = params["final_ln"] * jnp.float32(D ** -0.5)

    _x_final, xn, sk, sv, ck, cv = t5_stack(
        x, enc, mask, params, fin_ln, n_heads=H, d_head=dh)

    logits = t5_lm_head(xn, params["lm_head"])                   # (B, T, vocab)

    def split_heads(c):   # (L, B, seq, H*dh) -> (L, B, H, seq, dh)
        Lc, Bc, seq, _ = c.shape
        return c.reshape(Lc, Bc, seq, H, dh).transpose(0, 1, 3, 2, 4)

    sk, sv, ck, cv = split_heads(sk), split_heads(sv), split_heads(ck), split_heads(cv)
    past_key_values = tuple((sk[l], sv[l], ck[l], cv[l]) for l in range(L))
    return logits, past_key_values


# ----------------------------- Driver ---------------------------------------

if __name__ == "__main__":
    # Small, T5-consistent shapes.
    B, T, S = 2, 8, 16          # batch, decoder seq, encoder seq
    d_model, d_ff = 32, 64
    n_heads, d_head = 4, 8
    vocab = 128
    n_layers = 2

    root = jax.random.PRNGKey(0)
    k_ids, k_mask, k_enc, k_params = jax.random.split(root, 4)

    input_ids = jax.random.randint(k_ids, (B, T), 0, vocab, dtype=jnp.int32)
    encoder_attention_mask = (
        jax.random.uniform(k_mask, (B, S)) > 0.2
    ).astype(jnp.int32)
    encoder_hidden_states = jax.random.normal(k_enc, (B, S, d_model), jnp.float32)

    params = make_params(
        k_params, vocab=vocab, d_model=d_model, d_ff=d_ff,
        n_heads=n_heads, d_head=d_head, n_layers=n_layers,
    )

    fwd = jax.jit(functools.partial(t5_decoder_init,
                                    n_heads=n_heads, d_head=d_head))
    logits, past_key_values = fwd(
        params, input_ids, encoder_attention_mask, encoder_hidden_states
    )

    jax.block_until_ready(logits)
    jax.block_until_ready(past_key_values)

    assert logits.shape == (B, T, vocab)
    assert len(past_key_values) == n_layers
    for sk, sv, ck, cv in past_key_values:
        assert sk.shape == (B, n_heads, T, d_head)
        assert sv.shape == (B, n_heads, T, d_head)
        assert ck.shape == (B, n_heads, S, d_head)
        assert cv.shape == (B, n_heads, S, d_head)
    assert bool(jnp.all(jnp.isfinite(logits)))

    print("KERNEL_OK")
</pallas_src>

<mosaic_0001>
module attributes {stable_mosaic.version = 11 : i64} {
  func.func @_t5_stack_kernel(%arg0: i32, %arg1: i32, %arg2: memref<1x8x32xf32, #tpu.memory_space<vmem>>, %arg3: memref<1x16x32xf32, #tpu.memory_space<vmem>>, %arg4: memref<1x1x16xf32, #tpu.memory_space<vmem>>, %arg5: memref<1x32xf32, #tpu.memory_space<vmem>>, %arg6: memref<1x1x32xf32, #tpu.memory_space<vmem>>, %arg7: memref<1x32x96xbf16, #tpu.memory_space<vmem>>, %arg8: memref<1x32x32xbf16, #tpu.memory_space<vmem>>, %arg9: memref<1x1x32xf32, #tpu.memory_space<vmem>>, %arg10: memref<1x32x32xbf16, #tpu.memory_space<vmem>>, %arg11: memref<1x32x64xbf16, #tpu.memory_space<vmem>>, %arg12: memref<1x32x32xbf16, #tpu.memory_space<vmem>>, %arg13: memref<1x1x32xf32, #tpu.memory_space<vmem>>, %arg14: memref<1x32x64xbf16, #tpu.memory_space<vmem>>, %arg15: memref<1x64x32xbf16, #tpu.memory_space<vmem>>, %arg16: memref<1x8x32xf32, #tpu.memory_space<vmem>>, %arg17: memref<1x8x32xbf16, #tpu.memory_space<vmem>>, %arg18: memref<1x1x8x32xf32, #tpu.memory_space<vmem>>, %arg19: memref<1x1x8x32xf32, #tpu.memory_space<vmem>>, %arg20: memref<1x1x16x32xf32, #tpu.memory_space<vmem>>, %arg21: memref<1x1x16x32xf32, #tpu.memory_space<vmem>>) attributes {dimension_semantics = [#tpu.dimension_semantics<parallel>, #tpu.dimension_semantics<arbitrary>], iteration_bounds = array<i64: 2, 2>, scalar_prefetch = 0 : i64, scratch_operands = 0 : i64, tpu.core_type = #tpu.core_type<tc>, window_params = [{transform_indices = @transform_0, window_bounds = array<i64: 1, 8, 32>}, {transform_indices = @transform_1, window_bounds = array<i64: 1, 16, 32>}, {transform_indices = @transform_2, window_bounds = array<i64: 1, 1, 16>}, {pipeline_mode = #tpu.pipeline_mode<synchronous>, transform_indices = @transform_3, window_bounds = array<i64: 1, 32>}, {transform_indices = @transform_4, window_bounds = array<i64: 1, 1, 32>}, {transform_indices = @transform_5, window_bounds = array<i64: 1, 32, 96>}, {transform_indices = @transform_6, window_bounds = array<i64: 1, 32, 32>}, {transform_indices = @transform_7, window_bounds = array<i64: 1, 1, 32>}, {transform_indices = @transform_8, window_bounds = array<i64: 1, 32, 32>}, {transform_indices = @transform_9, window_bounds = array<i64: 1, 32, 64>}, {transform_indices = @transform_10, window_bounds = array<i64: 1, 32, 32>}, {transform_indices = @transform_11, window_bounds = array<i64: 1, 1, 32>}, {transform_indices = @transform_12, window_bounds = array<i64: 1, 32, 64>}, {transform_indices = @transform_13, window_bounds = array<i64: 1, 64, 32>}, {transform_indices = @transform_14, window_bounds = array<i64: 1, 8, 32>}, {transform_indices = @transform_15, window_bounds = array<i64: 1, 8, 32>}, {transform_indices = @transform_16, window_bounds = array<i64: 1, 1, 8, 32>}, {transform_indices = @transform_17, window_bounds = array<i64: 1, 1, 8, 32>}, {transform_indices = @transform_18, window_bounds = array<i64: 1, 1, 16, 32>}, {transform_indices = @transform_19, window_bounds = array<i64: 1, 1, 16, 32>}]} {
    %c0_i32 = arith.constant 0 : i32
    %0 = arith.cmpi eq, %arg1, %c0_i32 : i32
    %1 = arith.extui %0 : i1 to i32
    %c0_i32_0 = arith.constant 0 : i32
    %2 = arith.cmpi ne, %1, %c0_i32_0 : i32
    scf.if %2 {
      %c0_87 = arith.constant 0 : index
      %c0_88 = arith.constant 0 : index
      %c0_89 = arith.constant 0 : index
      %166 = vector.load %arg2[%c0_87, %c0_88, %c0_89] : memref<1x8x32xf32, #tpu.memory_space<vmem>>, vector<1x8x32xf32>
      %167 = vector.shape_cast %166 : vector<1x8x32xf32> to vector<8x32xf32>
      %c0_90 = arith.constant 0 : index
      %c0_91 = arith.constant 0 : index
      %c0_92 = arith.constant 0 : index
      %168 = vector.load %arg16[%c0_90, %c0_91, %c0_92] : memref<1x8x32xf32, #tpu.memory_space<vmem>>, vector<1x8x32xf32>
      %169 = vector.shape_cast %168 : vector<1x8x32xf32> to vector<8x32xf32>
      %170 = vector.shape_cast %167 : vector<8x32xf32> to vector<1x8x32xf32>
      tpu.vector_store %arg16[%c0_90, %c0_91, %c0_92], %170 {strides = array<i32>} : memref<1x8x32xf32, #tpu.memory_space<vmem>>, vector<1x8x32xf32>,
    } else {
    }
    %c0 = arith.constant 0 : index
    %c0_1 = arith.constant 0 : index
    %c0_2 = arith.constant 0 : index
    %3 = vector.load %arg16[%c0, %c0_1, %c0_2] : memref<1x8x32xf32, #tpu.memory_space<vmem>>, vector<1x8x32xf32>
    %4 = vector.shape_cast %3 : vector<1x8x32xf32> to vector<8x32xf32>
    %c0_3 = arith.constant 0 : index
    %c0_4 = arith.constant 0 : index
    %c0_5 = arith.constant 0 : index
    %5 = vector.load %arg3[%c0_3, %c0_4, %c0_5] : memref<1x16x32xf32, #tpu.memory_space<vmem>>, vector<1x16x32xf32>
    %6 = vector.shape_cast %5 : vector<1x16x32xf32> to vector<16x32xf32>
    %7 = arith.truncf %6 : vector<16x32xf32> to vector<16x32xbf16>
    %8 = arith.mulf %4, %4 : vector<8x32xf32>
    %cst = arith.constant dense<0.000000e+00> : vector<8xf32>
    %9 = vector.multi_reduction <add>, %8, %cst [1] : vector<8x32xf32> to vector<8xf32>
    %10 = vector.shape_cast %9 : vector<8xf32> to vector<8x1xf32>
    %cst_6 = arith.constant 3.200000e+01 : f32
    %11 = vector.broadcast %cst_6 : f32 to vector<8x1xf32>
    %12 = arith.divf %10, %11 : vector<8x1xf32>
    %cst_7 = arith.constant 9.99999997E-7 : f32
    %13 = vector.broadcast %cst_7 : f32 to vector<8x1xf32>
    %14 = arith.addf %12, %13 : vector<8x1xf32>
    %15 = math.rsqrt %14 : vector<8x1xf32>
    %16 = vector.broadcast %15 : vector<8x1xf32> to vector<8x32xf32>
    %17 = arith.mulf %4, %16 : vector<8x32xf32>
    %c0_8 = arith.constant 0 : index
    %c0_9 = arith.constant 0 : index
    %c0_10 = arith.constant 0 : index
    %18 = vector.load %arg6[%c0_8, %c0_9, %c0_10] : memref<1x1x32xf32, #tpu.memory_space<vmem>>, vector<1x1x32xf32>
    %19 = vector.shape_cast %18 : vector<1x1x32xf32> to vector<1x32xf32>
    %20 = vector.broadcast %19 : vector<1x32xf32> to vector<8x32xf32>
    %21 = arith.mulf %17, %20 : vector<8x32xf32>
    %22 = arith.truncf %21 : vector<8x32xf32> to vector<8x32xbf16>
    %c0_11 = arith.constant 0 : index
    %c0_12 = arith.constant 0 : index
    %c0_13 = arith.constant 0 : index
    %23 = vector.load %arg7[%c0_11, %c0_12, %c0_13] : memref<1x32x96xbf16, #tpu.memory_space<vmem>>, vector<1x32x96xbf16>
    %24 = vector.shape_cast %23 : vector<1x32x96xbf16> to vector<32x96xbf16>
    %cst_14 = arith.constant dense<0.000000e+00> : vector<8x96xf32>
    %25 = tpu.matmul %22, %24, %cst_14 {dimension_numbers = #tpu.dot_dimension_numbers<[1], [0], [0], [1], [0, 0, 1, 1], [], []>} : vector<8x32xbf16>, vector<32x96xbf16>, vector<8x96xf32> -> vector<8x96xf32>
    %26 = vector.extract_strided_slice %25 {offsets = [0, 32], sizes = [8, 32], strides = [1, 1]} : vector<8x96xf32> to vector<8x32xf32>
    %c0_15 = arith.constant 0 : index
    %c0_16 = arith.constant 0 : index
    %c0_17 = arith.constant 0 : index
    %c0_18 = arith.constant 0 : index
    %27 = vector.load %arg18[%c0_15, %c0_16, %c0_17, %c0_18] : memref<1x1x8x32xf32, #tpu.memory_space<vmem>>, vector<1x1x8x32xf32>
    %28 = vector.shape_cast %27 : vector<1x1x8x32xf32> to vector<8x32xf32>
    %29 = vector.shape_cast %26 : vector<8x32xf32> to vector<1x1x8x32xf32>
    tpu.vector_store %arg18[%c0_15, %c0_16, %c0_17, %c0_18], %29 {strides = array<i32>} : memref<1x1x8x32xf32, #tpu.memory_space<vmem>>, vector<1x1x8x32xf32>,
    %30 = vector.extract_strided_slice %25 {offsets = [0, 64], sizes = [8, 32], strides = [1, 1]} : vector<8x96xf32> to vector<8x32xf32>
    %c0_19 = arith.constant 0 : index
    %c0_20 = arith.constant 0 : index
    %c0_21 = arith.constant 0 : index
    %c0_22 = arith.constant 0 : index
    %31 = vector.load %arg19[%c0_19, %c0_20, %c0_21, %c0_22] : memref<1x1x8x32xf32, #tpu.memory_space<vmem>>, vector<1x1x8x32xf32>
    %32 = vector.shape_cast %31 : vector<1x1x8x32xf32> to vector<8x32xf32>
    %33 = vector.shape_cast %30 : vector<8x32xf32> to vector<1x1x8x32xf32>
    tpu.vector_store %arg19[%c0_19, %c0_20, %c0_21, %c0_22], %33 {strides = array<i32>} : memref<1x1x8x32xf32, #tpu.memory_space<vmem>>, vector<1x1x8x32xf32>,
    %34 = arith.truncf %25 : vector<8x96xf32> to vector<8x96xbf16>
    %35 = vector.extract_strided_slice %34 {offsets = [0, 0], sizes = [8, 32], strides = [1, 1]} : vector<8x96xbf16> to vector<8x32xbf16>
    %36 = vector.shape_cast %35 : vector<8x32xbf16> to vector<8x4x8xbf16>
    %37 = vector.extract_strided_slice %34 {offsets = [0, 32], sizes = [8, 32], strides = [1, 1]} : vector<8x96xbf16> to vector<8x32xbf16>
    %38 = vector.shape_cast %37 : vector<8x32xbf16> to vector<8x4x8xbf16>
    %39 = vector.extract_strided_slice %34 {offsets = [0, 64], sizes = [8, 32], strides = [1, 1]} : vector<8x96xbf16> to vector<8x32xbf16>
    %40 = vector.shape_cast %39 : vector<8x32xbf16> to vector<8x4x8xbf16>
    %41 = tpu.iota {dimensions = array<i32: 0>} : vector<8x8xi32>
    %42 = tpu.iota {dimensions = array<i32: 1>} : vector<8x8xi32>
    %43 = arith.cmpi sge, %41, %42 : vector<8x8xi32>
    %cst_23 = arith.constant 0.000000e+00 : f32
    %cst_24 = arith.constant -1.000000e+09 : f32
    %44 = vector.broadcast %cst_23 : f32 to vector<8x8xf32>
    %45 = vector.broadcast %cst_24 : f32 to vector<8x8xf32>
    %46 = arith.select %43, %44, %45 : vector<8x8xi1>, vector<8x8xf32>
    "tpu.trace_start"() <{level = 10 : i32, message = "qhd,khd->hqk"}> : () -> ()
    %cst_25 = arith.constant dense<0.000000e+00> : vector<4x8x8xf32>
    %47 = tpu.matmul %36, %38, %cst_25 {dimension_numbers = #tpu.dot_dimension_numbers<[2], [2], [0], [0], [0, 1, 0, 0, 1, 0], [1], [1]>} : vector<8x4x8xbf16>, vector<8x4x8xbf16>, vector<4x8x8xf32> -> vector<4x8x8xf32>
    "tpu.trace_stop"() : () -> ()
    %48 = vector.shape_cast %46 : vector<8x8xf32> to vector<1x8x8xf32>
    %49 = vector.broadcast %48 : vector<1x8x8xf32> to vector<4x8x8xf32>
    %50 = arith.addf %47, %49 : vector<4x8x8xf32>
    %cst_26 = arith.constant dense<0xFF800000> : vector<4x8xf32>
    %51 = vector.multi_reduction <maximumf>, %50, %cst_26 [2] : vector<4x8x8xf32> to vector<4x8xf32>
    %52 = vector.shape_cast %51 : vector<4x8xf32> to vector<4x8x1xf32>
    %53 = vector.broadcast %52 : vector<4x8x1xf32> to vector<4x8x8xf32>
    %54 = arith.subf %50, %53 : vector<4x8x8xf32>
    %55 = math.exp %54 : vector<4x8x8xf32>
    %cst_27 = arith.constant dense<0.000000e+00> : vector<4x8xf32>
    %56 = vector.multi_reduction <add>, %55, %cst_27 [2] : vector<4x8x8xf32> to vector<4x8xf32>
    %57 = vector.shape_cast %56 : vector<4x8xf32> to vector<4x8x1xf32>
    %58 = tpu.reciprocal %57 {approx = true} : vector<4x8x1xf32> -> vector<4x8x1xf32>
    %59 = vector.broadcast %58 : vector<4x8x1xf32> to vector<4x8x8xf32>
    %60 = arith.mulf %55, %59 : vector<4x8x8xf32>
    %61 = arith.truncf %60 : vector<4x8x8xf32> to vector<4x8x8xbf16>
    "tpu.trace_start"() <{level = 10 : i32, message = "hqk,khd->hqd"}> : () -> ()
    %cst_28 = arith.constant dense<0.000000e+00> : vector<4x8x8xf32>
    %62 = tpu.matmul %61, %40, %cst_28 {dimension_numbers = #tpu.dot_dimension_numbers<[2], [0], [1], [2], [0, 0, 0, 1, 1, 2], [0], [1]>} : vector<4x8x8xbf16>, vector<8x4x8xbf16>, vector<4x8x8xf32> -> vector<4x8x8xf32>
    "tpu.trace_stop"() : () -> ()
    %63 = tpu.transpose %62, [1, 0, 2] : vector<4x8x8xf32> -> vector<8x4x8xf32>
    %64 = vector.shape_cast %63 : vector<8x4x8xf32> to vector<8x32xf32>
    %65 = arith.truncf %64 : vector<8x32xf32> to vector<8x32xbf16>
    %c0_29 = arith.constant 0 : index
    %c0_30 = arith.constant 0 : index
    %c0_31 = arith.constant 0 : index
    %66 = vector.load %arg8[%c0_29, %c0_30, %c0_31] : memref<1x32x32xbf16, #tpu.memory_space<vmem>>, vector<1x32x32xbf16>
    %67 = vector.shape_cast %66 : vector<1x32x32xbf16> to vector<32x32xbf16>
    %cst_32 = arith.constant dense<0.000000e+00> : vector<8x32xf32>
    %68 = tpu.matmul %65, %67, %cst_32 {dimension_numbers = #tpu.dot_dimension_numbers<[1], [0], [0], [1], [0, 0, 1, 1], [], []>} : vector<8x32xbf16>, vector<32x32xbf16>, vector<8x32xf32> -> vector<8x32xf32>
    %69 = arith.addf %4, %68 : vector<8x32xf32>
    %70 = arith.mulf %69, %69 : vector<8x32xf32>
    %cst_33 = arith.constant dense<0.000000e+00> : vector<8xf32>
    %71 = vector.multi_reduction <add>, %70, %cst_33 [1] : vector<8x32xf32> to vector<8xf32>
    %72 = vector.shape_cast %71 : vector<8xf32> to vector<8x1xf32>
    %cst_34 = arith.constant 3.200000e+01 : f32
    %73 = vector.broadcast %cst_34 : f32 to vector<8x1xf32>
    %74 = arith.divf %72, %73 : vector<8x1xf32>
    %cst_35 = arith.constant 9.99999997E-7 : f32
    %75 = vector.broadcast %cst_35 : f32 to vector<8x1xf32>
    %76 = arith.addf %74, %75 : vector<8x1xf32>
    %77 = math.rsqrt %76 : vector<8x1xf32>
    %78 = vector.broadcast %77 : vector<8x1xf32> to vector<8x32xf32>
    %79 = arith.mulf %69, %78 : vector<8x32xf32>
    %c0_36 = arith.constant 0 : index
    %c0_37 = arith.constant 0 : index
    %c0_38 = arith.constant 0 : index
    %80 = vector.load %arg9[%c0_36, %c0_37, %c0_38] : memref<1x1x32xf32, #tpu.memory_space<vmem>>, vector<1x1x32xf32>
    %81 = vector.shape_cast %80 : vector<1x1x32xf32> to vector<1x32xf32>
    %82 = vector.broadcast %81 : vector<1x32xf32> to vector<8x32xf32>
    %83 = arith.mulf %79, %82 : vector<8x32xf32>
    %84 = arith.truncf %83 : vector<8x32xf32> to vector<8x32xbf16>
    %c0_39 = arith.constant 0 : index
    %c0_40 = arith.constant 0 : index
    %c0_41 = arith.constant 0 : index
    %85 = vector.load %arg10[%c0_39, %c0_40, %c0_41] : memref<1x32x32xbf16, #tpu.memory_space<vmem>>, vector<1x32x32xbf16>
    %86 = vector.shape_cast %85 : vector<1x32x32xbf16> to vector<32x32xbf16>
    %cst_42 = arith.constant dense<0.000000e+00> : vector<8x32xf32>
    %87 = tpu.matmul %84, %86, %cst_42 {dimension_numbers = #tpu.dot_dimension_numbers<[1], [0], [0], [1], [0, 0, 1, 1], [], []>} : vector<8x32xbf16>, vector<32x32xbf16>, vector<8x32xf32> -> vector<8x32xf32>
    %c0_43 = arith.constant 0 : index
    %c0_44 = arith.constant 0 : index
    %c0_45 = arith.constant 0 : index
    %88 = vector.load %arg11[%c0_43, %c0_44, %c0_45] : memref<1x32x64xbf16, #tpu.memory_space<vmem>>, vector<1x32x64xbf16>
    %89 = vector.shape_cast %88 : vector<1x32x64xbf16> to vector<32x64xbf16>
    %cst_46 = arith.constant dense<0.000000e+00> : vector<16x64xf32>
    %90 = tpu.matmul %7, %89, %cst_46 {dimension_numbers = #tpu.dot_dimension_numbers<[1], [0], [0], [1], [0, 0, 1, 1], [], []>} : vector<16x32xbf16>, vector<32x64xbf16>, vector<16x64xf32> -> vector<16x64xf32>
    %91 = vector.extract_strided_slice %90 {offsets = [0, 0], sizes = [16, 32], strides = [1, 1]} : vector<16x64xf32> to vector<16x32xf32>
    %c0_47 = arith.constant 0 : index
    %c0_48 = arith.constant 0 : index
    %c0_49 = arith.constant 0 : index
    %c0_50 = arith.constant 0 : index
    %92 = vector.load %arg20[%c0_47, %c0_48, %c0_49, %c0_50] : memref<1x1x16x32xf32, #tpu.memory_space<vmem>>, vector<1x1x16x32xf32>
    %93 = vector.shape_cast %92 : vector<1x1x16x32xf32> to vector<16x32xf32>
    %94 = vector.shape_cast %91 : vector<16x32xf32> to vector<1x1x16x32xf32>
    tpu.vector_store %arg20[%c0_47, %c0_48, %c0_49, %c0_50], %94 {strides = array<i32>} : memref<1x1x16x32xf32, #tpu.memory_space<vmem>>, vector<1x1x16x32xf32>,
    %95 = vector.extract_strided_slice %90 {offsets = [0, 32], sizes = [16, 32], strides = [1, 1]} : vector<16x64xf32> to vector<16x32xf32>
    %c0_51 = arith.constant 0 : index
    %c0_52 = arith.constant 0 : index
    %c0_53 = arith.constant 0 : index
    %c0_54 = arith.constant 0 : index
    %96 = vector.load %arg21[%c0_51, %c0_52, %c0_53, %c0_54] : memref<1x1x16x32xf32, #tpu.memory_space<vmem>>, vector<1x1x16x32xf32>
    %97 = vector.shape_cast %96 : vector<1x1x16x32xf32> to vector<16x32xf32>
    %98 = vector.shape_cast %95 : vector<16x32xf32> to vector<1x1x16x32xf32>
    tpu.vector_store %arg21[%c0_51, %c0_52, %c0_53, %c0_54], %98 {strides = array<i32>} : memref<1x1x16x32xf32, #tpu.memory_space<vmem>>, vector<1x1x16x32xf32>,
    %99 = arith.truncf %90 : vector<16x64xf32> to vector<16x64xbf16>
    %100 = arith.truncf %87 : vector<8x32xf32> to vector<8x32xbf16>
    %101 = vector.shape_cast %100 : vector<8x32xbf16> to vector<8x4x8xbf16>
    %102 = vector.extract_strided_slice %99 {offsets = [0, 0], sizes = [16, 32], strides = [1, 1]} : vector<16x64xbf16> to vector<16x32xbf16>
    %103 = vector.shape_cast %102 : vector<16x32xbf16> to vector<16x4x8xbf16>
    %104 = vector.extract_strided_slice %99 {offsets = [0, 32], sizes = [16, 32], strides = [1, 1]} : vector<16x64xbf16> to vector<16x32xbf16>
    %105 = vector.shape_cast %104 : vector<16x32xbf16> to vector<16x4x8xbf16>
    %c0_55 = arith.constant 0 : index
    %c0_56 = arith.constant 0 : index
    %c0_57 = arith.constant 0 : index
    %106 = vector.load %arg4[%c0_55, %c0_56, %c0_57] : memref<1x1x16xf32, #tpu.memory_space<vmem>>, vector<1x1x16xf32>
    %107 = vector.shape_cast %106 : vector<1x1x16xf32> to vector<1x16xf32>
    %cst_58 = arith.constant 1.000000e+00 : f32
    %108 = vector.broadcast %cst_58 : f32 to vector<1x16xf32>
    %109 = arith.subf %108, %107 : vector<1x16xf32>
    %cst_59 = arith.constant -1.000000e+09 : f32
    %110 = vector.broadcast %cst_59 : f32 to vector<1x16xf32>
    %111 = arith.mulf %109, %110 : vector<1x16xf32>
    "tpu.trace_start"() <{level = 10 : i32, message = "qhd,khd->hqk"}> : () -> ()
    %cst_60 = arith.constant dense<0.000000e+00> : vector<4x8x16xf32>
    %112 = tpu.matmul %101, %103, %cst_60 {dimension_numbers = #tpu.dot_dimension_numbers<[2], [2], [0], [0], [0, 1, 0, 0, 1, 0], [1], [1]>} : vector<8x4x8xbf16>, vector<16x4x8xbf16>, vector<4x8x16xf32> -> vector<4x8x16xf32>
    "tpu.trace_stop"() : () -> ()
    %113 = vector.shape_cast %111 : vector<1x16xf32> to vector<1x1x16xf32>
    %114 = vector.broadcast %113 : vector<1x1x16xf32> to vector<4x8x16xf32>
    %115 = arith.addf %112, %114 : vector<4x8x16xf32>
    %cst_61 = arith.constant dense<0xFF800000> : vector<4x8xf32>
    %116 = vector.multi_reduction <maximumf>, %115, %cst_61 [2] : vector<4x8x16xf32> to vector<4x8xf32>
    %117 = vector.shape_cast %116 : vector<4x8xf32> to vector<4x8x1xf32>
    %118 = vector.broadcast %117 : vector<4x8x1xf32> to vector<4x8x16xf32>
    %119 = arith.subf %115, %118 : vector<4x8x16xf32>
    %120 = math.exp %119 : vector<4x8x16xf32>
    %cst_62 = arith.constant dense<0.000000e+00> : vector<4x8xf32>
    %121 = vector.multi_reduction <add>, %120, %cst_62 [2] : vector<4x8x16xf32> to vector<4x8xf32>
    %122 = vector.shape_cast %121 : vector<4x8xf32> to vector<4x8x1xf32>
    %123 = tpu.reciprocal %122 {approx = true} : vector<4x8x1xf32> -> vector<4x8x1xf32>
    %124 = vector.broadcast %123 : vector<4x8x1xf32> to vector<4x8x16xf32>
    %125 = arith.mulf %120, %124 : vector<4x8x16xf32>
    %126 = arith.truncf %125 : vector<4x8x16xf32> to vector<4x8x16xbf16>
    "tpu.trace_start"() <{level = 10 : i32, message = "hqk,khd->hqd"}> : () -> ()
    %cst_63 = arith.constant dense<0.000000e+00> : vector<4x8x8xf32>
    %127 = tpu.matmul %126, %105, %cst_63 {dimension_numbers = #tpu.dot_dimension_numbers<[2], [0], [1], [2], [0, 0, 0, 1, 1, 2], [0], [1]>} : vector<4x8x16xbf16>, vector<16x4x8xbf16>, vector<4x8x8xf32> -> vector<4x8x8xf32>
    "tpu.trace_stop"() : () -> ()
    %128 = tpu.transpose %127, [1, 0, 2] : vector<4x8x8xf32> -> vector<8x4x8xf32>
    %129 = vector.shape_cast %128 : vector<8x4x8xf32> to vector<8x32xf32>
    %130 = arith.truncf %129 : vector<8x32xf32> to vector<8x32xbf16>
    %c0_64 = arith.constant 0 : index
    %c0_65 = arith.constant 0 : index
    %c0_66 = arith.constant 0 : index
    %131 = vector.load %arg12[%c0_64, %c0_65, %c0_66] : memref<1x32x32xbf16, #tpu.memory_space<vmem>>, vector<1x32x32xbf16>
    %132 = vector.shape_cast %131 : vector<1x32x32xbf16> to vector<32x32xbf16>
    %cst_67 = arith.constant dense<0.000000e+00> : vector<8x32xf32>
    %133 = tpu.matmul %130, %132, %cst_67 {dimension_numbers = #tpu.dot_dimension_numbers<[1], [0], [0], [1], [0, 0, 1, 1], [], []>} : vector<8x32xbf16>, vector<32x32xbf16>, vector<8x32xf32> -> vector<8x32xf32>
    %134 = arith.addf %69, %133 : vector<8x32xf32>
    %135 = arith.mulf %134, %134 : vector<8x32xf32>
    %cst_68 = arith.constant dense<0.000000e+00> : vector<8xf32>
    %136 = vector.multi_reduction <add>, %135, %cst_68 [1] : vector<8x32xf32> to vector<8xf32>
    %137 = vector.shape_cast %136 : vector<8xf32> to vector<8x1xf32>
    %cst_69 = arith.constant 3.200000e+01 : f32
    %138 = vector.broadcast %cst_69 : f32 to vector<8x1xf32>
    %139 = arith.divf %137, %138 : vector<8x1xf32>
    %cst_70 = arith.constant 9.99999997E-7 : f32
    %140 = vector.broadcast %cst_70 : f32 to vector<8x1xf32>
    %141 = arith.addf %139, %140 : vector<8x1xf32>
    %142 = math.rsqrt %141 : vector<8x1xf32>
    %143 = vector.broadcast %142 : vector<8x1xf32> to vector<8x32xf32>
    %144 = arith.mulf %134, %143 : vector<8x32xf32>
    %c0_71 = arith.constant 0 : index
    %c0_72 = arith.constant 0 : index
    %c0_73 = arith.constant 0 : index
    %145 = vector.load %arg13[%c0_71, %c0_72, %c0_73] : memref<1x1x32xf32, #tpu.memory_space<vmem>>, vector<1x1x32xf32>
    %146 = vector.shape_cast %145 : vector<1x1x32xf32> to vector<1x32xf32>
    %147 = vector.broadcast %146 : vector<1x32xf32> to vector<8x32xf32>
    %148 = arith.mulf %144, %147 : vector<8x32xf32>
    %149 = arith.truncf %148 : vector<8x32xf32> to vector<8x32xbf16>
    %c0_74 = arith.constant 0 : index
    %c0_75 = arith.constant 0 : index
    %c0_76 = arith.constant 0 : index
    %150 = vector.load %arg14[%c0_74, %c0_75, %c0_76] : memref<1x32x64xbf16, #tpu.memory_space<vmem>>, vector<1x32x64xbf16>
    %151 = vector.shape_cast %150 : vector<1x32x64xbf16> to vector<32x64xbf16>
    %cst_77 = arith.constant dense<0.000000e+00> : vector<8x64xf32>
    %152 = tpu.matmul %149, %151, %cst_77 {dimension_numbers = #tpu.dot_dimension_numbers<[1], [0], [0], [1], [0, 0, 1, 1], [], []>} : vector<8x32xbf16>, vector<32x64xbf16>, vector<8x64xf32> -> vector<8x64xf32>
    %cst_78 = arith.constant 0.000000e+00 : f32
    %153 = vector.broadcast %cst_78 : f32 to vector<8x64xf32>
    %154 = arith.maximumf %152, %153 : vector<8x64xf32>
    %155 = arith.truncf %154 : vector<8x64xf32> to vector<8x64xbf16>
    %c0_79 = arith.constant 0 : index
    %c0_80 = arith.constant 0 : index
    %c0_81 = arith.constant 0 : index
    %156 = vector.load %arg15[%c0_79, %c0_80, %c0_81] : memref<1x64x32xbf16, #tpu.memory_space<vmem>>, vector<1x64x32xbf16>
    %157 = vector.shape_cast %156 : vector<1x64x32xbf16> to vector<64x32xbf16>
    %cst_82 = arith.constant dense<0.000000e+00> : vector<8x32xf32>
    %158 = tpu.matmul %155, %157, %cst_82 {dimension_numbers = #tpu.dot_dimension_numbers<[1], [0], [0], [1], [0, 0, 1, 1], [], []>} : vector<8x64xbf16>, vector<64x32xbf16>, vector<8x32xf32> -> vector<8x32xf32>
    %159 = arith.addf %134, %158 : vector<8x32xf32>
    %c0_83 = arith.constant 0 : index
    %c0_84 = arith.constant 0 : index
    %c0_85 = arith.constant 0 : index
    %160 = vector.load %arg16[%c0_83, %c0_84, %c0_85] : memref<1x8x32xf32, #tpu.memory_space<vmem>>, vector<1x8x32xf32>
    %161 = vector.shape_cast %160 : vector<1x8x32xf32> to vector<8x32xf32>
    %162 = vector.shape_cast %159 : vector<8x32xf32> to vector<1x8x32xf32>
    tpu.vector_store %arg16[%c0_83, %c0_84, %c0_85], %162 {strides = array<i32>} : memref<1x8x32xf32, #tpu.memory_space<vmem>>, vector<1x8x32xf32>,
    %c1_i32 = arith.constant 1 : i32
    %163 = arith.cmpi eq, %arg1, %c1_i32 : i32
    %164 = arith.extui %163 : i1 to i32
    %c0_i32_86 = arith.constant 0 : i32
    %165 = arith.cmpi ne, %164, %c0_i32_86 : i32
    scf.if %165 {
      %166 = arith.mulf %159, %159 : vector<8x32xf32>
      %cst_87 = arith.constant dense<0.000000e+00> : vector<8xf32>
      %167 = vector.multi_reduction <add>, %166, %cst_87 [1] : vector<8x32xf32> to vector<8xf32>
      %168 = vector.shape_cast %167 : vector<8xf32> to vector<8x1xf32>
      %cst_88 = arith.constant 3.200000e+01 : f32
      %169 = vector.broadcast %cst_88 : f32 to vector<8x1xf32>
      %170 = arith.divf %168, %169 : vector<8x1xf32>
      %cst_89 = arith.constant 9.99999997E-7 : f32
      %171 = vector.broadcast %cst_89 : f32 to vector<8x1xf32>
      %172 = arith.addf %170, %171 : vector<8x1xf32>
      %173 = math.rsqrt %172 : vector<8x1xf32>
      %174 = vector.broadcast %173 : vector<8x1xf32> to vector<8x32xf32>
      %175 = arith.mulf %159, %174 : vector<8x32xf32>
      %c0_90 = arith.constant 0 : index
      %c0_91 = arith.constant 0 : index
      %176 = vector.load %arg5[%c0_90, %c0_91] : memref<1x32xf32, #tpu.memory_space<vmem>>, vector<1x32xf32>
      %177 = vector.broadcast %176 : vector<1x32xf32> to vector<8x32xf32>
      %178 = arith.mulf %175, %177 : vector<8x32xf32>
      %179 = arith.truncf %178 : vector<8x32xf32> to vector<8x32xbf16>
      %c0_92 = arith.constant 0 : index
      %c0_93 = arith.constant 0 : index
      %c0_94 = arith.constant 0 : index
      %180 = vector.load %arg17[%c0_92, %c0_93, %c0_94] : memref<1x8x32xbf16, #tpu.memory_space<vmem>>, vector<1x8x32xbf16>
      %181 = vector.shape_cast %180 : vector<1x8x32xbf16> to vector<8x32xbf16>
      %182 = vector.shape_cast %179 : vector<8x32xbf16> to vector<1x8x32xbf16>
      tpu.vector_store %arg17[%c0_92, %c0_93, %c0_94], %182 {strides = array<i32>} : memref<1x8x32xbf16, #tpu.memory_space<vmem>>, vector<1x8x32xbf16>,
    } else {
    }
    return
  }
  func.func @transform_0(%arg0: i32, %arg1: i32) -> (i32, i32, i32) {
    %c0_i32 = arith.constant 0 : i32
    %c0_i32_0 = arith.constant 0 : i32
    %c0_i32_1 = arith.constant 0 : i32
    return %arg0, %c0_i32, %c0_i32_0 : i32, i32, i32
  }
  func.func @transform_1(%arg0: i32, %arg1: i32) -> (i32, i32, i32) {
    %c0_i32 = arith.constant 0 : i32
    %c0_i32_0 = arith.constant 0 : i32
    %c0_i32_1 = arith.constant 0 : i32
    return %arg0, %c0_i32, %c0_i32_0 : i32, i32, i32
  }
  func.func @transform_2(%arg0: i32, %arg1: i32) -> (i32, i32, i32) {
    %c0_i32 = arith.constant 0 : i32
    %c0_i32_0 = arith.constant 0 : i32
    %c0_i32_1 = arith.constant 0 : i32
    return %arg0, %c0_i32, %c0_i32_0 : i32, i32, i32
  }
  func.func @transform_3(%arg0: i32, %arg1: i32) -> (i32, i32) {
    %c0_i32 = arith.constant 0 : i32
    %c0_i32_0 = arith.constant 0 : i32
    %c0_i32_1 = arith.constant 0 : i32
    return %c0_i32, %c0_i32_0 : i32, i32
  }
  func.func @transform_4(%arg0: i32, %arg1: i32) -> (i32, i32, i32) {
    %c0_i32 = arith.constant 0 : i32
    %c0_i32_0 = arith.constant 0 : i32
    %c0_i32_1 = arith.constant 0 : i32
    return %arg1, %c0_i32, %c0_i32_0 : i32, i32, i32
  }
  func.func @transform_5(%arg0: i32, %arg1: i32) -> (i32, i32, i32) {
    %c0_i32 = arith.constant 0 : i32
    %c0_i32_0 = arith.constant 0 : i32
    %c0_i32_1 = arith.constant 0 : i32
    return %arg1, %c0_i32, %c0_i32_0 : i32, i32, i32
  }
  func.func @transform_6(%arg0: i32, %arg1: i32) -> (i32, i32, i32) {
    %c0_i32 = arith.constant 0 : i32
    %c0_i32_0 = arith.constant 0 : i32
    %c0_i32_1 = arith.constant 0 : i32
    return %arg1, %c0_i32, %c0_i32_0 : i32, i32, i32
  }
  func.func @transform_7(%arg0: i32, %arg1: i32) -> (i32, i32, i32) {
    %c0_i32 = arith.constant 0 : i32
    %c0_i32_0 = arith.constant 0 : i32
    %c0_i32_1 = arith.constant 0 : i32
    return %arg1, %c0_i32, %c0_i32_0 : i32, i32, i32
  }
  func.func @transform_8(%arg0: i32, %arg1: i32) -> (i32, i32, i32) {
    %c0_i32 = arith.constant 0 : i32
    %c0_i32_0 = arith.constant 0 : i32
    %c0_i32_1 = arith.constant 0 : i32
    return %arg1, %c0_i32, %c0_i32_0 : i32, i32, i32
  }
  func.func @transform_9(%arg0: i32, %arg1: i32) -> (i32, i32, i32) {
    %c0_i32 = arith.constant 0 : i32
    %c0_i32_0 = arith.constant 0 : i32
    %c0_i32_1 = arith.constant 0 : i32
    return %arg1, %c0_i32, %c0_i32_0 : i32, i32, i32
  }
  func.func @transform_10(%arg0: i32, %arg1: i32) -> (i32, i32, i32) {
    %c0_i32 = arith.constant 0 : i32
    %c0_i32_0 = arith.constant 0 : i32
    %c0_i32_1 = arith.constant 0 : i32
    return %arg1, %c0_i32, %c0_i32_0 : i32, i32, i32
  }
  func.func @transform_11(%arg0: i32, %arg1: i32) -> (i32, i32, i32) {
    %c0_i32 = arith.constant 0 : i32
    %c0_i32_0 = arith.constant 0 : i32
    %c0_i32_1 = arith.constant 0 : i32
    return %arg1, %c0_i32, %c0_i32_0 : i32, i32, i32
  }
  func.func @transform_12(%arg0: i32, %arg1: i32) -> (i32, i32, i32) {
    %c0_i32 = arith.constant 0 : i32
    %c0_i32_0 = arith.constant 0 : i32
    %c0_i32_1 = arith.constant 0 : i32
    return %arg1, %c0_i32, %c0_i32_0 : i32, i32, i32
  }
  func.func @transform_13(%arg0: i32, %arg1: i32) -> (i32, i32, i32) {
    %c0_i32 = arith.constant 0 : i32
    %c0_i32_0 = arith.constant 0 : i32
    %c0_i32_1 = arith.constant 0 : i32
    return %arg1, %c0_i32, %c0_i32_0 : i32, i32, i32
  }
  func.func @transform_14(%arg0: i32, %arg1: i32) -> (i32, i32, i32) {
    %c0_i32 = arith.constant 0 : i32
    %c0_i32_0 = arith.constant 0 : i32
    %c0_i32_1 = arith.constant 0 : i32
    return %arg0, %c0_i32, %c0_i32_0 : i32, i32, i32
  }
  func.func @transform_15(%arg0: i32, %arg1: i32) -> (i32, i32, i32) {
    %c0_i32 = arith.constant 0 : i32
    %c0_i32_0 = arith.constant 0 : i32
    %c0_i32_1 = arith.constant 0 : i32
    return %arg0, %c0_i32, %c0_i32_0 : i32, i32, i32
  }
  func.func @transform_16(%arg0: i32, %arg1: i32) -> (i32, i32, i32, i32) {
    %c0_i32 = arith.constant 0 : i32
    %c0_i32_0 = arith.constant 0 : i32
    %c0_i32_1 = arith.constant 0 : i32
    return %arg1, %arg0, %c0_i32, %c0_i32_0 : i32, i32, i32, i32
  }
  func.func @transform_17(%arg0: i32, %arg1: i32) -> (i32, i32, i32, i32) {
    %c0_i32 = arith.constant 0 : i32
    %c0_i32_0 = arith.constant 0 : i32
    %c0_i32_1 = arith.constant 0 : i32
    return %arg1, %arg0, %c0_i32, %c0_i32_0 : i32, i32, i32, i32
  }
  func.func @transform_18(%arg0: i32, %arg1: i32) -> (i32, i32, i32, i32) {
    %c0_i32 = arith.constant 0 : i32
    %c0_i32_0 = arith.constant 0 : i32
    %c0_i32_1 = arith.constant 0 : i32
    return %arg1, %arg0, %c0_i32, %c0_i32_0 : i32, i32, i32, i32
  }
  func.func @transform_19(%arg0: i32, %arg1: i32) -> (i32, i32, i32, i32) {
    %c0_i32 = arith.constant 0 : i32
    %c0_i32_0 = arith.constant 0 : i32
    %c0_i32_1 = arith.constant 0 : i32
    return %arg1, %arg0, %c0_i32, %c0_i32_0 : i32, i32, i32, i32
  }
}

module attributes {stable_mosaic.version = 11 : i64} {
  func.func @_lm_head_kernel(%arg0: i32, %arg1: i32, %arg2: memref<1x8x32xbf16, #tpu.memory_space<vmem>>, %arg3: memref<32x128xbf16, #tpu.memory_space<vmem>>, %arg4: memref<1x8x128xf32, #tpu.memory_space<vmem>>) attributes {dimension_semantics = [#tpu.dimension_semantics<parallel>, #tpu.dimension_semantics<parallel>], iteration_bounds = array<i64: 2, 1>, scalar_prefetch = 0 : i64, scratch_operands = 0 : i64, tpu.core_type = #tpu.core_type<tc>, window_params = [{transform_indices = @transform_0, window_bounds = array<i64: 1, 8, 32>}, {transform_indices = @transform_1, window_bounds = array<i64: 32, 128>}, {transform_indices = @transform_2, window_bounds = array<i64: 1, 8, 128>}]} {
    %c0 = arith.constant 0 : index
    %c0_0 = arith.constant 0 : index
    %c0_1 = arith.constant 0 : index
    %0 = vector.load %arg2[%c0, %c0_0, %c0_1] : memref<1x8x32xbf16, #tpu.memory_space<vmem>>, vector<1x8x32xbf16>
    %1 = vector.shape_cast %0 : vector<1x8x32xbf16> to vector<8x32xbf16>
    %c0_2 = arith.constant 0 : index
    %c0_3 = arith.constant 0 : index
    %2 = vector.load %arg3[%c0_2, %c0_3] : memref<32x128xbf16, #tpu.memory_space<vmem>>, vector<32x128xbf16>
    %cst = arith.constant dense<0.000000e+00> : vector<8x128xf32>
    %3 = tpu.matmul %1, %2, %cst {dimension_numbers = #tpu.dot_dimension_numbers<[1], [0], [0], [1], [0, 0, 1, 1], [], []>} : vector<8x32xbf16>, vector<32x128xbf16>, vector<8x128xf32> -> vector<8x128xf32>
    %c0_4 = arith.constant 0 : index
    %c0_5 = arith.constant 0 : index
    %c0_6 = arith.constant 0 : index
    %4 = vector.load %arg4[%c0_4, %c0_5, %c0_6] : memref<1x8x128xf32, #tpu.memory_space<vmem>>, vector<1x8x128xf32>
    %5 = vector.shape_cast %4 : vector<1x8x128xf32> to vector<8x128xf32>
    %6 = vector.shape_cast %3 : vector<8x128xf32> to vector<1x8x128xf32>
    tpu.vector_store %arg4[%c0_4, %c0_5, %c0_6], %6 {strides = array<i32>} : memref<1x8x128xf32, #tpu.memory_space<vmem>>, vector<1x8x128xf32>,
    return
  }
  func.func @transform_0(%arg0: i32, %arg1: i32) -> (i32, i32, i32) {
    %c0_i32 = arith.constant 0 : i32
    %c0_i32_0 = arith.constant 0 : i32
    %c0_i32_1 = arith.constant 0 : i32
    return %arg0, %c0_i32, %c0_i32_0 : i32, i32, i32
  }
  func.func @transform_1(%arg0: i32, %arg1: i32) -> (i32, i32) {
    %c0_i32 = arith.constant 0 : i32
    %c0_i32_0 = arith.constant 0 : i32
    return %c0_i32, %arg1 : i32, i32
  }
  func.func @transform_2(%arg0: i32, %arg1: i32) -> (i32, i32, i32) {
    %c0_i32 = arith.constant 0 : i32
    %c0_i32_0 = arith.constant 0 : i32
    return %arg0, %c0_i32, %arg1 : i32, i32, i32
  }
}

</mosaic_0001>

<llo_original>
// kernel: t5_decoder_init.3
$region0: #{t5_decoder_init.3}
  #allocation0 [shape = 'u32[]', space=smem, size = 0x4, offset = 0x4, fixed_abs, tag = 'smem constant byte address 0x4 - core index']
  #allocation1 [shape = 'u32[144,128]{1,0:T(1,128)}', space=vmem, size = 0x12000, scoped, tag = 'internal scratch']
  %s0 = inlined_call_operand.hbm [shape: bf16[2,8,32], index: 0, kind: input, shape index: {}]
  %s1 = inlined_call_operand.hbm [shape: bf16[32,128], index: 1, kind: input, shape index: {}]
  %s2 = inlined_call_operand.hbm [shape: f32[2,8,128], index: 2, kind: output, shape index: {}]
  %s3 = sld [smem:[#allocation0]]
  $region49: #{t5_decoder_init.3} parent=0
    _
  %s5 = ssub.s32 1, %s3
  %s6 = scalar_select 0, %s5, %s3
  $region1: #{t5_decoder_init.3} parent=0
    #allocation2 [shape = 'u8[4096]{0}', space=vmem, size = 0x1000, scoped, tag = 'input window, operand 0']
    #allocation3 [shape = 's32[2]{0}', space=sflag, size = 0x8, scoped, tag = 'scoped memory for t5_decoder_init.3']
    #allocation4 [shape = 's32[2]{0}', space=sflag, size = 0x8, scoped, tag = 'scoped memory for t5_decoder_init.3']
    #allocation5 [shape = 'u8[8192]{0}', space=vmem, size = 0x2000, scoped, tag = 'input window, operand 1, single buffered']
    #allocation6 [shape = 's32[1]{0}', space=sflag, size = 0x4, scoped, tag = 'scoped memory for t5_decoder_init.3']
    #allocation7 [shape = 'u8[8192]{0}', space=vmem, size = 0x2000, scoped, tag = 'output window, operand 0']
    %7 = vsyncpa [#allocation3], 0
    %s8 = scalar_lea.sflag [#allocation3], 1
    %9 = vsyncpa %s8, 0
    %10 = vsyncpa [#allocation6], 0
    %11 = vsyncpa [#allocation4], 0
    %s12 = scalar_lea.sflag [#allocation4], 1
    %13 = vsyncpa %s12, 0
    loop: start=0, step=1, limit=4
    $region2: #{t5_decoder_init.3} parent=1 // loop_pre_header
      _
    $region3: #{t5_decoder_init.3} parent=1 // loop_header
      %s15 = sphi 0, %s19
      %p16 = scmp.ge.s32.totalorder %s15, 4
      %s22 = sphi 0, %s34
      %s23 = sphi 0, %s30
      %s24 = sphi 0, %s22
      %s25 = sphi 0, %s23
      %s26 = sphi 0, %s24
      %s27 = sphi 0, %s25
      %s37 = sphi 0, %s39
      %s40 = sphi 0, %s37
      %s41 = sphi 0, %s40
      %s57 = sphi 0, %s41
      %s63 = sphi 0, %s65
      %s66 = sphi 0, %s63
      %s67 = sphi 0, %s66
      %s83 = sphi 0, %s67
      %s91 = sphi 0, %s93
      %s94 = sphi 0, %s91
      %s95 = sphi 0, %s94
      %s111 = sphi 0, %s95
    $region4: #{t5_decoder_init.3} parent=1 // loop_header_branch
      %18 = sbr.rel (%p16) target = $region8
    $region5: #{t5_decoder_init.3} parent=1 // loop_body
      %s20 = ssub.s32 %s15, 1
      %s21 = ssub.s32 %s15, 2
      %s28 = sadd.s32 1, %s23
      %p29 = scmp.ge.s32.totalorder %s28, 1
      %s30 = scalar_select %p29, 0, %s28
      %s31 = sadd.s32 1, %s22
      %s32 = scalar_select %p29, %s31, %s22
      %p33 = scmp.ge.s32.totalorder %s32, 2
      %s34 = scalar_select %p33, 0, %s32
      %s35 = ssub.s32 %s22, %s34
      %p36 = scmp.eq.s32.totalorder %s35, 0
      %s38 = sadd.s32 %s37, 1
      %s39 = scalar_select %p36, %s37, %s38
      %p42 = pneg %p36
      %p43 = scmp.eq.s32.totalorder %s15, 1
      %p44 = por %p42, %p43
      %p45 = scmp.ne.s32.totalorder %s37, %s40
      %p46 = scmp.eq.s32.totalorder %s15, 0
      %p47 = por %p45, %p46
      %p48 = scmp.ne.s32.totalorder %s37, %s40
      %p49 = scmp.eq.s32.totalorder %s20, 1
      %p50 = por %p48, %p49
      %p51 = scmp.ne.s32.totalorder %s40, %s41
      %p52 = scmp.eq.s32.totalorder %s20, 0
      %p53 = por %p51, %p52
      %p54 = scmp.ne.s32.totalorder %s40, %s41
      %p55 = scmp.eq.s32.totalorder %s21, 1
      %p56 = por %p54, %p55
      %p58 = scmp.ne.s32.totalorder %s41, %s57
      %p59 = scmp.eq.s32.totalorder %s21, 0
      %p60 = por %p58, %p59
      %s61 = ssub.s32 %s23, %s30
      %p62 = scmp.eq.s32.totalorder %s61, 0
      %s64 = sadd.s32 %s63, 1
      %s65 = scalar_select %p62, %s63, %s64
      %p68 = pneg %p62
      %p69 = scmp.eq.s32.totalorder %s15, 1
      %p70 = por %p68, %p69
      %p71 = scmp.ne.s32.totalorder %s63, %s66
      %p72 = scmp.eq.s32.totalorder %s15, 0
      %p73 = por %p71, %p72
      %p74 = scmp.ne.s32.totalorder %s63, %s66
      %p75 = scmp.eq.s32.totalorder %s20, 1
      %p76 = por %p74, %p75
      %p77 = scmp.ne.s32.totalorder %s66, %s67
      %p78 = scmp.eq.s32.totalorder %s20, 0
      %p79 = por %p77, %p78
      %p80 = scmp.ne.s32.totalorder %s66, %s67
      %p81 = scmp.eq.s32.totalorder %s21, 1
      %p82 = por %p80, %p81
      %p84 = scmp.ne.s32.totalorder %s67, %s83
      %p85 = scmp.eq.s32.totalorder %s21, 0
      %p86 = por %p84, %p85
      %s87 = ssub.s32 %s22, %s34
      %s88 = ssub.s32 %s23, %s30
      %s89 = sor.u32 %s87, %s88
      %p90 = scmp.eq.s32.totalorder %s89, 0
      %s92 = sadd.s32 %s91, 1
      %s93 = scalar_select %p90, %s91, %s92
      %p96 = pneg %p90
      %p97 = scmp.eq.s32.totalorder %s15, 1
      %p98 = por %p96, %p97
      %p99 = scmp.ne.s32.totalorder %s91, %s94
      %p100 = scmp.eq.s32.totalorder %s15, 0
      %p101 = por %p99, %p100
      %p102 = scmp.ne.s32.totalorder %s91, %s94
      %p103 = scmp.eq.s32.totalorder %s20, 1
      %p104 = por %p102, %p103
      %p105 = scmp.ne.s32.totalorder %s94, %s95
      %p106 = scmp.eq.s32.totalorder %s20, 0
      %p107 = por %p105, %p106
      %p108 = scmp.ne.s32.totalorder %s94, %s95
      %p109 = scmp.eq.s32.totalorder %s21, 1
      %p110 = por %p108, %p109
      %p112 = scmp.ne.s32.totalorder %s95, %s111
      %p113 = scmp.eq.s32.totalorder %s21, 0
      %p114 = por %p112, %p113
      %p115 = scmp.le.s32.totalorder 1, %s15
      %p116 = scmp.lt.s32.totalorder %s15, 3
      %p117 = pnand %p115, %p116
      %p118 = pneg %p117
      // Predicated region
      $region9: #{t5_decoder_init.3} parent=5 // pred_check
        _
      $region10: #{t5_decoder_init.3} parent=5 // pred_check_branch
        %120 = sbr.rel (%p117) target = $region12
      $region11: #{t5_decoder_init.3} parent=5 // pred_region
        %s121 = ssub.s32 %s15, 1
        // Predicated region
        $region13: #{t5_decoder_init.3} parent=11 // pred_check
          %p122 = pneg %p79
        $region14: #{t5_decoder_init.3} parent=11 // pred_check_branch
          %124 = sbr.rel (%p122) target = $region16
        $region15: #{t5_decoder_init.3} parent=11 // pred_region
          %s126 = ssub.s32 256, 256
          %127 = vsyncadd [#allocation6], %s126
          %s128 = smul.addr %s25, 64
          %s129 = scalar_lea.hbm %s1, %s128
          %s130 = sshll.u32 [#allocation5], 4
          %s131 = int_to_ptr.vmem [resolvable:$true] %s130
          %136 = dma.hbm_to_vmem [thread:$0]  %s129, 256, %s131, [#allocation6], 64, 64, 4
        $region16: #{t5_decoder_init.3} parent=11 // pred_fallthru
          _
      $region12: #{t5_decoder_init.3} parent=5 // pred_fallthru
        _
      %p137 = scmp.lt.s32.totalorder %s15, 2
      // Predicated region
      $region17: #{t5_decoder_init.3} parent=5 // pred_check
        %p138 = pneg %p137
      $region18: #{t5_decoder_init.3} parent=5 // pred_check_branch
        %140 = sbr.rel (%p138) target = $region20
      $region19: #{t5_decoder_init.3} parent=5 // pred_region
        // Predicated region
        $region21: #{t5_decoder_init.3} parent=19 // pred_check
          %p141 = pneg %p47
        $region22: #{t5_decoder_init.3} parent=19 // pred_check_branch
          %143 = sbr.rel (%p141) target = $region24
        $region23: #{t5_decoder_init.3} parent=19 // pred_region
          %s144 = sand.u32 %s37, 1
          %s145 = scalar_lea.sflag [#allocation3], %s144
          %s146 = sand.u32 %s37, 1
          %s147 = smul.addr %s146, 4
          %s148 = scalar_lea.vmem [#allocation2], %s147
          %s150 = ssub.s32 64, 64
          %151 = vsyncadd %s145, %s150
          %s152 = smul.addr %s22, 64
          %s153 = scalar_lea.hbm %s0, %s152
          %s155 = sshll.u32 %s148, 4
          %s156 = int_to_ptr.vmem [resolvable:$true] %s155
          %158 = dma.hbm_to_vmem [thread:$0]  %s153, 64, %s156, %s145
        $region24: #{t5_decoder_init.3} parent=19 // pred_fallthru
          _
      $region20: #{t5_decoder_init.3} parent=5 // pred_fallthru
        _
      %p159 = scmp.le.s32.totalorder 1, %s15
      %p160 = scmp.lt.s32.totalorder %s15, 3
      %p161 = pnand %p159, %p160
      %p162 = pneg %p161
      // Predicated region
      $region25: #{t5_decoder_init.3} parent=5 // pred_check
        _
      $region26: #{t5_decoder_init.3} parent=5 // pred_check_branch
        %164 = sbr.rel (%p161) target = $region28
      $region27: #{t5_decoder_init.3} parent=5 // pred_region
        %s165 = ssub.s32 %s15, 1
        %s166 = sand.u32 %s40, 1
        %s167 = scalar_lea.sflag [#allocation3], %s166
        %s168 = sand.u32 %s40, 1
        %s169 = smul.addr %s168, 4
        %s170 = scalar_lea.vmem [#allocation2], %s169
        // Predicated region
        $region29: #{t5_decoder_init.3} parent=27 // pred_check
          %p171 = pneg %p53
        $region30: #{t5_decoder_init.3} parent=27 // pred_check_branch
          %173 = sbr.rel (%p171) target = $region32
        $region31: #{t5_decoder_init.3} parent=27 // pred_region
          %174 = dma.done %s167, 64
        $region32: #{t5_decoder_init.3} parent=27 // pred_fallthru
          _
        // Predicated region
        $region33: #{t5_decoder_init.3} parent=27 // pred_check
          %p175 = pneg %p79
        $region34: #{t5_decoder_init.3} parent=27 // pred_check_branch
          %177 = sbr.rel (%p175) target = $region36
        $region35: #{t5_decoder_init.3} parent=27 // pred_region
          %178 = dma.done [#allocation6], 256
        $region36: #{t5_decoder_init.3} parent=27 // pred_fallthru
          _
        %s179 = sand.u32 %s40, 1
        %s180 = scalar_lea.sflag [#allocation3], %s179
        %s181 = sand.u32 %s40, 1
        %s182 = smul.addr %s181, 4
        %s183 = scalar_lea.vmem [#allocation2], %s182
        %p184 = pneg %p53
        %p185 = pneg %p50
        %p186 = pneg %p79
        %p187 = pneg %p76
        %p188 = pneg %p107
        %p189 = pneg %p104
        %s190 = sand.u32 %s94, 1
        %s191 = scalar_lea.sflag [#allocation4], %s190
        %s192 = sand.u32 %s94, 1
        %s193 = smul.addr %s192, 8
        %s194 = scalar_lea.vmem [#allocation7], %s193
        %v196 = vld [vmem:[%s170] sm:$0xf]
        %v197 = vld [vmem:[#allocation5] sm:$0xf]
        %v198 = vld [vmem:[#allocation5 + $0x4] sm:$0xf]
        %v199 = vld [vmem:[#allocation5 + $0x8] sm:$0xf]
        %v200 = vld [vmem:[#allocation5 + $0xc] sm:$0xf]
        %v205 = vunpack.c.l.b16 %v197
        %v206 = vunpack.c.l.b16 %v198
        %v207 = vunpack.c.l.b16 %v199
        %v208 = vunpack.c.l.b16 %v200
        %v209 = vpack.c.b16 %v206, %v205
        %v210 = vpack.c.b16 %v208, %v207
        %vm213 = vcmask 261120
        %v215 = vsel %vm213, %v196, 0
        %217 = vmatprep.subr.bf16.mxu0 0
        %218 = vmatpush1.bf16.msra.mxu0 %v209
        %219 = vmatprep.subr.bf16.mxu0 0
        %220 = vmatpush1.bf16.msra.mxu0 %v210
        %221 = vmatprep.subr.bf16.mxu0 0
        %222 = vmatpush1.bf16.msra.mxu0 0
        %223 = vmatprep.subr.bf16.mxu0 0
        %224 = vmatpush1.bf16.msra.mxu0 0
        %225 = vmatprep.subr.bf16.mxu0 0
        %226 = vmatpush1.bf16.msra.mxu0 0
        %227 = vmatprep.subr.bf16.mxu0 0
        %228 = vmatpush1.bf16.msra.mxu0 0
        %229 = vmatprep.subr.bf16.mxu0 0
        %230 = vmatpush1.bf16.msra.mxu0 0
        %231 = vmatprep.subr.bf16.mxu0 0
        %232 = vmatpush1.bf16.msra.mxu0 0
        %233 = vmatprep.subr.bf16.mxu0 0
        %234 = vmatpush1.bf16.msra.mxu0 0
        %235 = vmatprep.subr.bf16.mxu0 0
        %236 = vmatpush1.bf16.msra.mxu0 0
        %237 = vmatprep.subr.bf16.mxu0 0
        %238 = vmatpush1.bf16.msra.mxu0 0
        %239 = vmatprep.subr.bf16.mxu0 0
        %240 = vmatpush1.bf16.msra.mxu0 0
        %241 = vmatprep.subr.bf16.mxu0 0
        %242 = vmatpush1.bf16.msra.mxu0 0
        %243 = vmatprep.subr.bf16.mxu0 0
        %244 = vmatpush1.bf16.msra.mxu0 0
        %245 = vmatprep.subr.bf16.mxu0 0
        %246 = vmatpush1.bf16.msra.mxu0 0
        %247 = vmatprep.subr.bf16.mxu0 0
        %248 = vmatpush1.bf16.msra.mxu0 0
        %249 = vmatprep.mubr.bf16.mxu0 0
        %250 = vmatmul.mubr.bf16.gmra.mrb[0].mxu0 %v215
        %v251 = vpop.f32.mrb[0].mxu0
        %v252 = vadd.f32 0.0, %v251
        %v253 = vpop.f32.mrb[0].mxu0
        %v254 = vpop.f32.mrb[0].mxu0
        %v255 = vpop.f32.mrb[0].mxu0
        %256 = vdwg.mxu0
        %257 = vst [vmem:[%s194] sm:$0xff] %v252
        %s258 = sand.u32 %s94, 1
        %s259 = scalar_lea.sflag [#allocation4], %s258
        %s260 = sand.u32 %s94, 1
        %s261 = smul.addr %s260, 8
        %s262 = scalar_lea.vmem [#allocation7], %s261
        // Predicated region
        $region37: #{t5_decoder_init.3} parent=27 // pred_check
          %p263 = pneg %p104
        $region38: #{t5_decoder_init.3} parent=27 // pred_check_branch
          %265 = sbr.rel (%p263) target = $region40
        $region39: #{t5_decoder_init.3} parent=27 // pred_region
          %s267 = ssub.s32 128, 128
          %268 = vsyncadd %s259, %s267
          %s269 = sadd.s32 %s25, %s24
          %s270 = smul.addr %s269, 128
          %s271 = scalar_lea.hbm %s2, %s270
          %s273 = sshll.u32 %s262, 4
          %s274 = int_to_ptr.vmem [resolvable:$true] %s273
          %276 = dma.vmem_to_hbm [thread:$0]  %s274, 128, %s271, %s259
        $region40: #{t5_decoder_init.3} parent=27 // pred_fallthru
          _
      $region28: #{t5_decoder_init.3} parent=5 // pred_fallthru
        _
      %p277 = scmp.le.s32.totalorder 2, %s15
      // Predicated region
      $region41: #{t5_decoder_init.3} parent=5 // pred_check
        %p278 = pneg %p277
      $region42: #{t5_decoder_init.3} parent=5 // pred_check_branch
        %280 = sbr.rel (%p278) target = $region44
      $region43: #{t5_decoder_init.3} parent=5 // pred_region
        %s281 = ssub.s32 %s15, 2
        // Predicated region
        $region45: #{t5_decoder_init.3} parent=43 // pred_check
          %p282 = pneg %p110
        $region46: #{t5_decoder_init.3} parent=43 // pred_check_branch
          %284 = sbr.rel (%p282) target = $region48
        $region47: #{t5_decoder_init.3} parent=43 // pred_region
          %s285 = sand.u32 %s95, 1
          %s286 = scalar_lea.sflag [#allocation4], %s285
          %s287 = sand.u32 %s95, 1
          %s288 = smul.addr %s287, 8
          %s289 = scalar_lea.vmem [#allocation7], %s288
          %290 = dma.done %s286, 128
        $region48: #{t5_decoder_init.3} parent=43 // pred_fallthru
          _
      $region44: #{t5_decoder_init.3} parent=5 // pred_fallthru
        _
    $region6: #{t5_decoder_init.3} parent=1 // loop_footer
      %s19 = sadd.s32 1, %s15
    $region7: #{t5_decoder_init.3} parent=1 // loop_footer_branch
      %14 = sbr.rel target = $region3
    $region8: #{t5_decoder_init.3} parent=1 // loop_exit
      _
    %291 = vsyncpa [#allocation3], 1
    %s292 = scalar_lea.sflag [#allocation3], 1
    %293 = vsyncpa %s292, 1
    %294 = vsyncpa [#allocation6], 1
    %295 = vsyncpa [#allocation4], 1
    %s296 = scalar_lea.sflag [#allocation4], 1
    %297 = vsyncpa %s296, 1

// kernel: t5_decoder_init.2
$region0: #{t5_decoder_init.2}
  #allocation0 [shape = 'u32[]', space=smem, size = 0x4, offset = 0x4, fixed_abs, tag = 'smem constant byte address 0x4 - core index']
  #allocation1 [shape = 'u32[144,128]{1,0:T(1,128)}', space=vmem, size = 0x12000, scoped, tag = 'internal scratch']
  %s0 = inlined_call_operand.hbm [shape: f32[2,8,32], index: 0, kind: input, shape index: {}]
  %s1 = inlined_call_operand.hbm [shape: f32[2,16,32], index: 1, kind: input, shape index: {}]
  %s2 = inlined_call_operand.hbm [shape: f32[2,1,16], index: 2, kind: input, shape index: {}]
  %s3 = inlined_call_operand.hbm [shape: f32[1,32], index: 3, kind: input, shape index: {}]
  %s4 = inlined_call_operand.hbm [shape: f32[2,1,32], index: 4, kind: input, shape index: {}]
  %s5 = inlined_call_operand.hbm [shape: bf16[2,32,96], index: 5, kind: input, shape index: {}]
  %s6 = inlined_call_operand.hbm [shape: bf16[2,32,32], index: 6, kind: input, shape index: {}]
  %s7 = inlined_call_operand.hbm [shape: f32[2,1,32], index: 7, kind: input, shape index: {}]
  %s8 = inlined_call_operand.hbm [shape: bf16[2,32,32], index: 8, kind: input, shape index: {}]
  %s9 = inlined_call_operand.hbm [shape: bf16[2,32,64], index: 9, kind: input, shape index: {}]
  %s10 = inlined_call_operand.hbm [shape: bf16[2,32,32], index: 10, kind: input, shape index: {}]
  %s11 = inlined_call_operand.hbm [shape: f32[2,1,32], index: 11, kind: input, shape index: {}]
  %s12 = inlined_call_operand.hbm [shape: bf16[2,32,64], index: 12, kind: input, shape index: {}]
  %s13 = inlined_call_operand.hbm [shape: bf16[2,64,32], index: 13, kind: input, shape index: {}]
  %s14 = inlined_call_operand.hbm [shape: f32[2,8,32], index: 14, kind: output, shape index: {0}]
  %s15 = inlined_call_operand.hbm [shape: bf16[2,8,32], index: 15, kind: output, shape index: {1}]
  %s16 = inlined_call_operand.hbm [shape: f32[2,2,8,32], index: 16, kind: output, shape index: {2}]
  %s17 = inlined_call_operand.hbm [shape: f32[2,2,8,32], index: 17, kind: output, shape index: {3}]
  %s18 = inlined_call_operand.hbm [shape: f32[2,2,16,32], index: 18, kind: output, shape index: {4}]
  %s19 = inlined_call_operand.hbm [shape: f32[2,2,16,32], index: 19, kind: output, shape index: {5}]
  %20 = xla_tuple %s14, %s15, %s16, %s17, %s18, %s19
  %s21 = sld [smem:[#allocation0]]
  $region193: #{t5_decoder_init.2} parent=0
    _
  %s23 = ssub.s32 1, %s21
  %s24 = scalar_select 0, %s23, %s21
  $region1: #{t5_decoder_init.2} parent=0
    #allocation2 [shape = 'u8[8192]{0}', space=vmem, size = 0x2000, scoped, tag = 'input window, operand 0']
    #allocation3 [shape = 's32[2]{0}', space=sflag, size = 0x8, scoped, tag = 'scoped memory for t5_decoder_init.2']
    #allocation4 [shape = 's32[2]{0}', space=sflag, size = 0x8, scoped, tag = 'scoped memory for t5_decoder_init.2']
    #allocation5 [shape = 'u8[16384]{0}', space=vmem, size = 0x4000, scoped, tag = 'input window, operand 1']
    #allocation6 [shape = 's32[2]{0}', space=sflag, size = 0x8, scoped, tag = 'scoped memory for t5_decoder_init.2']
    #allocation7 [shape = 'u8[1024]{0}', space=vmem, size = 0x400, scoped, tag = 'input window, operand 2']
    #allocation8 [shape = 'u8[512]{0}', space=vmem, size = 0x400, scoped, tag = 'input window, operand 3, single buffered']
    #allocation9 [shape = 's32[1]{0}', space=sflag, size = 0x4, scoped, tag = 'scoped memory for t5_decoder_init.2']
    #allocation10 [shape = 'u8[1024]{0}', space=vmem, size = 0x400, scoped, tag = 'input window, operand 4']
    #allocation11 [shape = 'u8[16384]{0}', space=vmem, size = 0x4000, scoped, tag = 'input window, operand 5']
    #allocation12 [shape = 'u8[16384]{0}', space=vmem, size = 0x4000, scoped, tag = 'input window, operand 6']
    #allocation13 [shape = 'u8[1024]{0}', space=vmem, size = 0x400, scoped, tag = 'input window, operand 7']
    #allocation14 [shape = 'u8[16384]{0}', space=vmem, size = 0x4000, scoped, tag = 'input window, operand 8']
    #allocation15 [shape = 'u8[16384]{0}', space=vmem, size = 0x4000, scoped, tag = 'input window, operand 9']
    #allocation16 [shape = 'u8[16384]{0}', space=vmem, size = 0x4000, scoped, tag = 'input window, operand 10']
    #allocation17 [shape = 'u8[1024]{0}', space=vmem, size = 0x400, scoped, tag = 'input window, operand 11']
    #allocation18 [shape = 'u8[16384]{0}', space=vmem, size = 0x4000, scoped, tag = 'input window, operand 12']
    #allocation19 [shape = 'u8[32768]{0}', space=vmem, size = 0x8000, scoped, tag = 'input window, operand 13']
    #allocation20 [shape = 'u8[8192]{0}', space=vmem, size = 0x2000, scoped, tag = 'output window, operand 0']
    #allocation21 [shape = 'u8[4096]{0}', space=vmem, size = 0x1000, scoped, tag = 'output window, operand 1']
    #allocation22 [shape = 's32[2]{0}', space=sflag, size = 0x8, scoped, tag = 'scoped memory for t5_decoder_init.2']
    #allocation23 [shape = 'u8[8192]{0}', space=vmem, size = 0x2000, scoped, tag = 'output window, operand 2']
    #allocation24 [shape = 'u8[8192]{0}', space=vmem, size = 0x2000, scoped, tag = 'output window, operand 3']
    #allocation25 [shape = 's32[2]{0}', space=sflag, size = 0x8, scoped, tag = 'scoped memory for t5_decoder_init.2']
    #allocation26 [shape = 'u8[16384]{0}', space=vmem, size = 0x4000, scoped, tag = 'output window, operand 4']
    #allocation27 [shape = 'u8[16384]{0}', space=vmem, size = 0x4000, scoped, tag = 'output window, operand 5']
    #allocation28 [shape = 's32[2]{0}', space=sflag, size = 0x8, scoped, tag = 'scoped memory for t5_decoder_init.2']
    %25 = vsyncpa [#allocation3], 0
    %s26 = scalar_lea.sflag [#allocation3], 1
    %27 = vsyncpa %s26, 0
    %28 = vsyncpa [#allocation6], 0
    %s29 = scalar_lea.sflag [#allocation6], 1
    %30 = vsyncpa %s29, 0
    %31 = vsyncpa [#allocation9], 0
    %32 = vsyncpa [#allocation4], 0
    %s33 = scalar_lea.sflag [#allocation4], 1
    %34 = vsyncpa %s33, 0
    %35 = vsyncpa [#allocation22], 0
    %s36 = scalar_lea.sflag [#allocation22], 1
    %37 = vsyncpa %s36, 0
    %38 = vsyncpa [#allocation25], 0
    %s39 = scalar_lea.sflag [#allocation25], 1
    %40 = vsyncpa %s39, 0
    %41 = vsyncpa [#allocation28], 0
    %s42 = scalar_lea.sflag [#allocation28], 1
    %43 = vsyncpa %s42, 0
    loop: start=0, step=1, limit=6
    $region2: #{t5_decoder_init.2} parent=1 // loop_pre_header
      _
    $region3: #{t5_decoder_init.2} parent=1 // loop_header
      %s45 = sphi 0, %s49
      %p46 = scmp.ge.s32.totalorder %s45, 6
      %s52 = sphi 0, %s64
      %s53 = sphi 0, %s60
      %s54 = sphi 0, %s52
      %s55 = sphi 0, %s53
      %s56 = sphi 0, %s54
      %s57 = sphi 0, %s55
      %s67 = sphi 0, %s69
      %s70 = sphi 0, %s67
      %s71 = sphi 0, %s70
      %s87 = sphi 0, %s71
      %s93 = sphi 0, %s95
      %s96 = sphi 0, %s93
      %s97 = sphi 0, %s96
      %s113 = sphi 0, %s97
      %s119 = sphi 0, %s121
      %s122 = sphi 0, %s119
      %s123 = sphi 0, %s122
      %s139 = sphi 0, %s123
      %s143 = sphi 0, %s143
      %s145 = sphi 0, %s143
      %s146 = sphi 0, %s145
      %s160 = sphi 0, %s146
      %s166 = sphi 0, %s168
      %s169 = sphi 0, %s166
      %s170 = sphi 0, %s169
      %s186 = sphi 0, %s170
      %s192 = sphi 0, %s194
      %s195 = sphi 0, %s192
      %s196 = sphi 0, %s195
      %s212 = sphi 0, %s196
      %s218 = sphi 0, %s220
      %s221 = sphi 0, %s218
      %s222 = sphi 0, %s221
      %s238 = sphi 0, %s222
      %s244 = sphi 0, %s246
      %s247 = sphi 0, %s244
      %s248 = sphi 0, %s247
      %s264 = sphi 0, %s248
      %s270 = sphi 0, %s272
      %s273 = sphi 0, %s270
      %s274 = sphi 0, %s273
      %s290 = sphi 0, %s274
      %s296 = sphi 0, %s298
      %s299 = sphi 0, %s296
      %s300 = sphi 0, %s299
      %s316 = sphi 0, %s300
      %s322 = sphi 0, %s324
      %s325 = sphi 0, %s322
      %s326 = sphi 0, %s325
      %s342 = sphi 0, %s326
      %s348 = sphi 0, %s350
      %s351 = sphi 0, %s348
      %s352 = sphi 0, %s351
      %s368 = sphi 0, %s352
      %s374 = sphi 0, %s376
      %s377 = sphi 0, %s374
      %s378 = sphi 0, %s377
      %s394 = sphi 0, %s378
      %s400 = sphi 0, %s402
      %s403 = sphi 0, %s400
      %s404 = sphi 0, %s403
      %s420 = sphi 0, %s404
      %s426 = sphi 0, %s428
      %s429 = sphi 0, %s426
      %s430 = sphi 0, %s429
      %s446 = sphi 0, %s430
      %s452 = sphi 0, %s454
      %s455 = sphi 0, %s452
      %s456 = sphi 0, %s455
      %s472 = sphi 0, %s456
      %s480 = sphi 0, %s482
      %s483 = sphi 0, %s480
      %s484 = sphi 0, %s483
      %s500 = sphi 0, %s484
      %s508 = sphi 0, %s510
      %s511 = sphi 0, %s508
      %s512 = sphi 0, %s511
      %s528 = sphi 0, %s512
      %s536 = sphi 0, %s538
      %s539 = sphi 0, %s536
      %s540 = sphi 0, %s539
      %s556 = sphi 0, %s540
      %s564 = sphi 0, %s566
      %s567 = sphi 0, %s564
      %s568 = sphi 0, %s567
      %s584 = sphi 0, %s568
    $region4: #{t5_decoder_init.2} parent=1 // loop_header_branch
      %48 = sbr.rel (%p46) target = $region8
    $region5: #{t5_decoder_init.2} parent=1 // loop_body
      %s50 = ssub.s32 %s45, 1
      %s51 = ssub.s32 %s45, 2
      %s58 = sadd.s32 1, %s53
      %p59 = scmp.ge.s32.totalorder %s58, 2
      %s60 = scalar_select %p59, 0, %s58
      %s61 = sadd.s32 1, %s52
      %s62 = scalar_select %p59, %s61, %s52
      %p63 = scmp.ge.s32.totalorder %s62, 2
      %s64 = scalar_select %p63, 0, %s62
      %s65 = ssub.s32 %s52, %s64
      %p66 = scmp.eq.s32.totalorder %s65, 0
      %s68 = sadd.s32 %s67, 1
      %s69 = scalar_select %p66, %s67, %s68
      %p72 = pneg %p66
      %p73 = scmp.eq.s32.totalorder %s45, 3
      %p74 = por %p72, %p73
      %p75 = scmp.ne.s32.totalorder %s67, %s70
      %p76 = scmp.eq.s32.totalorder %s45, 0
      %p77 = por %p75, %p76
      %p78 = scmp.ne.s32.totalorder %s67, %s70
      %p79 = scmp.eq.s32.totalorder %s50, 3
      %p80 = por %p78, %p79
      %p81 = scmp.ne.s32.totalorder %s70, %s71
      %p82 = scmp.eq.s32.totalorder %s50, 0
      %p83 = por %p81, %p82
      %p84 = scmp.ne.s32.totalorder %s70, %s71
      %p85 = scmp.eq.s32.totalorder %s51, 3
      %p86 = por %p84, %p85
      %p88 = scmp.ne.s32.totalorder %s71, %s87
      %p89 = scmp.eq.s32.totalorder %s51, 0
      %p90 = por %p88, %p89
      %s91 = ssub.s32 %s52, %s64
      %p92 = scmp.eq.s32.totalorder %s91, 0
      %s94 = sadd.s32 %s93, 1
      %s95 = scalar_select %p92, %s93, %s94
      %p98 = pneg %p92
      %p99 = scmp.eq.s32.totalorder %s45, 3
      %p100 = por %p98, %p99
      %p101 = scmp.ne.s32.totalorder %s93, %s96
      %p102 = scmp.eq.s32.totalorder %s45, 0
      %p103 = por %p101, %p102
      %p104 = scmp.ne.s32.totalorder %s93, %s96
      %p105 = scmp.eq.s32.totalorder %s50, 3
      %p106 = por %p104, %p105
      %p107 = scmp.ne.s32.totalorder %s96, %s97
      %p108 = scmp.eq.s32.totalorder %s50, 0
      %p109 = por %p107, %p108
      %p110 = scmp.ne.s32.totalorder %s96, %s97
      %p111 = scmp.eq.s32.totalorder %s51, 3
      %p112 = por %p110, %p111
      %p114 = scmp.ne.s32.totalorder %s97, %s113
      %p115 = scmp.eq.s32.totalorder %s51, 0
      %p116 = por %p114, %p115
      %s117 = ssub.s32 %s52, %s64
      %p118 = scmp.eq.s32.totalorder %s117, 0
      %s120 = sadd.s32 %s119, 1
      %s121 = scalar_select %p118, %s119, %s120
      %p124 = pneg %p118
      %p125 = scmp.eq.s32.totalorder %s45, 3
      %p126 = por %p124, %p125
      %p127 = scmp.ne.s32.totalorder %s119, %s122
      %p128 = scmp.eq.s32.totalorder %s45, 0
      %p129 = por %p127, %p128
      %p130 = scmp.ne.s32.totalorder %s119, %s122
      %p131 = scmp.eq.s32.totalorder %s50, 3
      %p132 = por %p130, %p131
      %p133 = scmp.ne.s32.totalorder %s122, %s123
      %p134 = scmp.eq.s32.totalorder %s50, 0
      %p135 = por %p133, %p134
      %p136 = scmp.ne.s32.totalorder %s122, %s123
      %p137 = scmp.eq.s32.totalorder %s51, 3
      %p138 = por %p136, %p137
      %p140 = scmp.ne.s32.totalorder %s123, %s139
      %p141 = scmp.eq.s32.totalorder %s51, 0
      %p142 = por %p140, %p141
      %s144 = sadd.s32 %s143, 1
      %p147 = scmp.eq.s32.totalorder %s45, 3
      %p148 = scmp.ne.s32.totalorder %s143, %s145
      %p149 = scmp.eq.s32.totalorder %s45, 0
      %p150 = por %p148, %p149
      %p151 = scmp.ne.s32.totalorder %s143, %s145
      %p152 = scmp.eq.s32.totalorder %s50, 3
      %p153 = por %p151, %p152
      %p154 = scmp.ne.s32.totalorder %s145, %s146
      %p155 = scmp.eq.s32.totalorder %s50, 0
      %p156 = por %p154, %p155
      %p157 = scmp.ne.s32.totalorder %s145, %s146
      %p158 = scmp.eq.s32.totalorder %s51, 3
      %p159 = por %p157, %p158
      %p161 = scmp.ne.s32.totalorder %s146, %s160
      %p162 = scmp.eq.s32.totalorder %s51, 0
      %p163 = por %p161, %p162
      %s164 = ssub.s32 %s53, %s60
      %p165 = scmp.eq.s32.totalorder %s164, 0
      %s167 = sadd.s32 %s166, 1
      %s168 = scalar_select %p165, %s166, %s167
      %p171 = pneg %p165
      %p172 = scmp.eq.s32.totalorder %s45, 3
      %p173 = por %p171, %p172
      %p174 = scmp.ne.s32.totalorder %s166, %s169
      %p175 = scmp.eq.s32.totalorder %s45, 0
      %p176 = por %p174, %p175
      %p177 = scmp.ne.s32.totalorder %s166, %s169
      %p178 = scmp.eq.s32.totalorder %s50, 3
      %p179 = por %p177, %p178
      %p180 = scmp.ne.s32.totalorder %s169, %s170
      %p181 = scmp.eq.s32.totalorder %s50, 0
      %p182 = por %p180, %p181
      %p183 = scmp.ne.s32.totalorder %s169, %s170
      %p184 = scmp.eq.s32.totalorder %s51, 3
      %p185 = por %p183, %p184
      %p187 = scmp.ne.s32.totalorder %s170, %s186
      %p188 = scmp.eq.s32.totalorder %s51, 0
      %p189 = por %p187, %p188
      %s190 = ssub.s32 %s53, %s60
      %p191 = scmp.eq.s32.totalorder %s190, 0
      %s193 = sadd.s32 %s192, 1
      %s194 = scalar_select %p191, %s192, %s193
      %p197 = pneg %p191
      %p198 = scmp.eq.s32.totalorder %s45, 3
      %p199 = por %p197, %p198
      %p200 = scmp.ne.s32.totalorder %s192, %s195
      %p201 = scmp.eq.s32.totalorder %s45, 0
      %p202 = por %p200, %p201
      %p203 = scmp.ne.s32.totalorder %s192, %s195
      %p204 = scmp.eq.s32.totalorder %s50, 3
      %p205 = por %p203, %p204
      %p206 = scmp.ne.s32.totalorder %s195, %s196
      %p207 = scmp.eq.s32.totalorder %s50, 0
      %p208 = por %p206, %p207
      %p209 = scmp.ne.s32.totalorder %s195, %s196
      %p210 = scmp.eq.s32.totalorder %s51, 3
      %p211 = por %p209, %p210
      %p213 = scmp.ne.s32.totalorder %s196, %s212
      %p214 = scmp.eq.s32.totalorder %s51, 0
      %p215 = por %p213, %p214
      %s216 = ssub.s32 %s53, %s60
      %p217 = scmp.eq.s32.totalorder %s216, 0
      %s219 = sadd.s32 %s218, 1
      %s220 = scalar_select %p217, %s218, %s219
      %p223 = pneg %p217
      %p224 = scmp.eq.s32.totalorder %s45, 3
      %p225 = por %p223, %p224
      %p226 = scmp.ne.s32.totalorder %s218, %s221
      %p227 = scmp.eq.s32.totalorder %s45, 0
      %p228 = por %p226, %p227
      %p229 = scmp.ne.s32.totalorder %s218, %s221
      %p230 = scmp.eq.s32.totalorder %s50, 3
      %p231 = por %p229, %p230
      %p232 = scmp.ne.s32.totalorder %s221, %s222
      %p233 = scmp.eq.s32.totalorder %s50, 0
      %p234 = por %p232, %p233
      %p235 = scmp.ne.s32.totalorder %s221, %s222
      %p236 = scmp.eq.s32.totalorder %s51, 3
      %p237 = por %p235, %p236
      %p239 = scmp.ne.s32.totalorder %s222, %s238
      %p240 = scmp.eq.s32.totalorder %s51, 0
      %p241 = por %p239, %p240
      %s242 = ssub.s32 %s53, %s60
      %p243 = scmp.eq.s32.totalorder %s242, 0
      %s245 = sadd.s32 %s244, 1
      %s246 = scalar_select %p243, %s244, %s245
      %p249 = pneg %p243
      %p250 = scmp.eq.s32.totalorder %s45, 3
      %p251 = por %p249, %p250
      %p252 = scmp.ne.s32.totalorder %s244, %s247
      %p253 = scmp.eq.s32.totalorder %s45, 0
      %p254 = por %p252, %p253
      %p255 = scmp.ne.s32.totalorder %s244, %s247
      %p256 = scmp.eq.s32.totalorder %s50, 3
      %p257 = por %p255, %p256
      %p258 = scmp.ne.s32.totalorder %s247, %s248
      %p259 = scmp.eq.s32.totalorder %s50, 0
      %p260 = por %p258, %p259
      %p261 = scmp.ne.s32.totalorder %s247, %s248
      %p262 = scmp.eq.s32.totalorder %s51, 3
      %p263 = por %p261, %p262
      %p265 = scmp.ne.s32.totalorder %s248, %s264
      %p266 = scmp.eq.s32.totalorder %s51, 0
      %p267 = por %p265, %p266
      %s268 = ssub.s32 %s53, %s60
      %p269 = scmp.eq.s32.totalorder %s268, 0
      %s271 = sadd.s32 %s270, 1
      %s272 = scalar_select %p269, %s270, %s271
      %p275 = pneg %p269
      %p276 = scmp.eq.s32.totalorder %s45, 3
      %p277 = por %p275, %p276
      %p278 = scmp.ne.s32.totalorder %s270, %s273
      %p279 = scmp.eq.s32.totalorder %s45, 0
      %p280 = por %p278, %p279
      %p281 = scmp.ne.s32.totalorder %s270, %s273
      %p282 = scmp.eq.s32.totalorder %s50, 3
      %p283 = por %p281, %p282
      %p284 = scmp.ne.s32.totalorder %s273, %s274
      %p285 = scmp.eq.s32.totalorder %s50, 0
      %p286 = por %p284, %p285
      %p287 = scmp.ne.s32.totalorder %s273, %s274
      %p288 = scmp.eq.s32.totalorder %s51, 3
      %p289 = por %p287, %p288
      %p291 = scmp.ne.s32.totalorder %s274, %s290
      %p292 = scmp.eq.s32.totalorder %s51, 0
      %p293 = por %p291, %p292
      %s294 = ssub.s32 %s53, %s60
      %p295 = scmp.eq.s32.totalorder %s294, 0
      %s297 = sadd.s32 %s296, 1
      %s298 = scalar_select %p295, %s296, %s297
      %p301 = pneg %p295
      %p302 = scmp.eq.s32.totalorder %s45, 3
      %p303 = por %p301, %p302
      %p304 = scmp.ne.s32.totalorder %s296, %s299
      %p305 = scmp.eq.s32.totalorder %s45, 0
      %p306 = por %p304, %p305
      %p307 = scmp.ne.s32.totalorder %s296, %s299
      %p308 = scmp.eq.s32.totalorder %s50, 3
      %p309 = por %p307, %p308
      %p310 = scmp.ne.s32.totalorder %s299, %s300
      %p311 = scmp.eq.s32.totalorder %s50, 0
      %p312 = por %p310, %p311
      %p313 = scmp.ne.s32.totalorder %s299, %s300
      %p314 = scmp.eq.s32.totalorder %s51, 3
      %p315 = por %p313, %p314
      %p317 = scmp.ne.s32.totalorder %s300, %s316
      %p318 = scmp.eq.s32.totalorder %s51, 0
      %p319 = por %p317, %p318
      %s320 = ssub.s32 %s53, %s60
      %p321 = scmp.eq.s32.totalorder %s320, 0
      %s323 = sadd.s32 %s322, 1
      %s324 = scalar_select %p321, %s322, %s323
      %p327 = pneg %p321
      %p328 = scmp.eq.s32.totalorder %s45, 3
      %p329 = por %p327, %p328
      %p330 = scmp.ne.s32.totalorder %s322, %s325
      %p331 = scmp.eq.s32.totalorder %s45, 0
      %p332 = por %p330, %p331
      %p333 = scmp.ne.s32.totalorder %s322, %s325
      %p334 = scmp.eq.s32.totalorder %s50, 3
      %p335 = por %p333, %p334
      %p336 = scmp.ne.s32.totalorder %s325, %s326
      %p337 = scmp.eq.s32.totalorder %s50, 0
      %p338 = por %p336, %p337
      %p339 = scmp.ne.s32.totalorder %s325, %s326
      %p340 = scmp.eq.s32.totalorder %s51, 3
      %p341 = por %p339, %p340
      %p343 = scmp.ne.s32.totalorder %s326, %s342
      %p344 = scmp.eq.s32.totalorder %s51, 0
      %p345 = por %p343, %p344
      %s346 = ssub.s32 %s53, %s60
      %p347 = scmp.eq.s32.totalorder %s346, 0
      %s349 = sadd.s32 %s348, 1
      %s350 = scalar_select %p347, %s348, %s349
      %p353 = pneg %p347
      %p354 = scmp.eq.s32.totalorder %s45, 3
      %p355 = por %p353, %p354
      %p356 = scmp.ne.s32.totalorder %s348, %s351
      %p357 = scmp.eq.s32.totalorder %s45, 0
      %p358 = por %p356, %p357
      %p359 = scmp.ne.s32.totalorder %s348, %s351
      %p360 = scmp.eq.s32.totalorder %s50, 3
      %p361 = por %p359, %p360
      %p362 = scmp.ne.s32.totalorder %s351, %s352
      %p363 = scmp.eq.s32.totalorder %s50, 0
      %p364 = por %p362, %p363
      %p365 = scmp.ne.s32.totalorder %s351, %s352
      %p366 = scmp.eq.s32.totalorder %s51, 3
      %p367 = por %p365, %p366
      %p369 = scmp.ne.s32.totalorder %s352, %s368
      %p370 = scmp.eq.s32.totalorder %s51, 0
      %p371 = por %p369, %p370
      %s372 = ssub.s32 %s53, %s60
      %p373 = scmp.eq.s32.totalorder %s372, 0
      %s375 = sadd.s32 %s374, 1
      %s376 = scalar_select %p373, %s374, %s375
      %p379 = pneg %p373
      %p380 = scmp.eq.s32.totalorder %s45, 3
      %p381 = por %p379, %p380
      %p382 = scmp.ne.s32.totalorder %s374, %s377
      %p383 = scmp.eq.s32.totalorder %s45, 0
      %p384 = por %p382, %p383
      %p385 = scmp.ne.s32.totalorder %s374, %s377
      %p386 = scmp.eq.s32.totalorder %s50, 3
      %p387 = por %p385, %p386
      %p388 = scmp.ne.s32.totalorder %s377, %s378
      %p389 = scmp.eq.s32.totalorder %s50, 0
      %p390 = por %p388, %p389
      %p391 = scmp.ne.s32.totalorder %s377, %s378
      %p392 = scmp.eq.s32.totalorder %s51, 3
      %p393 = por %p391, %p392
      %p395 = scmp.ne.s32.totalorder %s378, %s394
      %p396 = scmp.eq.s32.totalorder %s51, 0
      %p397 = por %p395, %p396
      %s398 = ssub.s32 %s53, %s60
      %p399 = scmp.eq.s32.totalorder %s398, 0
      %s401 = sadd.s32 %s400, 1
      %s402 = scalar_select %p399, %s400, %s401
      %p405 = pneg %p399
      %p406 = scmp.eq.s32.totalorder %s45, 3
      %p407 = por %p405, %p406
      %p408 = scmp.ne.s32.totalorder %s400, %s403
      %p409 = scmp.eq.s32.totalorder %s45, 0
      %p410 = por %p408, %p409
      %p411 = scmp.ne.s32.totalorder %s400, %s403
      %p412 = scmp.eq.s32.totalorder %s50, 3
      %p413 = por %p411, %p412
      %p414 = scmp.ne.s32.totalorder %s403, %s404
      %p415 = scmp.eq.s32.totalorder %s50, 0
      %p416 = por %p414, %p415
      %p417 = scmp.ne.s32.totalorder %s403, %s404
      %p418 = scmp.eq.s32.totalorder %s51, 3
      %p419 = por %p417, %p418
      %p421 = scmp.ne.s32.totalorder %s404, %s420
      %p422 = scmp.eq.s32.totalorder %s51, 0
      %p423 = por %p421, %p422
      %s424 = ssub.s32 %s52, %s64
      %p425 = scmp.eq.s32.totalorder %s424, 0
      %s427 = sadd.s32 %s426, 1
      %s428 = scalar_select %p425, %s426, %s427
      %p431 = pneg %p425
      %p432 = scmp.eq.s32.totalorder %s45, 3
      %p433 = por %p431, %p432
      %p434 = scmp.ne.s32.totalorder %s426, %s429
      %p435 = scmp.eq.s32.totalorder %s45, 0
      %p436 = por %p434, %p435
      %p437 = scmp.ne.s32.totalorder %s426, %s429
      %p438 = scmp.eq.s32.totalorder %s50, 3
      %p439 = por %p437, %p438
      %p440 = scmp.ne.s32.totalorder %s429, %s430
      %p441 = scmp.eq.s32.totalorder %s50, 0
      %p442 = por %p440, %p441
      %p443 = scmp.ne.s32.totalorder %s429, %s430
      %p444 = scmp.eq.s32.totalorder %s51, 3
      %p445 = por %p443, %p444
      %p447 = scmp.ne.s32.totalorder %s430, %s446
      %p448 = scmp.eq.s32.totalorder %s51, 0
      %p449 = por %p447, %p448
      %s450 = ssub.s32 %s52, %s64
      %p451 = scmp.eq.s32.totalorder %s450, 0
      %s453 = sadd.s32 %s452, 1
      %s454 = scalar_select %p451, %s452, %s453
      %p457 = pneg %p451
      %p458 = scmp.eq.s32.totalorder %s45, 3
      %p459 = por %p457, %p458
      %p460 = scmp.ne.s32.totalorder %s452, %s455
      %p461 = scmp.eq.s32.totalorder %s45, 0
      %p462 = por %p460, %p461
      %p463 = scmp.ne.s32.totalorder %s452, %s455
      %p464 = scmp.eq.s32.totalorder %s50, 3
      %p465 = por %p463, %p464
      %p466 = scmp.ne.s32.totalorder %s455, %s456
      %p467 = scmp.eq.s32.totalorder %s50, 0
      %p468 = por %p466, %p467
      %p469 = scmp.ne.s32.totalorder %s455, %s456
      %p470 = scmp.eq.s32.totalorder %s51, 3
      %p471 = por %p469, %p470
      %p473 = scmp.ne.s32.totalorder %s456, %s472
      %p474 = scmp.eq.s32.totalorder %s51, 0
      %p475 = por %p473, %p474
      %s476 = ssub.s32 %s53, %s60
      %s477 = ssub.s32 %s52, %s64
      %s478 = sor.u32 %s476, %s477
      %p479 = scmp.eq.s32.totalorder %s478, 0
      %s481 = sadd.s32 %s480, 1
      %s482 = scalar_select %p479, %s480, %s481
      %p485 = pneg %p479
      %p486 = scmp.eq.s32.totalorder %s45, 3
      %p487 = por %p485, %p486
      %p488 = scmp.ne.s32.totalorder %s480, %s483
      %p489 = scmp.eq.s32.totalorder %s45, 0
      %p490 = por %p488, %p489
      %p491 = scmp.ne.s32.totalorder %s480, %s483
      %p492 = scmp.eq.s32.totalorder %s50, 3
      %p493 = por %p491, %p492
      %p494 = scmp.ne.s32.totalorder %s483, %s484
      %p495 = scmp.eq.s32.totalorder %s50, 0
      %p496 = por %p494, %p495
      %p497 = scmp.ne.s32.totalorder %s483, %s484
      %p498 = scmp.eq.s32.totalorder %s51, 3
      %p499 = por %p497, %p498
      %p501 = scmp.ne.s32.totalorder %s484, %s500
      %p502 = scmp.eq.s32.totalorder %s51, 0
      %p503 = por %p501, %p502
      %s504 = ssub.s32 %s53, %s60
      %s505 = ssub.s32 %s52, %s64
      %s506 = sor.u32 %s504, %s505
      %p507 = scmp.eq.s32.totalorder %s506, 0
      %s509 = sadd.s32 %s508, 1
      %s510 = scalar_select %p507, %s508, %s509
      %p513 = pneg %p507
      %p514 = scmp.eq.s32.totalorder %s45, 3
      %p515 = por %p513, %p514
      %p516 = scmp.ne.s32.totalorder %s508, %s511
      %p517 = scmp.eq.s32.totalorder %s45, 0
      %p518 = por %p516, %p517
      %p519 = scmp.ne.s32.totalorder %s508, %s511
      %p520 = scmp.eq.s32.totalorder %s50, 3
      %p521 = por %p519, %p520
      %p522 = scmp.ne.s32.totalorder %s511, %s512
      %p523 = scmp.eq.s32.totalorder %s50, 0
      %p524 = por %p522, %p523
      %p525 = scmp.ne.s32.totalorder %s511, %s512
      %p526 = scmp.eq.s32.totalorder %s51, 3
      %p527 = por %p525, %p526
      %p529 = scmp.ne.s32.totalorder %s512, %s528
      %p530 = scmp.eq.s32.totalorder %s51, 0
      %p531 = por %p529, %p530
      %s532 = ssub.s32 %s53, %s60
      %s533 = ssub.s32 %s52, %s64
      %s534 = sor.u32 %s532, %s533
      %p535 = scmp.eq.s32.totalorder %s534, 0
      %s537 = sadd.s32 %s536, 1
      %s538 = scalar_select %p535, %s536, %s537
      %p541 = pneg %p535
      %p542 = scmp.eq.s32.totalorder %s45, 3
      %p543 = por %p541, %p542
      %p544 = scmp.ne.s32.totalorder %s536, %s539
      %p545 = scmp.eq.s32.totalorder %s45, 0
      %p546 = por %p544, %p545
      %p547 = scmp.ne.s32.totalorder %s536, %s539
      %p548 = scmp.eq.s32.totalorder %s50, 3
      %p549 = por %p547, %p548
      %p550 = scmp.ne.s32.totalorder %s539, %s540
      %p551 = scmp.eq.s32.totalorder %s50, 0
      %p552 = por %p550, %p551
      %p553 = scmp.ne.s32.totalorder %s539, %s540
      %p554 = scmp.eq.s32.totalorder %s51, 3
      %p555 = por %p553, %p554
      %p557 = scmp.ne.s32.totalorder %s540, %s556
      %p558 = scmp.eq.s32.totalorder %s51, 0
      %p559 = por %p557, %p558
      %s560 = ssub.s32 %s53, %s60
      %s561 = ssub.s32 %s52, %s64
      %s562 = sor.u32 %s560, %s561
      %p563 = scmp.eq.s32.totalorder %s562, 0
      %s565 = sadd.s32 %s564, 1
      %s566 = scalar_select %p563, %s564, %s565
      %p569 = pneg %p563
      %p570 = scmp.eq.s32.totalorder %s45, 3
      %p571 = por %p569, %p570
      %p572 = scmp.ne.s32.totalorder %s564, %s567
      %p573 = scmp.eq.s32.totalorder %s45, 0
      %p574 = por %p572, %p573
      %p575 = scmp.ne.s32.totalorder %s564, %s567
      %p576 = scmp.eq.s32.totalorder %s50, 3
      %p577 = por %p575, %p576
      %p578 = scmp.ne.s32.totalorder %s567, %s568
      %p579 = scmp.eq.s32.totalorder %s50, 0
      %p580 = por %p578, %p579
      %p581 = scmp.ne.s32.totalorder %s567, %s568
      %p582 = scmp.eq.s32.totalorder %s51, 3
      %p583 = por %p581, %p582
      %p585 = scmp.ne.s32.totalorder %s568, %s584
      %p586 = scmp.eq.s32.totalorder %s51, 0
      %p587 = por %p585, %p586
      %p588 = scmp.le.s32.totalorder 1, %s45
      %p589 = scmp.lt.s32.totalorder %s45, 5
      %p590 = pnand %p588, %p589
      %p591 = pneg %p590
      // Predicated region
      $region9: #{t5_decoder_init.2} parent=5 // pred_check
        _
      $region10: #{t5_decoder_init.2} parent=5 // pred_check_branch
        %593 = sbr.rel (%p590) target = $region12
      $region11: #{t5_decoder_init.2} parent=5 // pred_region
        %s594 = ssub.s32 %s45, 1
        // Predicated region
        $region13: #{t5_decoder_init.2} parent=11 // pred_check
          %p595 = pneg %p156
        $region14: #{t5_decoder_init.2} parent=11 // pred_check_branch
          %597 = sbr.rel (%p595) target = $region16
        $region15: #{t5_decoder_init.2} parent=11 // pred_region
          %s599 = ssub.s32 16, 16
          %600 = vsyncadd [#allocation9], %s599
          %s602 = sshll.u32 [#allocation8], 4
          %s603 = int_to_ptr.vmem [resolvable:$true] %s602
          %605 = dma.hbm_to_vmem [thread:$0]  %s3, 16, %s603, [#allocation9]
        $region16: #{t5_decoder_init.2} parent=11 // pred_fallthru
          _
      $region12: #{t5_decoder_init.2} parent=5 // pred_fallthru
        _
      %p606 = scmp.lt.s32.totalorder %s45, 4
      // Predicated region
      $region17: #{t5_decoder_init.2} parent=5 // pred_check
        %p607 = pneg %p606
      $region18: #{t5_decoder_init.2} parent=5 // pred_check_branch
        %609 = sbr.rel (%p607) target = $region20
      $region19: #{t5_decoder_init.2} parent=5 // pred_region
        // Predicated region
        $region21: #{t5_decoder_init.2} parent=19 // pred_check
          %p610 = pneg %p77
        $region22: #{t5_decoder_init.2} parent=19 // pred_check_branch
          %612 = sbr.rel (%p610) target = $region24
        $region23: #{t5_decoder_init.2} parent=19 // pred_region
          %s613 = sand.u32 %s45, 1
          %s614 = scalar_lea.sflag [#allocation3], %s613
          %s615 = sand.u32 %s67, 1
          %s616 = smul.addr %s615, 8
          %s617 = scalar_lea.vmem [#allocation2], %s616
          %s619 = ssub.s32 128, 128
          %620 = vsyncadd %s614, %s619
          %s621 = smul.addr %s52, 128
          %s622 = scalar_lea.hbm %s0, %s621
          %s624 = sshll.u32 %s617, 4
          %s625 = int_to_ptr.vmem [resolvable:$true] %s624
          %627 = dma.hbm_to_vmem [thread:$0]  %s622, 128, %s625, %s614
        $region24: #{t5_decoder_init.2} parent=19 // pred_fallthru
          _
        // Predicated region
        $region25: #{t5_decoder_init.2} parent=19 // pred_check
          %p628 = pneg %p103
        $region26: #{t5_decoder_init.2} parent=19 // pred_check_branch
          %630 = sbr.rel (%p628) target = $region28
        $region27: #{t5_decoder_init.2} parent=19 // pred_region
          %s631 = sand.u32 %s45, 1
          %s632 = scalar_lea.sflag [#allocation6], %s631
          %s633 = sand.u32 %s93, 1
          %s634 = smul.addr %s633, 16
          %s635 = scalar_lea.vmem [#allocation5], %s634
          %s637 = ssub.s32 256, 256
          %638 = vsyncadd %s632, %s637
          %s639 = smul.addr %s52, 2
          %s640 = smul.addr %s639, 128
          %s641 = scalar_lea.hbm %s1, %s640
          %s642 = sshll.u32 %s635, 4
          %s643 = int_to_ptr.vmem [resolvable:$true] %s642
          %648 = dma.hbm_to_vmem [thread:$0]  %s641, 256, %s643, %s632, 128, 128, 8
        $region28: #{t5_decoder_init.2} parent=19 // pred_fallthru
          _
        // Predicated region
        $region29: #{t5_decoder_init.2} parent=19 // pred_check
          %p649 = pneg %p129
        $region30: #{t5_decoder_init.2} parent=19 // pred_check_branch
          %651 = sbr.rel (%p649) target = $region32
        $region31: #{t5_decoder_init.2} parent=19 // pred_region
          %s652 = sand.u32 %s45, 1
          %s653 = scalar_lea.sflag [#allocation6], %s652
          %s654 = sand.u32 %s119, 1
          %s655 = scalar_lea.vmem [#allocation7], %s654
          %s657 = ssub.s32 16, 16
          %658 = vsyncadd %s653, %s657
          %s659 = smul.addr %s52, 16
          %s660 = scalar_lea.hbm %s2, %s659
          %s662 = sshll.u32 %s655, 4
          %s663 = int_to_ptr.vmem [resolvable:$true] %s662
          %665 = dma.hbm_to_vmem [thread:$0]  %s660, 16, %s663, %s653
        $region32: #{t5_decoder_init.2} parent=19 // pred_fallthru
          _
        // Predicated region
        $region33: #{t5_decoder_init.2} parent=19 // pred_check
          %p666 = pneg %p176
        $region34: #{t5_decoder_init.2} parent=19 // pred_check_branch
          %668 = sbr.rel (%p666) target = $region36
        $region35: #{t5_decoder_init.2} parent=19 // pred_region
          %s669 = sand.u32 %s45, 1
          %s670 = scalar_lea.sflag [#allocation3], %s669
          %s671 = sand.u32 %s166, 1
          %s672 = scalar_lea.vmem [#allocation10], %s671
          %s674 = ssub.s32 16, 16
          %675 = vsyncadd %s670, %s674
          %s676 = smul.addr %s53, 16
          %s677 = scalar_lea.hbm %s4, %s676
          %s679 = sshll.u32 %s672, 4
          %s680 = int_to_ptr.vmem [resolvable:$true] %s679
          %682 = dma.hbm_to_vmem [thread:$0]  %s677, 16, %s680, %s670
        $region36: #{t5_decoder_init.2} parent=19 // pred_fallthru
          _
        // Predicated region
        $region37: #{t5_decoder_init.2} parent=19 // pred_check
          %p683 = pneg %p202
        $region38: #{t5_decoder_init.2} parent=19 // pred_check_branch
          %685 = sbr.rel (%p683) target = $region40
        $region39: #{t5_decoder_init.2} parent=19 // pred_region
          %s686 = sand.u32 %s45, 1
          %s687 = scalar_lea.sflag [#allocation6], %s686
          %s688 = sand.u32 %s192, 1
          %s689 = smul.addr %s688, 16
          %s690 = scalar_lea.vmem [#allocation11], %s689
          %s692 = ssub.s32 256, 256
          %693 = vsyncadd %s687, %s692
          %s694 = smul.addr %s53, 4
          %s695 = smul.addr %s694, 64
          %s696 = scalar_lea.hbm %s5, %s695
          %s697 = sshll.u32 %s690, 4
          %s698 = int_to_ptr.vmem [resolvable:$true] %s697
          %703 = dma.hbm_to_vmem [thread:$0]  %s696, 256, %s698, %s687, 64, 64, 4
        $region40: #{t5_decoder_init.2} parent=19 // pred_fallthru
          _
        // Predicated region
        $region41: #{t5_decoder_init.2} parent=19 // pred_check
          %p704 = pneg %p228
        $region42: #{t5_decoder_init.2} parent=19 // pred_check_branch
          %706 = sbr.rel (%p704) target = $region44
        $region43: #{t5_decoder_init.2} parent=19 // pred_region
          %s707 = sand.u32 %s45, 1
          %s708 = scalar_lea.sflag [#allocation3], %s707
          %s709 = sand.u32 %s218, 1
          %s710 = smul.addr %s709, 16
          %s711 = scalar_lea.vmem [#allocation12], %s710
          %s713 = ssub.s32 256, 256
          %714 = vsyncadd %s708, %s713
          %s715 = smul.addr %s53, 4
          %s716 = smul.addr %s715, 64
          %s717 = scalar_lea.hbm %s6, %s716
          %s718 = sshll.u32 %s711, 4
          %s719 = int_to_ptr.vmem [resolvable:$true] %s718
          %724 = dma.hbm_to_vmem [thread:$0]  %s717, 256, %s719, %s708, 64, 64, 4
        $region44: #{t5_decoder_init.2} parent=19 // pred_fallthru
          _
        // Predicated region
        $region45: #{t5_decoder_init.2} parent=19 // pred_check
          %p725 = pneg %p254
        $region46: #{t5_decoder_init.2} parent=19 // pred_check_branch
          %727 = sbr.rel (%p725) target = $region48
        $region47: #{t5_decoder_init.2} parent=19 // pred_region
          %s728 = sand.u32 %s45, 1
          %s729 = scalar_lea.sflag [#allocation6], %s728
          %s730 = sand.u32 %s244, 1
          %s731 = scalar_lea.vmem [#allocation13], %s730
          %s733 = ssub.s32 16, 16
          %734 = vsyncadd %s729, %s733
          %s735 = smul.addr %s53, 16
          %s736 = scalar_lea.hbm %s7, %s735
          %s738 = sshll.u32 %s731, 4
          %s739 = int_to_ptr.vmem [resolvable:$true] %s738
          %741 = dma.hbm_to_vmem [thread:$0]  %s736, 16, %s739, %s729
        $region48: #{t5_decoder_init.2} parent=19 // pred_fallthru
          _
        // Predicated region
        $region49: #{t5_decoder_init.2} parent=19 // pred_check
          %p742 = pneg %p280
        $region50: #{t5_decoder_init.2} parent=19 // pred_check_branch
          %744 = sbr.rel (%p742) target = $region52
        $region51: #{t5_decoder_init.2} parent=19 // pred_region
          %s745 = sand.u32 %s45, 1
          %s746 = scalar_lea.sflag [#allocation3], %s745
          %s747 = sand.u32 %s270, 1
          %s748 = smul.addr %s747, 16
          %s749 = scalar_lea.vmem [#allocation14], %s748
          %s751 = ssub.s32 256, 256
          %752 = vsyncadd %s746, %s751
          %s753 = smul.addr %s53, 4
          %s754 = smul.addr %s753, 64
          %s755 = scalar_lea.hbm %s8, %s754
          %s756 = sshll.u32 %s749, 4
          %s757 = int_to_ptr.vmem [resolvable:$true] %s756
          %762 = dma.hbm_to_vmem [thread:$0]  %s755, 256, %s757, %s746, 64, 64, 4
        $region52: #{t5_decoder_init.2} parent=19 // pred_fallthru
          _
        // Predicated region
        $region53: #{t5_decoder_init.2} parent=19 // pred_check
          %p763 = pneg %p306
        $region54: #{t5_decoder_init.2} parent=19 // pred_check_branch
          %765 = sbr.rel (%p763) target = $region56
        $region55: #{t5_decoder_init.2} parent=19 // pred_region
          %s766 = sand.u32 %s45, 1
          %s767 = scalar_lea.sflag [#allocation6], %s766
          %s768 = sand.u32 %s296, 1
          %s769 = smul.addr %s768, 16
          %s770 = scalar_lea.vmem [#allocation15], %s769
          %s772 = ssub.s32 256, 256
          %773 = vsyncadd %s767, %s772
          %s774 = smul.addr %s53, 4
          %s775 = smul.addr %s774, 64
          %s776 = scalar_lea.hbm %s9, %s775
          %s777 = sshll.u32 %s770, 4
          %s778 = int_to_ptr.vmem [resolvable:$true] %s777
          %783 = dma.hbm_to_vmem [thread:$0]  %s776, 256, %s778, %s767, 64, 64, 4
        $region56: #{t5_decoder_init.2} parent=19 // pred_fallthru
          _
        // Predicated region
        $region57: #{t5_decoder_init.2} parent=19 // pred_check
          %p784 = pneg %p332
        $region58: #{t5_decoder_init.2} parent=19 // pred_check_branch
          %786 = sbr.rel (%p784) target = $region60
        $region59: #{t5_decoder_init.2} parent=19 // pred_region
          %s787 = sand.u32 %s45, 1
          %s788 = scalar_lea.sflag [#allocation3], %s787
          %s789 = sand.u32 %s322, 1
          %s790 = smul.addr %s789, 16
          %s791 = scalar_lea.vmem [#allocation16], %s790
          %s793 = ssub.s32 256, 256
          %794 = vsyncadd %s788, %s793
          %s795 = smul.addr %s53, 4
          %s796 = smul.addr %s795, 64
          %s797 = scalar_lea.hbm %s10, %s796
          %s798 = sshll.u32 %s791, 4
          %s799 = int_to_ptr.vmem [resolvable:$true] %s798
          %804 = dma.hbm_to_vmem [thread:$0]  %s797, 256, %s799, %s788, 64, 64, 4
        $region60: #{t5_decoder_init.2} parent=19 // pred_fallthru
          _
        // Predicated region
        $region61: #{t5_decoder_init.2} parent=19 // pred_check
          %p805 = pneg %p358
        $region62: #{t5_decoder_init.2} parent=19 // pred_check_branch
          %807 = sbr.rel (%p805) target = $region64
        $region63: #{t5_decoder_init.2} parent=19 // pred_region
          %s808 = sand.u32 %s45, 1
          %s809 = scalar_lea.sflag [#allocation6], %s808
          %s810 = sand.u32 %s348, 1
          %s811 = scalar_lea.vmem [#allocation17], %s810
          %s813 = ssub.s32 16, 16
          %814 = vsyncadd %s809, %s813
          %s815 = smul.addr %s53, 16
          %s816 = scalar_lea.hbm %s11, %s815
          %s818 = sshll.u32 %s811, 4
          %s819 = int_to_ptr.vmem [resolvable:$true] %s818
          %821 = dma.hbm_to_vmem [thread:$0]  %s816, 16, %s819, %s809
        $region64: #{t5_decoder_init.2} parent=19 // pred_fallthru
          _
        // Predicated region
        $region65: #{t5_decoder_init.2} parent=19 // pred_check
          %p822 = pneg %p384
        $region66: #{t5_decoder_init.2} parent=19 // pred_check_branch
          %824 = sbr.rel (%p822) target = $region68
        $region67: #{t5_decoder_init.2} parent=19 // pred_region
          %s825 = sand.u32 %s45, 1
          %s826 = scalar_lea.sflag [#allocation3], %s825
          %s827 = sand.u32 %s374, 1
          %s828 = smul.addr %s827, 16
          %s829 = scalar_lea.vmem [#allocation18], %s828
          %s831 = ssub.s32 256, 256
          %832 = vsyncadd %s826, %s831
          %s833 = smul.addr %s53, 4
          %s834 = smul.addr %s833, 64
          %s835 = scalar_lea.hbm %s12, %s834
          %s836 = sshll.u32 %s829, 4
          %s837 = int_to_ptr.vmem [resolvable:$true] %s836
          %842 = dma.hbm_to_vmem [thread:$0]  %s835, 256, %s837, %s826, 64, 64, 4
        $region68: #{t5_decoder_init.2} parent=19 // pred_fallthru
          _
        // Predicated region
        $region69: #{t5_decoder_init.2} parent=19 // pred_check
          %p843 = pneg %p410
        $region70: #{t5_decoder_init.2} parent=19 // pred_check_branch
          %845 = sbr.rel (%p843) target = $region72
        $region71: #{t5_decoder_init.2} parent=19 // pred_region
          %s846 = sand.u32 %s45, 1
          %s847 = scalar_lea.sflag [#allocation6], %s846
          %s848 = sand.u32 %s400, 1
          %s849 = smul.addr %s848, 32
          %s850 = scalar_lea.vmem [#allocation19], %s849
          %s852 = ssub.s32 512, 512
          %853 = vsyncadd %s847, %s852
          %s854 = smul.addr %s53, 8
          %s855 = smul.addr %s854, 64
          %s856 = scalar_lea.hbm %s13, %s855
          %s857 = sshll.u32 %s850, 4
          %s858 = int_to_ptr.vmem [resolvable:$true] %s857
          %863 = dma.hbm_to_vmem [thread:$0]  %s856, 512, %s858, %s847, 64, 64, 4
        $region72: #{t5_decoder_init.2} parent=19 // pred_fallthru
          _
      $region20: #{t5_decoder_init.2} parent=5 // pred_fallthru
        _
      %p864 = scmp.le.s32.totalorder 1, %s45
      %p865 = scmp.lt.s32.totalorder %s45, 5
      %p866 = pnand %p864, %p865
      %p867 = pneg %p866
      // Predicated region
      $region73: #{t5_decoder_init.2} parent=5 // pred_check
        _
      $region74: #{t5_decoder_init.2} parent=5 // pred_check_branch
        %869 = sbr.rel (%p866) target = $region76
      $region75: #{t5_decoder_init.2} parent=5 // pred_region
        %s870 = ssub.s32 %s45, 1
        %s871 = sand.u32 %s50, 1
        %s872 = scalar_lea.sflag [#allocation3], %s871
        %s873 = sand.u32 %s70, 1
        %s874 = smul.addr %s873, 8
        %s875 = scalar_lea.vmem [#allocation2], %s874
        // Predicated region
        $region77: #{t5_decoder_init.2} parent=75 // pred_check
          %p876 = pneg %p83
        $region78: #{t5_decoder_init.2} parent=75 // pred_check_branch
          %878 = sbr.rel (%p876) target = $region80
        $region79: #{t5_decoder_init.2} parent=75 // pred_region
          %879 = dma.done %s872, 128
        $region80: #{t5_decoder_init.2} parent=75 // pred_fallthru
          _
        %s880 = sand.u32 %s50, 1
        %s881 = scalar_lea.sflag [#allocation6], %s880
        %s882 = sand.u32 %s96, 1
        %s883 = smul.addr %s882, 16
        %s884 = scalar_lea.vmem [#allocation5], %s883
        // Predicated region
        $region81: #{t5_decoder_init.2} parent=75 // pred_check
          %p885 = pneg %p109
        $region82: #{t5_decoder_init.2} parent=75 // pred_check_branch
          %887 = sbr.rel (%p885) target = $region84
        $region83: #{t5_decoder_init.2} parent=75 // pred_region
          %888 = dma.done %s881, 256
        $region84: #{t5_decoder_init.2} parent=75 // pred_fallthru
          _
        %s889 = sand.u32 %s50, 1
        %s890 = scalar_lea.sflag [#allocation6], %s889
        %s891 = sand.u32 %s122, 1
        %s892 = scalar_lea.vmem [#allocation7], %s891
        // Predicated region
        $region85: #{t5_decoder_init.2} parent=75 // pred_check
          %p893 = pneg %p135
        $region86: #{t5_decoder_init.2} parent=75 // pred_check_branch
          %895 = sbr.rel (%p893) target = $region88
        $region87: #{t5_decoder_init.2} parent=75 // pred_region
          %896 = dma.done %s890, 16
        $region88: #{t5_decoder_init.2} parent=75 // pred_fallthru
          _
        // Predicated region
        $region89: #{t5_decoder_init.2} parent=75 // pred_check
          %p897 = pneg %p156
        $region90: #{t5_decoder_init.2} parent=75 // pred_check_branch
          %899 = sbr.rel (%p897) target = $region92
        $region91: #{t5_decoder_init.2} parent=75 // pred_region
          %900 = dma.done [#allocation9], 16
        $region92: #{t5_decoder_init.2} parent=75 // pred_fallthru
          _
        %s901 = sand.u32 %s50, 1
        %s902 = scalar_lea.sflag [#allocation3], %s901
        %s903 = sand.u32 %s169, 1
        %s904 = scalar_lea.vmem [#allocation10], %s903
        // Predicated region
        $region93: #{t5_decoder_init.2} parent=75 // pred_check
          %p905 = pneg %p182
        $region94: #{t5_decoder_init.2} parent=75 // pred_check_branch
          %907 = sbr.rel (%p905) target = $region96
        $region95: #{t5_decoder_init.2} parent=75 // pred_region
          %908 = dma.done %s902, 16
        $region96: #{t5_decoder_init.2} parent=75 // pred_fallthru
          _
        %s909 = sand.u32 %s50, 1
        %s910 = scalar_lea.sflag [#allocation6], %s909
        %s911 = sand.u32 %s195, 1
        %s912 = smul.addr %s911, 16
        %s913 = scalar_lea.vmem [#allocation11], %s912
        // Predicated region
        $region97: #{t5_decoder_init.2} parent=75 // pred_check
          %p914 = pneg %p208
        $region98: #{t5_decoder_init.2} parent=75 // pred_check_branch
          %916 = sbr.rel (%p914) target = $region100
        $region99: #{t5_decoder_init.2} parent=75 // pred_region
          %917 = dma.done %s910, 256
        $region100: #{t5_decoder_init.2} parent=75 // pred_fallthru
          _
        %s918 = sand.u32 %s50, 1
        %s919 = scalar_lea.sflag [#allocation3], %s918
        %s920 = sand.u32 %s221, 1
        %s921 = smul.addr %s920, 16
        %s922 = scalar_lea.vmem [#allocation12], %s921
        // Predicated region
        $region101: #{t5_decoder_init.2} parent=75 // pred_check
          %p923 = pneg %p234
        $region102: #{t5_decoder_init.2} parent=75 // pred_check_branch
          %925 = sbr.rel (%p923) target = $region104
        $region103: #{t5_decoder_init.2} parent=75 // pred_region
          %926 = dma.done %s919, 256
        $region104: #{t5_decoder_init.2} parent=75 // pred_fallthru
          _
        %s927 = sand.u32 %s50, 1
        %s928 = scalar_lea.sflag [#allocation6], %s927
        %s929 = sand.u32 %s247, 1
        %s930 = scalar_lea.vmem [#allocation13], %s929
        // Predicated region
        $region105: #{t5_decoder_init.2} parent=75 // pred_check
          %p931 = pneg %p260
        $region106: #{t5_decoder_init.2} parent=75 // pred_check_branch
          %933 = sbr.rel (%p931) target = $region108
        $region107: #{t5_decoder_init.2} parent=75 // pred_region
          %934 = dma.done %s928, 16
        $region108: #{t5_decoder_init.2} parent=75 // pred_fallthru
          _
        %s935 = sand.u32 %s50, 1
        %s936 = scalar_lea.sflag [#allocation3], %s935
        %s937 = sand.u32 %s273, 1
        %s938 = smul.addr %s937, 16
        %s939 = scalar_lea.vmem [#allocation14], %s938
        // Predicated region
        $region109: #{t5_decoder_init.2} parent=75 // pred_check
          %p940 = pneg %p286
        $region110: #{t5_decoder_init.2} parent=75 // pred_check_branch
          %942 = sbr.rel (%p940) target = $region112
        $region111: #{t5_decoder_init.2} parent=75 // pred_region
          %943 = dma.done %s936, 256
        $region112: #{t5_decoder_init.2} parent=75 // pred_fallthru
          _
        %s944 = sand.u32 %s50, 1
        %s945 = scalar_lea.sflag [#allocation6], %s944
        %s946 = sand.u32 %s299, 1
        %s947 = smul.addr %s946, 16
        %s948 = scalar_lea.vmem [#allocation15], %s947
        // Predicated region
        $region113: #{t5_decoder_init.2} parent=75 // pred_check
          %p949 = pneg %p312
        $region114: #{t5_decoder_init.2} parent=75 // pred_check_branch
          %951 = sbr.rel (%p949) target = $region116
        $region115: #{t5_decoder_init.2} parent=75 // pred_region
          %952 = dma.done %s945, 256
        $region116: #{t5_decoder_init.2} parent=75 // pred_fallthru
          _
        %s953 = sand.u32 %s50, 1
        %s954 = scalar_lea.sflag [#allocation3], %s953
        %s955 = sand.u32 %s325, 1
        %s956 = smul.addr %s955, 16
        %s957 = scalar_lea.vmem [#allocation16], %s956
        // Predicated region
        $region117: #{t5_decoder_init.2} parent=75 // pred_check
          %p958 = pneg %p338
        $region118: #{t5_decoder_init.2} parent=75 // pred_check_branch
          %960 = sbr.rel (%p958) target = $region120
        $region119: #{t5_decoder_init.2} parent=75 // pred_region
          %961 = dma.done %s954, 256
        $region120: #{t5_decoder_init.2} parent=75 // pred_fallthru
          _
        %s962 = sand.u32 %s50, 1
        %s963 = scalar_lea.sflag [#allocation6], %s962
        %s964 = sand.u32 %s351, 1
        %s965 = scalar_lea.vmem [#allocation17], %s964
        // Predicated region
        $region121: #{t5_decoder_init.2} parent=75 // pred_check
          %p966 = pneg %p364
        $region122: #{t5_decoder_init.2} parent=75 // pred_check_branch
          %968 = sbr.rel (%p966) target = $region124
        $region123: #{t5_decoder_init.2} parent=75 // pred_region
          %969 = dma.done %s963, 16
        $region124: #{t5_decoder_init.2} parent=75 // pred_fallthru
          _
        %s970 = sand.u32 %s50, 1
        %s971 = scalar_lea.sflag [#allocation3], %s970
        %s972 = sand.u32 %s377, 1
        %s973 = smul.addr %s972, 16
        %s974 = scalar_lea.vmem [#allocation18], %s973
        // Predicated region
        $region125: #{t5_decoder_init.2} parent=75 // pred_check
          %p975 = pneg %p390
        $region126: #{t5_decoder_init.2} parent=75 // pred_check_branch
          %977 = sbr.rel (%p975) target = $region128
        $region127: #{t5_decoder_init.2} parent=75 // pred_region
          %978 = dma.done %s971, 256
        $region128: #{t5_decoder_init.2} parent=75 // pred_fallthru
          _
        %s979 = sand.u32 %s50, 1
        %s980 = scalar_lea.sflag [#allocation6], %s979
        %s981 = sand.u32 %s403, 1
        %s982 = smul.addr %s981, 32
        %s983 = scalar_lea.vmem [#allocation19], %s982
        // Predicated region
        $region129: #{t5_decoder_init.2} parent=75 // pred_check
          %p984 = pneg %p416
        $region130: #{t5_decoder_init.2} parent=75 // pred_check_branch
          %986 = sbr.rel (%p984) target = $region132
        $region131: #{t5_decoder_init.2} parent=75 // pred_region
          %987 = dma.done %s980, 512
        $region132: #{t5_decoder_init.2} parent=75 // pred_fallthru
          _
        %s988 = sand.u32 %s50, 1
        %s989 = scalar_lea.sflag [#allocation3], %s988
        %s990 = sand.u32 %s70, 1
        %s991 = smul.addr %s990, 8
        %s992 = scalar_lea.vmem [#allocation2], %s991
        %p993 = pneg %p83
        %p994 = pneg %p80
        %s995 = sand.u32 %s50, 1
        %s996 = scalar_lea.sflag [#allocation6], %s995
        %s997 = sand.u32 %s96, 1
        %s998 = smul.addr %s997, 16
        %s999 = scalar_lea.vmem [#allocation5], %s998
        %p1000 = pneg %p109
        %p1001 = pneg %p106
        %s1002 = sand.u32 %s50, 1
        %s1003 = scalar_lea.sflag [#allocation6], %s1002
        %s1004 = sand.u32 %s122, 1
        %s1005 = scalar_lea.vmem [#allocation7], %s1004
        %p1006 = pneg %p135
        %p1007 = pneg %p132
        %p1008 = pneg %p156
        %p1009 = pneg %p153
        %s1010 = sand.u32 %s50, 1
        %s1011 = scalar_lea.sflag [#allocation3], %s1010
        %s1012 = sand.u32 %s169, 1
        %s1013 = scalar_lea.vmem [#allocation10], %s1012
        %p1014 = pneg %p182
        %p1015 = pneg %p179
        %s1016 = sand.u32 %s50, 1
        %s1017 = scalar_lea.sflag [#allocation6], %s1016
        %s1018 = sand.u32 %s195, 1
        %s1019 = smul.addr %s1018, 16
        %s1020 = scalar_lea.vmem [#allocation11], %s1019
        %p1021 = pneg %p208
        %p1022 = pneg %p205
        %s1023 = sand.u32 %s50, 1
        %s1024 = scalar_lea.sflag [#allocation3], %s1023
        %s1025 = sand.u32 %s221, 1
        %s1026 = smul.addr %s1025, 16
        %s1027 = scalar_lea.vmem [#allocation12], %s1026
        %p1028 = pneg %p234
        %p1029 = pneg %p231
        %s1030 = sand.u32 %s50, 1
        %s1031 = scalar_lea.sflag [#allocation6], %s1030
        %s1032 = sand.u32 %s247, 1
        %s1033 = scalar_lea.vmem [#allocation13], %s1032
        %p1034 = pneg %p260
        %p1035 = pneg %p257
        %s1036 = sand.u32 %s50, 1
        %s1037 = scalar_lea.sflag [#allocation3], %s1036
        %s1038 = sand.u32 %s273, 1
        %s1039 = smul.addr %s1038, 16
        %s1040 = scalar_lea.vmem [#allocation14], %s1039
        %p1041 = pneg %p286
        %p1042 = pneg %p283
        %s1043 = sand.u32 %s50, 1
        %s1044 = scalar_lea.sflag [#allocation6], %s1043
        %s1045 = sand.u32 %s299, 1
        %s1046 = smul.addr %s1045, 16
        %s1047 = scalar_lea.vmem [#allocation15], %s1046
        %p1048 = pneg %p312
        %p1049 = pneg %p309
        %s1050 = sand.u32 %s50, 1
        %s1051 = scalar_lea.sflag [#allocation3], %s1050
        %s1052 = sand.u32 %s325, 1
        %s1053 = smul.addr %s1052, 16
        %s1054 = scalar_lea.vmem [#allocation16], %s1053
        %p1055 = pneg %p338
        %p1056 = pneg %p335
        %s1057 = sand.u32 %s50, 1
        %s1058 = scalar_lea.sflag [#allocation6], %s1057
        %s1059 = sand.u32 %s351, 1
        %s1060 = scalar_lea.vmem [#allocation17], %s1059
        %p1061 = pneg %p364
        %p1062 = pneg %p361
        %s1063 = sand.u32 %s50, 1
        %s1064 = scalar_lea.sflag [#allocation3], %s1063
        %s1065 = sand.u32 %s377, 1
        %s1066 = smul.addr %s1065, 16
        %s1067 = scalar_lea.vmem [#allocation18], %s1066
        %p1068 = pneg %p390
        %p1069 = pneg %p387
        %s1070 = sand.u32 %s50, 1
        %s1071 = scalar_lea.sflag [#allocation6], %s1070
        %s1072 = sand.u32 %s403, 1
        %s1073 = smul.addr %s1072, 32
        %s1074 = scalar_lea.vmem [#allocation19], %s1073
        %p1075 = pneg %p416
        %p1076 = pneg %p413
        %p1077 = pneg %p442
        %p1078 = pneg %p439
        %s1079 = sand.u32 %s429, 1
        %s1080 = scalar_lea.sflag [#allocation4], %s1079
        %s1081 = sand.u32 %s429, 1
        %s1082 = smul.addr %s1081, 8
        %s1083 = scalar_lea.vmem [#allocation20], %s1082
        %p1084 = pneg %p468
        %p1085 = pneg %p465
        %s1086 = sand.u32 %s50, 1
        %s1087 = scalar_lea.sflag [#allocation22], %s1086
        %s1088 = sand.u32 %s455, 1
        %s1089 = smul.addr %s1088, 4
        %s1090 = scalar_lea.vmem [#allocation21], %s1089
        %p1091 = pneg %p496
        %p1092 = pneg %p493
        %s1093 = sand.u32 %s50, 1
        %s1094 = scalar_lea.sflag [#allocation22], %s1093
        %s1095 = sand.u32 %s483, 1
        %s1096 = smul.addr %s1095, 8
        %s1097 = scalar_lea.vmem [#allocation23], %s1096
        %p1098 = pneg %p524
        %p1099 = pneg %p521
        %s1100 = sand.u32 %s50, 1
        %s1101 = scalar_lea.sflag [#allocation25], %s1100
        %s1102 = sand.u32 %s511, 1
        %s1103 = smul.addr %s1102, 8
        %s1104 = scalar_lea.vmem [#allocation24], %s1103
        %p1105 = pneg %p552
        %p1106 = pneg %p549
        %s1107 = sand.u32 %s50, 1
        %s1108 = scalar_lea.sflag [#allocation25], %s1107
        %s1109 = sand.u32 %s539, 1
        %s1110 = smul.addr %s1109, 16
        %s1111 = scalar_lea.vmem [#allocation26], %s1110
        %p1112 = pneg %p580
        %p1113 = pneg %p577
        %s1114 = sand.u32 %s567, 1
        %s1115 = scalar_lea.sflag [#allocation28], %s1114
        %s1116 = sand.u32 %s567, 1
        %s1117 = smul.addr %s1116, 16
        %s1118 = scalar_lea.vmem [#allocation27], %s1117
        %p1120 = scmp.eq.s32.totalorder %s55, 0
        // Predicated region
        $region133: #{t5_decoder_init.2} parent=75 // pred_check
          %p1121 = pneg %p1120
        $region134: #{t5_decoder_init.2} parent=75 // pred_check_branch
          %1123 = sbr.rel (%p1121) target = $region136
        $region135: #{t5_decoder_init.2} parent=75 // pred_region
          %v1124 = vld [vmem:[%s875] sm:$0xff]
          %vm1125 = vcmask 261120
          %1126 = vst.msk [vmem:[%s1083] sm:$0xff] %vm1125, %v1124
        $region136: #{t5_decoder_init.2} parent=75 // pred_fallthru
          _
        %v1127 = vld [vmem:[%s1083] sm:$0xff]
        %v1128 = vld [vmem:[%s884] sm:$0xff]
        %v1129 = vld [vmem:[%s884 + $0x8] sm:$0xff]
        %v1130 = vpack.c.bf16 %v1129, %v1128
        %v1131 = vmul.f32 %v1127, %v1127
        %vm1132 = vcmask 261120
        %v1133 = vsel %vm1132, %v1131, 0.0
        %1134 = vadd.xlane.f32.xlu0 %v1133
        %v1135 = vpop.xlane.xlu0 %1134
        %v1136 = vrcp.pop 32.0
        %v1137 = vmul.f32 %v1135, %v1136
        %v1138 = vadd.f32 %v1137, 1e-06
        %v1139 = vrsqrt.pop %v1138
        %v1140 = vmul.f32 %v1127, %v1139
        %v1141 = vld [vmem:[%s904] sm:$0x1]
        %v1143 = vlaneseq
        %v1144 = vshrl.u32 %v1143, 7
        %v1145 = vsub.s32 0, %v1144
        %v1146 = vrot.slane %v1141, %v1145
        %v1148 = vmul.f32 %v1140, %v1146
        %v1149 = vpack.c.bf16 %v1148, %v1148
        %v1150 = vld [vmem:[%s913] sm:$0xf]
        %v1151 = vld [vmem:[%s913 + $0x4] sm:$0xf]
        %v1152 = vld [vmem:[%s913 + $0x8] sm:$0xf]
        %v1153 = vld [vmem:[%s913 + $0xc] sm:$0xf]
        %v1158 = vunpack.c.l.b16 %v1150
        %v1159 = vunpack.c.l.b16 %v1151
        %v1160 = vunpack.c.l.b16 %v1152
        %v1161 = vunpack.c.l.b16 %v1153
        %v1162 = vpack.c.b16 %v1159, %v1158
        %v1163 = vpack.c.b16 %v1161, %v1160
        %v1167 = vsel %vm1132, %v1149, 0
        %1169 = vmatprep.subr.bf16.mxu0 0
        %1170 = vmatpush1.bf16.msra.mxu0 %v1162
        %1171 = vmatprep.subr.bf16.mxu0 0
        %1172 = vmatpush1.bf16.msra.mxu0 %v1163
        %1173 = vmatprep.subr.bf16.mxu0 0
        %1174 = vmatpush1.bf16.msra.mxu0 0
        %1175 = vmatprep.subr.bf16.mxu0 0
        %1176 = vmatpush1.bf16.msra.mxu0 0
        %1177 = vmatprep.subr.bf16.mxu0 0
        %1178 = vmatpush1.bf16.msra.mxu0 0
        %1179 = vmatprep.subr.bf16.mxu0 0
        %1180 = vmatpush1.bf16.msra.mxu0 0
        %1181 = vmatprep.subr.bf16.mxu0 0
        %1182 = vmatpush1.bf16.msra.mxu0 0
        %1183 = vmatprep.subr.bf16.mxu0 0
        %1184 = vmatpush1.bf16.msra.mxu0 0
        %1185 = vmatprep.subr.bf16.mxu0 0
        %1186 = vmatpush1.bf16.msra.mxu0 0
        %1187 = vmatprep.subr.bf16.mxu0 0
        %1188 = vmatpush1.bf16.msra.mxu0 0
        %1189 = vmatprep.subr.bf16.mxu0 0
        %1190 = vmatpush1.bf16.msra.mxu0 0
        %1191 = vmatprep.subr.bf16.mxu0 0
        %1192 = vmatpush1.bf16.msra.mxu0 0
        %1193 = vmatprep.subr.bf16.mxu0 0
        %1194 = vmatpush1.bf16.msra.mxu0 0
        %1195 = vmatprep.subr.bf16.mxu0 0
        %1196 = vmatpush1.bf16.msra.mxu0 0
        %1197 = vmatprep.subr.bf16.mxu0 0
        %1198 = vmatpush1.bf16.msra.mxu0 0
        %1199 = vmatprep.subr.bf16.mxu0 0
        %1200 = vmatpush1.bf16.msra.mxu0 0
        %1201 = vmatprep.mubr.bf16.mxu0 0
        %1202 = vmatmul.mubr.bf16.gmra.mrb[0].mxu0 %v1167
        %v1203 = vpop.f32.mrb[0].mxu0
        %v1204 = vadd.f32 0.0, %v1203
        %v1205 = vpop.f32.mrb[0].mxu0
        %v1206 = vpop.f32.mrb[0].mxu0
        %v1207 = vpop.f32.mrb[0].mxu0
        %1208 = vdwg.mxu0
        %1210 = vrot.lane.b32.xlu0 %v1204, 96
        %v1211 = vpop.permute.xlu0 %1210
        %1213 = vst.msk [vmem:[%s1097] sm:$0xff] %vm1132, %v1211
        %1214 = vrot.lane.b32.xlu0 %v1204, 64
        %v1215 = vpop.permute.xlu0 %1214
        %1217 = vst.msk [vmem:[%s1104] sm:$0xff] %vm1132, %v1215
        %v1218 = vpack.c.bf16 %v1204, %v1204
        %1220 = vrot.lane.b32.xlu0 %v1218, 120
        %v1221 = vpop.permute.xlu0 %1220
        %1222 = vrot.lane.b32.xlu0 %v1218, 112
        %v1223 = vpop.permute.xlu0 %1222
        %1224 = vrot.lane.b32.xlu0 %v1218, 104
        %v1225 = vpop.permute.xlu0 %1224
        %v1226 = vlaneseq
        %v1227 = vshrl.u32 %v1226, 7
        %v1228 = vlaneseq
        %v1229 = vand.u32 %v1228, 127
        %vm1230 = vcmp.ge.s32.totalorder %v1227, %v1229
        %v1231 = vsel %vm1230, 0.0, -1e+09
        %1232 = vrot.lane.b32.xlu0 %v1218, 96
        %v1233 = vpop.permute.xlu0 %1232
        %1234 = vrot.lane.b32.xlu0 %v1221, 96
        %v1235 = vpop.permute.xlu0 %1234
        %1236 = vrot.lane.b32.xlu0 %v1223, 96
        %v1237 = vpop.permute.xlu0 %1236
        %1238 = vrot.lane.b32.xlu0 %v1225, 96
        %v1239 = vpop.permute.xlu0 %1238
        %1244 = vxpose.xlu0.c.b16.start [1/8] %v1233, 128
        %1245 = vxpose.xlu0.c.b16.cont [2/8] 0, 128
        %1246 = vxpose.xlu0.c.b16.cont [3/8] 0, 128
        %1247 = vxpose.xlu0.c.b16.cont [4/8] 0, 128
        %1248 = vxpose.xlu0.c.b16.cont [5/8] 0, 128
        %1249 = vxpose.xlu0.c.b16.cont [6/8] 0, 128
        %1250 = vxpose.xlu0.c.b16.cont [7/8] 0, 128
        %1251 = vxpose.xlu0.c.b16.end [8/8] 0, 128
        %v1252 = vpop.trf.xlu0
        %v1253 = vpop.trf.xlu0
        %v1254 = vpop.trf.xlu0
        %v1255 = vpop.trf.xlu0
        %v1256 = vpop.trf.xlu0
        %v1257 = vpop.trf.xlu0
        %v1258 = vpop.trf.xlu0
        %v1259 = vpop.trf.xlu0
        %1260 = vxpose.xlu0.c.b16.start [1/8] %v1235, 128
        %1261 = vxpose.xlu0.c.b16.cont [2/8] 0, 128
        %1262 = vxpose.xlu0.c.b16.cont [3/8] 0, 128
        %1263 = vxpose.xlu0.c.b16.cont [4/8] 0, 128
        %1264 = vxpose.xlu0.c.b16.cont [5/8] 0, 128
        %1265 = vxpose.xlu0.c.b16.cont [6/8] 0, 128
        %1266 = vxpose.xlu0.c.b16.cont [7/8] 0, 128
        %1267 = vxpose.xlu0.c.b16.end [8/8] 0, 128
        %v1268 = vpop.trf.xlu0
        %v1269 = vpop.trf.xlu0
        %v1270 = vpop.trf.xlu0
        %v1271 = vpop.trf.xlu0
        %v1272 = vpop.trf.xlu0
        %v1273 = vpop.trf.xlu0
        %v1274 = vpop.trf.xlu0
        %v1275 = vpop.trf.xlu0
        %1276 = vxpose.xlu0.c.b16.start [1/8] %v1237, 128
        %1277 = vxpose.xlu0.c.b16.cont [2/8] 0, 128
        %1278 = vxpose.xlu0.c.b16.cont [3/8] 0, 128
        %1279 = vxpose.xlu0.c.b16.cont [4/8] 0, 128
        %1280 = vxpose.xlu0.c.b16.cont [5/8] 0, 128
        %1281 = vxpose.xlu0.c.b16.cont [6/8] 0, 128
        %1282 = vxpose.xlu0.c.b16.cont [7/8] 0, 128
        %1283 = vxpose.xlu0.c.b16.end [8/8] 0, 128
        %v1284 = vpop.trf.xlu0
        %v1285 = vpop.trf.xlu0
        %v1286 = vpop.trf.xlu0
        %v1287 = vpop.trf.xlu0
        %v1288 = vpop.trf.xlu0
        %v1289 = vpop.trf.xlu0
        %v1290 = vpop.trf.xlu0
        %v1291 = vpop.trf.xlu0
        %1292 = vxpose.xlu0.c.b16.start [1/8] %v1239, 128
        %1293 = vxpose.xlu0.c.b16.cont [2/8] 0, 128
        %1294 = vxpose.xlu0.c.b16.cont [3/8] 0, 128
        %1295 = vxpose.xlu0.c.b16.cont [4/8] 0, 128
        %1296 = vxpose.xlu0.c.b16.cont [5/8] 0, 128
        %1297 = vxpose.xlu0.c.b16.cont [6/8] 0, 128
        %1298 = vxpose.xlu0.c.b16.cont [7/8] 0, 128
        %1299 = vxpose.xlu0.c.b16.end [8/8] 0, 128
        %v1300 = vpop.trf.xlu0
        %v1301 = vpop.trf.xlu0
        %v1302 = vpop.trf.xlu0
        %v1303 = vpop.trf.xlu0
        %v1304 = vpop.trf.xlu0
        %v1305 = vpop.trf.xlu0
        %v1306 = vpop.trf.xlu0
        %v1307 = vpop.trf.xlu0
        %vm1308 = vcmask 64512
        %v1310 = vsel %vm1308, %v1218, 0
        %vm1312 = vcmask 1043456
        %v1314 = vsel %vm1312, %v1252, 0
        %1316 = vmatprep.subr.bf16.mxu0 0
        %1317 = vmatpush1.bf16.msra.mxu0 %v1314
        %1318 = vmatprep.subr.bf16.mxu0 0
        %1319 = vmatpush1.bf16.msra.mxu0 0
        %1320 = vmatprep.subr.bf16.mxu0 0
        %1321 = vmatpush1.bf16.msra.mxu0 0
        %1322 = vmatprep.subr.bf16.mxu0 0
        %1323 = vmatpush1.bf16.msra.mxu0 0
        %1324 = vmatprep.subr.bf16.mxu0 0
        %1325 = vmatpush1.bf16.msra.mxu0 0
        %1326 = vmatprep.subr.bf16.mxu0 0
        %1327 = vmatpush1.bf16.msra.mxu0 0
        %1328 = vmatprep.subr.bf16.mxu0 0
        %1329 = vmatpush1.bf16.msra.mxu0 0
        %1330 = vmatprep.subr.bf16.mxu0 0
        %1331 = vmatpush1.bf16.msra.mxu0 0
        %1332 = vmatprep.subr.bf16.mxu0 0
        %1333 = vmatpush1.bf16.msra.mxu0 0
        %1334 = vmatprep.subr.bf16.mxu0 0
        %1335 = vmatpush1.bf16.msra.mxu0 0
        %1336 = vmatprep.subr.bf16.mxu0 0
        %1337 = vmatpush1.bf16.msra.mxu0 0
        %1338 = vmatprep.subr.bf16.mxu0 0
        %1339 = vmatpush1.bf16.msra.mxu0 0
        %1340 = vmatprep.subr.bf16.mxu0 0
        %1341 = vmatpush1.bf16.msra.mxu0 0
        %1342 = vmatprep.subr.bf16.mxu0 0
        %1343 = vmatpush1.bf16.msra.mxu0 0
        %1344 = vmatprep.subr.bf16.mxu0 0
        %1345 = vmatpush1.bf16.msra.mxu0 0
        %1346 = vmatprep.subr.bf16.mxu0 0
        %1347 = vmatpush1.bf16.msra.mxu0 0
        %1348 = vmatprep.mubr.bf16.mxu0 0
        %1349 = vmatmul.mubr.bf16.gmra.mrb[0].mxu0 %v1310
        %v1350 = vpop.f32.mrb[0].mxu0
        %v1351 = vadd.f32 %v1231, %v1350
        %v1352 = vpop.f32.mrb[0].mxu0
        %v1353 = vpop.f32.mrb[0].mxu0
        %v1354 = vpop.f32.mrb[0].mxu0
        %1355 = vdwg.mxu0
        %v1357 = vsel %vm1308, %v1221, 0
        %v1360 = vsel %vm1312, %v1268, 0
        %1362 = vmatprep.subr.bf16.mxu0 0
        %1363 = vmatpush1.bf16.msra.mxu0 %v1360
        %1364 = vmatprep.subr.bf16.mxu0 0
        %1365 = vmatpush1.bf16.msra.mxu0 0
        %1366 = vmatprep.subr.bf16.mxu0 0
        %1367 = vmatpush1.bf16.msra.mxu0 0
        %1368 = vmatprep.subr.bf16.mxu0 0
        %1369 = vmatpush1.bf16.msra.mxu0 0
        %1370 = vmatprep.subr.bf16.mxu0 0
        %1371 = vmatpush1.bf16.msra.mxu0 0
        %1372 = vmatprep.subr.bf16.mxu0 0
        %1373 = vmatpush1.bf16.msra.mxu0 0
        %1374 = vmatprep.subr.bf16.mxu0 0
        %1375 = vmatpush1.bf16.msra.mxu0 0
        %1376 = vmatprep.subr.bf16.mxu0 0
        %1377 = vmatpush1.bf16.msra.mxu0 0
        %1378 = vmatprep.subr.bf16.mxu0 0
        %1379 = vmatpush1.bf16.msra.mxu0 0
        %1380 = vmatprep.subr.bf16.mxu0 0
        %1381 = vmatpush1.bf16.msra.mxu0 0
        %1382 = vmatprep.subr.bf16.mxu0 0
        %1383 = vmatpush1.bf16.msra.mxu0 0
        %1384 = vmatprep.subr.bf16.mxu0 0
        %1385 = vmatpush1.bf16.msra.mxu0 0
        %1386 = vmatprep.subr.bf16.mxu0 0
        %1387 = vmatpush1.bf16.msra.mxu0 0
        %1388 = vmatprep.subr.bf16.mxu0 0
        %1389 = vmatpush1.bf16.msra.mxu0 0
        %1390 = vmatprep.subr.bf16.mxu0 0
        %1391 = vmatpush1.bf16.msra.mxu0 0
        %1392 = vmatprep.subr.bf16.mxu0 0
        %1393 = vmatpush1.bf16.msra.mxu0 0
        %1394 = vmatprep.mubr.bf16.mxu0 0
        %1395 = vmatmul.mubr.bf16.gmra.mrb[0].mxu0 %v1357
        %v1396 = vpop.f32.mrb[0].mxu0
        %v1397 = vadd.f32 %v1231, %v1396
        %v1398 = vpop.f32.mrb[0].mxu0
        %v1399 = vpop.f32.mrb[0].mxu0
        %v1400 = vpop.f32.mrb[0].mxu0
        %1401 = vdwg.mxu0
        %v1403 = vsel %vm1308, %v1223, 0
        %v1406 = vsel %vm1312, %v1284, 0
        %1408 = vmatprep.subr.bf16.mxu0 0
        %1409 = vmatpush1.bf16.msra.mxu0 %v1406
        %1410 = vmatprep.subr.bf16.mxu0 0
        %1411 = vmatpush1.bf16.msra.mxu0 0
        %1412 = vmatprep.subr.bf16.mxu0 0
        %1413 = vmatpush1.bf16.msra.mxu0 0
        %1414 = vmatprep.subr.bf16.mxu0 0
        %1415 = vmatpush1.bf16.msra.mxu0 0
        %1416 = vmatprep.subr.bf16.mxu0 0
        %1417 = vmatpush1.bf16.msra.mxu0 0
        %1418 = vmatprep.subr.bf16.mxu0 0
        %1419 = vmatpush1.bf16.msra.mxu0 0
        %1420 = vmatprep.subr.bf16.mxu0 0
        %1421 = vmatpush1.bf16.msra.mxu0 0
        %1422 = vmatprep.subr.bf16.mxu0 0
        %1423 = vmatpush1.bf16.msra.mxu0 0
        %1424 = vmatprep.subr.bf16.mxu0 0
        %1425 = vmatpush1.bf16.msra.mxu0 0
        %1426 = vmatprep.subr.bf16.mxu0 0
        %1427 = vmatpush1.bf16.msra.mxu0 0
        %1428 = vmatprep.subr.bf16.mxu0 0
        %1429 = vmatpush1.bf16.msra.mxu0 0
        %1430 = vmatprep.subr.bf16.mxu0 0
        %1431 = vmatpush1.bf16.msra.mxu0 0
        %1432 = vmatprep.subr.bf16.mxu0 0
        %1433 = vmatpush1.bf16.msra.mxu0 0
        %1434 = vmatprep.subr.bf16.mxu0 0
        %1435 = vmatpush1.bf16.msra.mxu0 0
        %1436 = vmatprep.subr.bf16.mxu0 0
        %1437 = vmatpush1.bf16.msra.mxu0 0
        %1438 = vmatprep.subr.bf16.mxu0 0
        %1439 = vmatpush1.bf16.msra.mxu0 0
        %1440 = vmatprep.mubr.bf16.mxu0 0
        %1441 = vmatmul.mubr.bf16.gmra.mrb[0].mxu0 %v1403
        %v1442 = vpop.f32.mrb[0].mxu0
        %v1443 = vadd.f32 %v1231, %v1442
        %v1444 = vpop.f32.mrb[0].mxu0
        %v1445 = vpop.f32.mrb[0].mxu0
        %v1446 = vpop.f32.mrb[0].mxu0
        %1447 = vdwg.mxu0
        %v1449 = vsel %vm1308, %v1225, 0
        %v1452 = vsel %vm1312, %v1300, 0
        %1454 = vmatprep.subr.bf16.mxu0 0
        %1455 = vmatpush1.bf16.msra.mxu0 %v1452
        %1456 = vmatprep.subr.bf16.mxu0 0
        %1457 = vmatpush1.bf16.msra.mxu0 0
        %1458 = vmatprep.subr.bf16.mxu0 0
        %1459 = vmatpush1.bf16.msra.mxu0 0
        %1460 = vmatprep.subr.bf16.mxu0 0
        %1461 = vmatpush1.bf16.msra.mxu0 0
        %1462 = vmatprep.subr.bf16.mxu0 0
        %1463 = vmatpush1.bf16.msra.mxu0 0
        %1464 = vmatprep.subr.bf16.mxu0 0
        %1465 = vmatpush1.bf16.msra.mxu0 0
        %1466 = vmatprep.subr.bf16.mxu0 0
        %1467 = vmatpush1.bf16.msra.mxu0 0
        %1468 = vmatprep.subr.bf16.mxu0 0
        %1469 = vmatpush1.bf16.msra.mxu0 0
        %1470 = vmatprep.subr.bf16.mxu0 0
        %1471 = vmatpush1.bf16.msra.mxu0 0
        %1472 = vmatprep.subr.bf16.mxu0 0
        %1473 = vmatpush1.bf16.msra.mxu0 0
        %1474 = vmatprep.subr.bf16.mxu0 0
        %1475 = vmatpush1.bf16.msra.mxu0 0
        %1476 = vmatprep.subr.bf16.mxu0 0
        %1477 = vmatpush1.bf16.msra.mxu0 0
        %1478 = vmatprep.subr.bf16.mxu0 0
        %1479 = vmatpush1.bf16.msra.mxu0 0
        %1480 = vmatprep.subr.bf16.mxu0 0
        %1481 = vmatpush1.bf16.msra.mxu0 0
        %1482 = vmatprep.subr.bf16.mxu0 0
        %1483 = vmatpush1.bf16.msra.mxu0 0
        %1484 = vmatprep.subr.bf16.mxu0 0
        %1485 = vmatpush1.bf16.msra.mxu0 0
        %1486 = vmatprep.mubr.bf16.mxu0 0
        %1487 = vmatmul.mubr.bf16.gmra.mrb[0].mxu0 %v1449
        %v1488 = vpop.f32.mrb[0].mxu0
        %v1489 = vadd.f32 %v1231, %v1488
        %v1490 = vpop.f32.mrb[0].mxu0
        %v1491 = vpop.f32.mrb[0].mxu0
        %v1492 = vpop.f32.mrb[0].mxu0
        %1493 = vdwg.mxu0
        %v1494 = vsel %vm1308, %v1351, -inf
        %1495 = vmax.xlane.f32.xlu0 %v1494
        %v1496 = vpop.xlane.xlu0 %1495
        %v1497 = vsel %vm1308, %v1397, -inf
        %1498 = vmax.xlane.f32.xlu0 %v1497
        %v1499 = vpop.xlane.xlu0 %1498
        %v1500 = vsel %vm1308, %v1443, -inf
        %1501 = vmax.xlane.f32.xlu0 %v1500
        %v1502 = vpop.xlane.xlu0 %1501
        %v1503 = vsel %vm1308, %v1489, -inf
        %1504 = vmax.xlane.f32.xlu0 %v1503
        %v1505 = vpop.xlane.xlu0 %1504
        %v1506 = vsub.f32 %v1351, %v1496
        %v1507 = vsub.f32 %v1397, %v1499
        %v1508 = vsub.f32 %v1443, %v1502
        %v1509 = vsub.f32 %v1489, %v1505
        %v1510 = vmul.f32 %v1506, 1.442695
        %v1511 = vpow.pop %v1510
        %v1512 = vmul.f32 %v1507, 1.442695
        %v1513 = vpow.pop %v1512
        %v1514 = vmul.f32 %v1508, 1.442695
        %v1515 = vpow.pop %v1514
        %v1516 = vmul.f32 %v1509, 1.442695
        %v1517 = vpow.pop %v1516
        %v1518 = vsel %vm1308, %v1511, 0.0
        %1519 = vadd.xlane.f32.xlu0 %v1518
        %v1520 = vpop.xlane.xlu0 %1519
        %v1521 = vsel %vm1308, %v1513, 0.0
        %1522 = vadd.xlane.f32.xlu0 %v1521
        %v1523 = vpop.xlane.xlu0 %1522
        %v1524 = vsel %vm1308, %v1515, 0.0
        %1525 = vadd.xlane.f32.xlu0 %v1524
        %v1526 = vpop.xlane.xlu0 %1525
        %v1527 = vsel %vm1308, %v1517, 0.0
        %1528 = vadd.xlane.f32.xlu0 %v1527
        %v1529 = vpop.xlane.xlu0 %1528
        %v1530 = vrcp.pop %v1520
        %v1531 = vrcp.pop %v1523
        %v1532 = vrcp.pop %v1526
        %v1533 = vrcp.pop %v1529
        %v1534 = vmul.f32 %v1511, %v1530
        %v1535 = vmul.f32 %v1513, %v1531
        %v1536 = vmul.f32 %v1515, %v1532
        %v1537 = vmul.f32 %v1517, %v1533
        %v1538 = vpack.c.bf16 %v1534, %v1534
        %v1539 = vpack.c.bf16 %v1535, %v1535
        %v1540 = vpack.c.bf16 %v1536, %v1536
        %v1541 = vpack.c.bf16 %v1537, %v1537
        %1542 = vrot.lane.b32.xlu0 %v1218, 64
        %v1543 = vpop.permute.xlu0 %1542
        %v1545 = vsel %vm1308, %v1538, 0
        %v1548 = vsel %vm1312, %v1543, 0
        %1550 = vmatprep.subr.bf16.mxu0 0
        %1551 = vmatpush1.bf16.msra.mxu0 %v1548
        %1552 = vmatprep.subr.bf16.mxu0 0
        %1553 = vmatpush1.bf16.msra.mxu0 0
        %1554 = vmatprep.subr.bf16.mxu0 0
        %1555 = vmatpush1.bf16.msra.mxu0 0
        %1556 = vmatprep.subr.bf16.mxu0 0
        %1557 = vmatpush1.bf16.msra.mxu0 0
        %1558 = vmatprep.subr.bf16.mxu0 0
        %1559 = vmatpush1.bf16.msra.mxu0 0
        %1560 = vmatprep.subr.bf16.mxu0 0
        %1561 = vmatpush1.bf16.msra.mxu0 0
        %1562 = vmatprep.subr.bf16.mxu0 0
        %1563 = vmatpush1.bf16.msra.mxu0 0
        %1564 = vmatprep.subr.bf16.mxu0 0
        %1565 = vmatpush1.bf16.msra.mxu0 0
        %1566 = vmatprep.subr.bf16.mxu0 0
        %1567 = vmatpush1.bf16.msra.mxu0 0
        %1568 = vmatprep.subr.bf16.mxu0 0
        %1569 = vmatpush1.bf16.msra.mxu0 0
        %1570 = vmatprep.subr.bf16.mxu0 0
        %1571 = vmatpush1.bf16.msra.mxu0 0
        %1572 = vmatprep.subr.bf16.mxu0 0
        %1573 = vmatpush1.bf16.msra.mxu0 0
        %1574 = vmatprep.subr.bf16.mxu0 0
        %1575 = vmatpush1.bf16.msra.mxu0 0
        %1576 = vmatprep.subr.bf16.mxu0 0
        %1577 = vmatpush1.bf16.msra.mxu0 0
        %1578 = vmatprep.subr.bf16.mxu0 0
        %1579 = vmatpush1.bf16.msra.mxu0 0
        %1580 = vmatprep.subr.bf16.mxu0 0
        %1581 = vmatpush1.bf16.msra.mxu0 0
        %1582 = vmatprep.mubr.bf16.mxu0 0
        %1583 = vmatmul.mubr.bf16.gmra.mrb[0].mxu0 %v1545
        %v1584 = vpop.f32.mrb[0].mxu0
        %v1585 = vadd.f32 0.0, %v1584
        %v1586 = vpop.f32.mrb[0].mxu0
        %v1587 = vpop.f32.mrb[0].mxu0
        %v1588 = vpop.f32.mrb[0].mxu0
        %1589 = vdwg.mxu0
        %1590 = vrot.lane.b32.xlu0 %v1221, 64
        %v1591 = vpop.permute.xlu0 %1590
        %v1593 = vsel %vm1308, %v1539, 0
        %v1596 = vsel %vm1312, %v1591, 0
        %1598 = vmatprep.subr.bf16.mxu0 0
        %1599 = vmatpush1.bf16.msra.mxu0 %v1596
        %1600 = vmatprep.subr.bf16.mxu0 0
        %1601 = vmatpush1.bf16.msra.mxu0 0
        %1602 = vmatprep.subr.bf16.mxu0 0
        %1603 = vmatpush1.bf16.msra.mxu0 0
        %1604 = vmatprep.subr.bf16.mxu0 0
        %1605 = vmatpush1.bf16.msra.mxu0 0
        %1606 = vmatprep.subr.bf16.mxu0 0
        %1607 = vmatpush1.bf16.msra.mxu0 0
        %1608 = vmatprep.subr.bf16.mxu0 0
        %1609 = vmatpush1.bf16.msra.mxu0 0
        %1610 = vmatprep.subr.bf16.mxu0 0
        %1611 = vmatpush1.bf16.msra.mxu0 0
        %1612 = vmatprep.subr.bf16.mxu0 0
        %1613 = vmatpush1.bf16.msra.mxu0 0
        %1614 = vmatprep.subr.bf16.mxu0 0
        %1615 = vmatpush1.bf16.msra.mxu0 0
        %1616 = vmatprep.subr.bf16.mxu0 0
        %1617 = vmatpush1.bf16.msra.mxu0 0
        %1618 = vmatprep.subr.bf16.mxu0 0
        %1619 = vmatpush1.bf16.msra.mxu0 0
        %1620 = vmatprep.subr.bf16.mxu0 0
        %1621 = vmatpush1.bf16.msra.mxu0 0
        %1622 = vmatprep.subr.bf16.mxu0 0
        %1623 = vmatpush1.bf16.msra.mxu0 0
        %1624 = vmatprep.subr.bf16.mxu0 0
        %1625 = vmatpush1.bf16.msra.mxu0 0
        %1626 = vmatprep.subr.bf16.mxu0 0
        %1627 = vmatpush1.bf16.msra.mxu0 0
        %1628 = vmatprep.subr.bf16.mxu0 0
        %1629 = vmatpush1.bf16.msra.mxu0 0
        %1630 = vmatprep.mubr.bf16.mxu0 0
        %1631 = vmatmul.mubr.bf16.gmra.mrb[0].mxu0 %v1593
        %v1632 = vpop.f32.mrb[0].mxu0
        %v1633 = vadd.f32 0.0, %v1632
        %v1634 = vpop.f32.mrb[0].mxu0
        %v1635 = vpop.f32.mrb[0].mxu0
        %v1636 = vpop.f32.mrb[0].mxu0
        %1637 = vdwg.mxu0
        %1638 = vrot.lane.b32.xlu0 %v1223, 64
        %v1639 = vpop.permute.xlu0 %1638
        %v1641 = vsel %vm1308, %v1540, 0
        %v1644 = vsel %vm1312, %v1639, 0
        %1646 = vmatprep.subr.bf16.mxu0 0
        %1647 = vmatpush1.bf16.msra.mxu0 %v1644
        %1648 = vmatprep.subr.bf16.mxu0 0
        %1649 = vmatpush1.bf16.msra.mxu0 0
        %1650 = vmatprep.subr.bf16.mxu0 0
        %1651 = vmatpush1.bf16.msra.mxu0 0
        %1652 = vmatprep.subr.bf16.mxu0 0
        %1653 = vmatpush1.bf16.msra.mxu0 0
        %1654 = vmatprep.subr.bf16.mxu0 0
        %1655 = vmatpush1.bf16.msra.mxu0 0
        %1656 = vmatprep.subr.bf16.mxu0 0
        %1657 = vmatpush1.bf16.msra.mxu0 0
        %1658 = vmatprep.subr.bf16.mxu0 0
        %1659 = vmatpush1.bf16.msra.mxu0 0
        %1660 = vmatprep.subr.bf16.mxu0 0
        %1661 = vmatpush1.bf16.msra.mxu0 0
        %1662 = vmatprep.subr.bf16.mxu0 0
        %1663 = vmatpush1.bf16.msra.mxu0 0
        %1664 = vmatprep.subr.bf16.mxu0 0
        %1665 = vmatpush1.bf16.msra.mxu0 0
        %1666 = vmatprep.subr.bf16.mxu0 0
        %1667 = vmatpush1.bf16.msra.mxu0 0
        %1668 = vmatprep.subr.bf16.mxu0 0
        %1669 = vmatpush1.bf16.msra.mxu0 0
        %1670 = vmatprep.subr.bf16.mxu0 0
        %1671 = vmatpush1.bf16.msra.mxu0 0
        %1672 = vmatprep.subr.bf16.mxu0 0
        %1673 = vmatpush1.bf16.msra.mxu0 0
        %1674 = vmatprep.subr.bf16.mxu0 0
        %1675 = vmatpush1.bf16.msra.mxu0 0
        %1676 = vmatprep.subr.bf16.mxu0 0
        %1677 = vmatpush1.bf16.msra.mxu0 0
        %1678 = vmatprep.mubr.bf16.mxu0 0
        %1679 = vmatmul.mubr.bf16.gmra.mrb[0].mxu0 %v1641
        %v1680 = vpop.f32.mrb[0].mxu0
        %v1681 = vadd.f32 0.0, %v1680
        %v1682 = vpop.f32.mrb[0].mxu0
        %v1683 = vpop.f32.mrb[0].mxu0
        %v1684 = vpop.f32.mrb[0].mxu0
        %1685 = vdwg.mxu0
        %1686 = vrot.lane.b32.xlu0 %v1225, 64
        %v1687 = vpop.permute.xlu0 %1686
        %v1689 = vsel %vm1308, %v1541, 0
        %v1692 = vsel %vm1312, %v1687, 0
        %1694 = vmatprep.subr.bf16.mxu0 0
        %1695 = vmatpush1.bf16.msra.mxu0 %v1692
        %1696 = vmatprep.subr.bf16.mxu0 0
        %1697 = vmatpush1.bf16.msra.mxu0 0
        %1698 = vmatprep.subr.bf16.mxu0 0
        %1699 = vmatpush1.bf16.msra.mxu0 0
        %1700 = vmatprep.subr.bf16.mxu0 0
        %1701 = vmatpush1.bf16.msra.mxu0 0
        %1702 = vmatprep.subr.bf16.mxu0 0
        %1703 = vmatpush1.bf16.msra.mxu0 0
        %1704 = vmatprep.subr.bf16.mxu0 0
        %1705 = vmatpush1.bf16.msra.mxu0 0
        %1706 = vmatprep.subr.bf16.mxu0 0
        %1707 = vmatpush1.bf16.msra.mxu0 0
        %1708 = vmatprep.subr.bf16.mxu0 0
        %1709 = vmatpush1.bf16.msra.mxu0 0
        %1710 = vmatprep.subr.bf16.mxu0 0
        %1711 = vmatpush1.bf16.msra.mxu0 0
        %1712 = vmatprep.subr.bf16.mxu0 0
        %1713 = vmatpush1.bf16.msra.mxu0 0
        %1714 = vmatprep.subr.bf16.mxu0 0
        %1715 = vmatpush1.bf16.msra.mxu0 0
        %1716 = vmatprep.subr.bf16.mxu0 0
        %1717 = vmatpush1.bf16.msra.mxu0 0
        %1718 = vmatprep.subr.bf16.mxu0 0
        %1719 = vmatpush1.bf16.msra.mxu0 0
        %1720 = vmatprep.subr.bf16.mxu0 0
        %1721 = vmatpush1.bf16.msra.mxu0 0
        %1722 = vmatprep.subr.bf16.mxu0 0
        %1723 = vmatpush1.bf16.msra.mxu0 0
        %1724 = vmatprep.subr.bf16.mxu0 0
        %1725 = vmatpush1.bf16.msra.mxu0 0
        %1726 = vmatprep.mubr.bf16.mxu0 0
        %1727 = vmatmul.mubr.bf16.gmra.mrb[0].mxu0 %v1689
        %v1728 = vpop.f32.mrb[0].mxu0
        %v1729 = vadd.f32 0.0, %v1728
        %v1730 = vpop.f32.mrb[0].mxu0
        %v1731 = vpop.f32.mrb[0].mxu0
        %v1732 = vpop.f32.mrb[0].mxu0
        %1733 = vdwg.mxu0
        %v1734 = vcombine.low %v1585, %v1681
        %v1735 = vcombine.high %v1585, %v1681
        %v1737 = vunpack.c.l.s4 1983009808
        %v1738 = vunpack.c.0.s8 %v1737
        %v1739 = vlaneseq
        %v1740 = vshrl.u32 %v1739, 7
        %v1741 = vsub.s32 %v1738, %v1740
        %v1742 = vrot.slane %v1734, %v1741
        %v1744 = vunpack.c.l.s4 1983009808
        %v1745 = vunpack.c.0.s8 %v1744
        %v1746 = vlaneseq
        %v1747 = vshrl.u32 %v1746, 7
        %v1748 = vsub.s32 %v1745, %v1747
        %v1749 = vrot.slane %v1735, %v1748
        %v1750 = vcombine.low %v1633, %v1729
        %v1751 = vcombine.high %v1633, %v1729
        %v1753 = vunpack.c.l.s4 1983009808
        %v1754 = vunpack.c.0.s8 %v1753
        %v1755 = vlaneseq
        %v1756 = vshrl.u32 %v1755, 7
        %v1757 = vsub.s32 %v1754, %v1756
        %v1758 = vrot.slane %v1750, %v1757
        %v1760 = vunpack.c.l.s4 1983009808
        %v1761 = vunpack.c.0.s8 %v1760
        %v1762 = vlaneseq
        %v1763 = vshrl.u32 %v1762, 7
        %v1764 = vsub.s32 %v1761, %v1763
        %v1765 = vrot.slane %v1751, %v1764
        %v1766 = vcombine.low %v1742, %v1758
        %v1767 = vcombine.high %v1742, %v1758
        %v1769 = vunpack.c.l.s4 1934713408
        %v1770 = vunpack.c.0.s8 %v1769
        %v1771 = vlaneseq
        %v1772 = vshrl.u32 %v1771, 7
        %v1773 = vsub.s32 %v1770, %v1772
        %v1774 = vrot.slane %v1766, %v1773
        %v1776 = vunpack.c.l.s4 1934713408
        %v1777 = vunpack.c.0.s8 %v1776
        %v1778 = vlaneseq
        %v1779 = vshrl.u32 %v1778, 7
        %v1780 = vsub.s32 %v1777, %v1779
        %v1781 = vrot.slane %v1767, %v1780
        %v1782 = vcombine.low %v1749, %v1765
        %v1783 = vcombine.high %v1749, %v1765
        %v1785 = vunpack.c.l.s4 1934713408
        %v1786 = vunpack.c.0.s8 %v1785
        %v1787 = vlaneseq
        %v1788 = vshrl.u32 %v1787, 7
        %v1789 = vsub.s32 %v1786, %v1788
        %v1790 = vrot.slane %v1782, %v1789
        %v1792 = vunpack.c.l.s4 1934713408
        %v1793 = vunpack.c.0.s8 %v1792
        %v1794 = vlaneseq
        %v1795 = vshrl.u32 %v1794, 7
        %v1796 = vsub.s32 %v1793, %v1795
        %v1797 = vrot.slane %v1783, %v1796
        %v1798 = vcombine.high %v1774, 0.0
        %v1799 = vcombine.high %v1781, 0.0
        %v1800 = vcombine.high %v1790, 0.0
        %v1801 = vcombine.high %v1797, 0.0
        %v1802 = vcombine.low %v1774, %v1781
        %v1804 = vunpack.c.l.s4 1983009808
        %v1805 = vunpack.c.0.s8 %v1804
        %v1806 = vlaneseq
        %v1807 = vshrl.u32 %v1806, 7
        %v1808 = vsub.s32 %v1805, %v1807
        %v1809 = vrot.slane %v1802, %v1808
        %v1810 = vcombine.low %v1798, %v1799
        %v1812 = vunpack.c.l.s4 1983009808
        %v1813 = vunpack.c.0.s8 %v1812
        %v1814 = vlaneseq
        %v1815 = vshrl.u32 %v1814, 7
        %v1816 = vsub.s32 %v1813, %v1815
        %v1817 = vrot.slane %v1810, %v1816
        %v1818 = vcombine.low %v1790, %v1797
        %v1820 = vunpack.c.l.s4 1983009808
        %v1821 = vunpack.c.0.s8 %v1820
        %v1822 = vlaneseq
        %v1823 = vshrl.u32 %v1822, 7
        %v1824 = vsub.s32 %v1821, %v1823
        %v1825 = vrot.slane %v1818, %v1824
        %v1826 = vcombine.low %v1800, %v1801
        %v1828 = vunpack.c.l.s4 1983009808
        %v1829 = vunpack.c.0.s8 %v1828
        %v1830 = vlaneseq
        %v1831 = vshrl.u32 %v1830, 7
        %v1832 = vsub.s32 %v1829, %v1831
        %v1833 = vrot.slane %v1826, %v1832
        %v1834 = vcombine.low %v1809, %v1817
        %v1835 = vcombine.high %v1809, %v1817
        %v1837 = vunpack.c.l.s4 1934713408
        %v1838 = vunpack.c.0.s8 %v1837
        %v1839 = vlaneseq
        %v1840 = vshrl.u32 %v1839, 7
        %v1841 = vsub.s32 %v1838, %v1840
        %v1842 = vrot.slane %v1834, %v1841
        %v1844 = vunpack.c.l.s4 1934713408
        %v1845 = vunpack.c.0.s8 %v1844
        %v1846 = vlaneseq
        %v1847 = vshrl.u32 %v1846, 7
        %v1848 = vsub.s32 %v1845, %v1847
        %v1849 = vrot.slane %v1835, %v1848
        %v1850 = vcombine.low %v1825, %v1833
        %v1851 = vcombine.high %v1825, %v1833
        %v1853 = vunpack.c.l.s4 1934713408
        %v1854 = vunpack.c.0.s8 %v1853
        %v1855 = vlaneseq
        %v1856 = vshrl.u32 %v1855, 7
        %v1857 = vsub.s32 %v1854, %v1856
        %v1858 = vrot.slane %v1850, %v1857
        %v1860 = vunpack.c.l.s4 1934713408
        %v1861 = vunpack.c.0.s8 %v1860
        %v1862 = vlaneseq
        %v1863 = vshrl.u32 %v1862, 7
        %v1864 = vsub.s32 %v1861, %v1863
        %v1865 = vrot.slane %v1851, %v1864
        %v1866 = vcombine.low %v1842, %v1858
        %v1867 = vcombine.high %v1842, %v1858
        %v1868 = vcombine.low %v1849, %v1865
        %v1869 = vcombine.high %v1849, %v1865
        %1871 = vrot.lane.b32.xlu0 %v1867, 8
        %v1872 = vpop.permute.xlu0 %1871
        %1875 = vrot.lane.b32.xlu0 %v1868, 16
        %v1876 = vpop.permute.xlu0 %1875
        %1879 = vrot.lane.b32.xlu0 %v1869, 24
        %v1880 = vpop.permute.xlu0 %1879
        %v1882 = vsel %vm1308, %v1866, %v1872
        %vm1883 = vcmask 130048
        %v1884 = vsel %vm1883, %v1882, %v1876
        %vm1885 = vcmask 195584
        %v1886 = vsel %vm1885, %v1884, %v1880
        %v1887 = vpack.c.bf16 %v1886, %v1886
        %v1888 = vld [vmem:[%s922] sm:$0xf]
        %v1889 = vld [vmem:[%s922 + $0x4] sm:$0xf]
        %v1890 = vld [vmem:[%s922 + $0x8] sm:$0xf]
        %v1891 = vld [vmem:[%s922 + $0xc] sm:$0xf]
        %v1896 = vunpack.c.l.b16 %v1888
        %v1897 = vunpack.c.l.b16 %v1889
        %v1898 = vunpack.c.l.b16 %v1890
        %v1899 = vunpack.c.l.b16 %v1891
        %v1900 = vpack.c.b16 %v1897, %v1896
        %v1901 = vpack.c.b16 %v1899, %v1898
        %v1905 = vsel %vm1132, %v1887, 0
        %1907 = vmatprep.subr.bf16.mxu0 0
        %1908 = vmatpush1.bf16.msra.mxu0 %v1900
        %1909 = vmatprep.subr.bf16.mxu0 0
        %1910 = vmatpush1.bf16.msra.mxu0 %v1901
        %1911 = vmatprep.subr.bf16.mxu0 0
        %1912 = vmatpush1.bf16.msra.mxu0 0
        %1913 = vmatprep.subr.bf16.mxu0 0
        %1914 = vmatpush1.bf16.msra.mxu0 0
        %1915 = vmatprep.subr.bf16.mxu0 0
        %1916 = vmatpush1.bf16.msra.mxu0 0
        %1917 = vmatprep.subr.bf16.mxu0 0
        %1918 = vmatpush1.bf16.msra.mxu0 0
        %1919 = vmatprep.subr.bf16.mxu0 0
        %1920 = vmatpush1.bf16.msra.mxu0 0
        %1921 = vmatprep.subr.bf16.mxu0 0
        %1922 = vmatpush1.bf16.msra.mxu0 0
        %1923 = vmatprep.subr.bf16.mxu0 0
        %1924 = vmatpush1.bf16.msra.mxu0 0
        %1925 = vmatprep.subr.bf16.mxu0 0
        %1926 = vmatpush1.bf16.msra.mxu0 0
        %1927 = vmatprep.subr.bf16.mxu0 0
        %1928 = vmatpush1.bf16.msra.mxu0 0
        %1929 = vmatprep.subr.bf16.mxu0 0
        %1930 = vmatpush1.bf16.msra.mxu0 0
        %1931 = vmatprep.subr.bf16.mxu0 0
        %1932 = vmatpush1.bf16.msra.mxu0 0
        %1933 = vmatprep.subr.bf16.mxu0 0
        %1934 = vmatpush1.bf16.msra.mxu0 0
        %1935 = vmatprep.subr.bf16.mxu0 0
        %1936 = vmatpush1.bf16.msra.mxu0 0
        %1937 = vmatprep.subr.bf16.mxu0 0
        %1938 = vmatpush1.bf16.msra.mxu0 0
        %1939 = vmatprep.mubr.bf16.mxu0 0
        %1940 = vmatmul.mubr.bf16.gmra.mrb[0].mxu0 %v1905
        %v1941 = vpop.f32.mrb[0].mxu0
        %v1942 = vadd.f32 0.0, %v1941
        %v1943 = vpop.f32.mrb[0].mxu0
        %v1944 = vpop.f32.mrb[0].mxu0
        %v1945 = vpop.f32.mrb[0].mxu0
        %1946 = vdwg.mxu0
        %v1947 = vadd.f32 %v1127, %v1942
        %v1948 = vmul.f32 %v1947, %v1947
        %v1949 = vsel %vm1132, %v1948, 0.0
        %1950 = vadd.xlane.f32.xlu0 %v1949
        %v1951 = vpop.xlane.xlu0 %1950
        %v1952 = vmul.f32 %v1951, %v1136
        %v1953 = vadd.f32 %v1952, 1e-06
        %v1954 = vrsqrt.pop %v1953
        %v1955 = vmul.f32 %v1947, %v1954
        %v1956 = vld [vmem:[%s930] sm:$0x1]
        %v1958 = vlaneseq
        %v1959 = vshrl.u32 %v1958, 7
        %v1960 = vsub.s32 0, %v1959
        %v1961 = vrot.slane %v1956, %v1960
        %v1963 = vmul.f32 %v1955, %v1961
        %v1964 = vpack.c.bf16 %v1963, %v1963
        %v1965 = vld [vmem:[%s939] sm:$0xf]
        %v1966 = vld [vmem:[%s939 + $0x4] sm:$0xf]
        %v1967 = vld [vmem:[%s939 + $0x8] sm:$0xf]
        %v1968 = vld [vmem:[%s939 + $0xc] sm:$0xf]
        %v1973 = vunpack.c.l.b16 %v1965
        %v1974 = vunpack.c.l.b16 %v1966
        %v1975 = vunpack.c.l.b16 %v1967
        %v1976 = vunpack.c.l.b16 %v1968
        %v1977 = vpack.c.b16 %v1974, %v1973
        %v1978 = vpack.c.b16 %v1976, %v1975
        %v1982 = vsel %vm1132, %v1964, 0
        %1984 = vmatprep.subr.bf16.mxu0 0
        %1985 = vmatpush1.bf16.msra.mxu0 %v1977
        %1986 = vmatprep.subr.bf16.mxu0 0
        %1987 = vmatpush1.bf16.msra.mxu0 %v1978
        %1988 = vmatprep.subr.bf16.mxu0 0
        %1989 = vmatpush1.bf16.msra.mxu0 0
        %1990 = vmatprep.subr.bf16.mxu0 0
        %1991 = vmatpush1.bf16.msra.mxu0 0
        %1992 = vmatprep.subr.bf16.mxu0 0
        %1993 = vmatpush1.bf16.msra.mxu0 0
        %1994 = vmatprep.subr.bf16.mxu0 0
        %1995 = vmatpush1.bf16.msra.mxu0 0
        %1996 = vmatprep.subr.bf16.mxu0 0
        %1997 = vmatpush1.bf16.msra.mxu0 0
        %1998 = vmatprep.subr.bf16.mxu0 0
        %1999 = vmatpush1.bf16.msra.mxu0 0
        %2000 = vmatprep.subr.bf16.mxu0 0
        %2001 = vmatpush1.bf16.msra.mxu0 0
        %2002 = vmatprep.subr.bf16.mxu0 0
        %2003 = vmatpush1.bf16.msra.mxu0 0
        %2004 = vmatprep.subr.bf16.mxu0 0
        %2005 = vmatpush1.bf16.msra.mxu0 0
        %2006 = vmatprep.subr.bf16.mxu0 0
        %2007 = vmatpush1.bf16.msra.mxu0 0
        %2008 = vmatprep.subr.bf16.mxu0 0
        %2009 = vmatpush1.bf16.msra.mxu0 0
        %2010 = vmatprep.subr.bf16.mxu0 0
        %2011 = vmatpush1.bf16.msra.mxu0 0
        %2012 = vmatprep.subr.bf16.mxu0 0
        %2013 = vmatpush1.bf16.msra.mxu0 0
        %2014 = vmatprep.subr.bf16.mxu0 0
        %2015 = vmatpush1.bf16.msra.mxu0 0
        %2016 = vmatprep.mubr.bf16.mxu0 0
        %2017 = vmatmul.mubr.bf16.gmra.mrb[0].mxu0 %v1982
        %v2018 = vpop.f32.mrb[0].mxu0
        %v2019 = vadd.f32 0.0, %v2018
        %v2020 = vpop.f32.mrb[0].mxu0
        %v2021 = vpop.f32.mrb[0].mxu0
        %v2022 = vpop.f32.mrb[0].mxu0
        %2023 = vdwg.mxu0
        %v2024 = vld [vmem:[%s948] sm:$0xf]
        %v2025 = vld [vmem:[%s948 + $0x4] sm:$0xf]
        %v2026 = vld [vmem:[%s948 + $0x8] sm:$0xf]
        %v2027 = vld [vmem:[%s948 + $0xc] sm:$0xf]
        %v2032 = vunpack.c.l.b16 %v2024
        %v2033 = vunpack.c.l.b16 %v2025
        %v2034 = vunpack.c.l.b16 %v2026
        %v2035 = vunpack.c.l.b16 %v2027
        %v2036 = vpack.c.b16 %v2033, %v2032
        %v2037 = vpack.c.b16 %v2035, %v2034
        %v2041 = vsel %vm1132, %v1130, 0
        %2043 = vmatprep.subr.bf16.mxu0 0
        %2044 = vmatpush1.bf16.msra.mxu0 %v2036
        %2045 = vmatprep.subr.bf16.mxu0 0
        %2046 = vmatpush1.bf16.msra.mxu0 %v2037
        %2047 = vmatprep.subr.bf16.mxu0 0
        %2048 = vmatpush1.bf16.msra.mxu0 0
        %2049 = vmatprep.subr.bf16.mxu0 0
        %2050 = vmatpush1.bf16.msra.mxu0 0
        %2051 = vmatprep.subr.bf16.mxu0 0
        %2052 = vmatpush1.bf16.msra.mxu0 0
        %2053 = vmatprep.subr.bf16.mxu0 0
        %2054 = vmatpush1.bf16.msra.mxu0 0
        %2055 = vmatprep.subr.bf16.mxu0 0
        %2056 = vmatpush1.bf16.msra.mxu0 0
        %2057 = vmatprep.subr.bf16.mxu0 0
        %2058 = vmatpush1.bf16.msra.mxu0 0
        %2059 = vmatprep.subr.bf16.mxu0 0
        %2060 = vmatpush1.bf16.msra.mxu0 0
        %2061 = vmatprep.subr.bf16.mxu0 0
        %2062 = vmatpush1.bf16.msra.mxu0 0
        %2063 = vmatprep.subr.bf16.mxu0 0
        %2064 = vmatpush1.bf16.msra.mxu0 0
        %2065 = vmatprep.subr.bf16.mxu0 0
        %2066 = vmatpush1.bf16.msra.mxu0 0
        %2067 = vmatprep.subr.bf16.mxu0 0
        %2068 = vmatpush1.bf16.msra.mxu0 0
        %2069 = vmatprep.subr.bf16.mxu0 0
        %2070 = vmatpush1.bf16.msra.mxu0 0
        %2071 = vmatprep.subr.bf16.mxu0 0
        %2072 = vmatpush1.bf16.msra.mxu0 0
        %2073 = vmatprep.subr.bf16.mxu0 0
        %2074 = vmatpush1.bf16.msra.mxu0 0
        %2075 = vmatprep.mubr.bf16.mxu0 0
        %2076 = vmatmul.mubr.bf16.gmra.mrb[0].mxu0 %v2041
        %v2077 = vpop.f32.mrb[0].mxu0
        %v2078 = vadd.f32 0.0, %v2077
        %v2079 = vpop.f32.mrb[0].mxu0
        %v2080 = vpop.f32.mrb[0].mxu0
        %v2081 = vadd.f32 0.0, %v2080
        %v2082 = vpop.f32.mrb[0].mxu0
        %2083 = vdwg.mxu0
        %2084 = vst.msk [vmem:[%s1111] sm:$0xff] %vm1132, %v2078
        %2085 = vst.msk [vmem:[%s1111 + $0x8] sm:$0xff] %vm1132, %v2081
        %2088 = vrot.lane.b32.xlu0 %v2078, 96
        %v2089 = vpop.permute.xlu0 %2088
        %2090 = vrot.lane.b32.xlu0 %v2081, 96
        %v2091 = vpop.permute.xlu0 %2090
        %2094 = vst.msk [vmem:[%s1118] sm:$0xff] %vm1132, %v2089
        %2095 = vst.msk [vmem:[%s1118 + $0x8] sm:$0xff] %vm1132, %v2091
        %v2096 = vpack.c.bf16 %v2081, %v2078
        %v2097 = vpack.c.bf16 %v2019, %v2019
        %2099 = vrot.lane.b32.xlu0 %v2097, 120
        %v2100 = vpop.permute.xlu0 %2099
        %2101 = vrot.lane.b32.xlu0 %v2097, 112
        %v2102 = vpop.permute.xlu0 %2101
        %2103 = vrot.lane.b32.xlu0 %v2097, 104
        %v2104 = vpop.permute.xlu0 %2103
        %2106 = vrot.lane.b32.xlu0 %v2096, 120
        %v2107 = vpop.permute.xlu0 %2106
        %2109 = vrot.lane.b32.xlu0 %v2096, 112
        %v2110 = vpop.permute.xlu0 %2109
        %2112 = vrot.lane.b32.xlu0 %v2096, 104
        %v2113 = vpop.permute.xlu0 %2112
        %v2115 = vld [vmem:[%s892] sm:$0x1]
        %v2116 = vsub.f32 1.0, %v2115
        %v2117 = vmul.f32 %v2116, -1e+09
        %v2119 = vlaneseq
        %v2120 = vshrl.u32 %v2119, 7
        %v2121 = vsub.s32 0, %v2120
        %v2122 = vrot.slane %v2117, %v2121
        %2124 = vxpose.xlu0.c.b16.start [1/8] %v2096, 128
        %2125 = vxpose.xlu0.c.b16.cont [2/8] 0, 128
        %2126 = vxpose.xlu0.c.b16.cont [3/8] 0, 128
        %2127 = vxpose.xlu0.c.b16.cont [4/8] 0, 128
        %2128 = vxpose.xlu0.c.b16.cont [5/8] 0, 128
        %2129 = vxpose.xlu0.c.b16.cont [6/8] 0, 128
        %2130 = vxpose.xlu0.c.b16.cont [7/8] 0, 128
        %2131 = vxpose.xlu0.c.b16.end [8/8] 0, 128
        %v2132 = vpop.trf.xlu0
        %v2133 = vpop.trf.xlu0
        %v2134 = vpop.trf.xlu0
        %v2135 = vpop.trf.xlu0
        %v2136 = vpop.trf.xlu0
        %v2137 = vpop.trf.xlu0
        %v2138 = vpop.trf.xlu0
        %v2139 = vpop.trf.xlu0
        %2140 = vxpose.xlu0.c.b16.start [1/8] %v2107, 128
        %2141 = vxpose.xlu0.c.b16.cont [2/8] 0, 128
        %2142 = vxpose.xlu0.c.b16.cont [3/8] 0, 128
        %2143 = vxpose.xlu0.c.b16.cont [4/8] 0, 128
        %2144 = vxpose.xlu0.c.b16.cont [5/8] 0, 128
        %2145 = vxpose.xlu0.c.b16.cont [6/8] 0, 128
        %2146 = vxpose.xlu0.c.b16.cont [7/8] 0, 128
        %2147 = vxpose.xlu0.c.b16.end [8/8] 0, 128
        %v2148 = vpop.trf.xlu0
        %v2149 = vpop.trf.xlu0
        %v2150 = vpop.trf.xlu0
        %v2151 = vpop.trf.xlu0
        %v2152 = vpop.trf.xlu0
        %v2153 = vpop.trf.xlu0
        %v2154 = vpop.trf.xlu0
        %v2155 = vpop.trf.xlu0
        %2156 = vxpose.xlu0.c.b16.start [1/8] %v2110, 128
        %2157 = vxpose.xlu0.c.b16.cont [2/8] 0, 128
        %2158 = vxpose.xlu0.c.b16.cont [3/8] 0, 128
        %2159 = vxpose.xlu0.c.b16.cont [4/8] 0, 128
        %2160 = vxpose.xlu0.c.b16.cont [5/8] 0, 128
        %2161 = vxpose.xlu0.c.b16.cont [6/8] 0, 128
        %2162 = vxpose.xlu0.c.b16.cont [7/8] 0, 128
        %2163 = vxpose.xlu0.c.b16.end [8/8] 0, 128
        %v2164 = vpop.trf.xlu0
        %v2165 = vpop.trf.xlu0
        %v2166 = vpop.trf.xlu0
        %v2167 = vpop.trf.xlu0
        %v2168 = vpop.trf.xlu0
        %v2169 = vpop.trf.xlu0
        %v2170 = vpop.trf.xlu0
        %v2171 = vpop.trf.xlu0
        %2172 = vxpose.xlu0.c.b16.start [1/8] %v2113, 128
        %2173 = vxpose.xlu0.c.b16.cont [2/8] 0, 128
        %2174 = vxpose.xlu0.c.b16.cont [3/8] 0, 128
        %2175 = vxpose.xlu0.c.b16.cont [4/8] 0, 128
        %2176 = vxpose.xlu0.c.b16.cont [5/8] 0, 128
        %2177 = vxpose.xlu0.c.b16.cont [6/8] 0, 128
        %2178 = vxpose.xlu0.c.b16.cont [7/8] 0, 128
        %2179 = vxpose.xlu0.c.b16.end [8/8] 0, 128
        %v2180 = vpop.trf.xlu0
        %v2181 = vpop.trf.xlu0
        %v2182 = vpop.trf.xlu0
        %v2183 = vpop.trf.xlu0
        %v2184 = vpop.trf.xlu0
        %v2185 = vpop.trf.xlu0
        %v2186 = vpop.trf.xlu0
        %v2187 = vpop.trf.xlu0
        %v2189 = vsel %vm1308, %v2097, 0
        %v2192 = vsel %vm1312, %v2132, 0
        %2194 = vmatprep.subr.bf16.mxu0 0
        %2195 = vmatpush1.bf16.msra.mxu0 %v2192
        %2196 = vmatprep.subr.bf16.mxu0 0
        %2197 = vmatpush1.bf16.msra.mxu0 0
        %2198 = vmatprep.subr.bf16.mxu0 0
        %2199 = vmatpush1.bf16.msra.mxu0 0
        %2200 = vmatprep.subr.bf16.mxu0 0
        %2201 = vmatpush1.bf16.msra.mxu0 0
        %2202 = vmatprep.subr.bf16.mxu0 0
        %2203 = vmatpush1.bf16.msra.mxu0 0
        %2204 = vmatprep.subr.bf16.mxu0 0
        %2205 = vmatpush1.bf16.msra.mxu0 0
        %2206 = vmatprep.subr.bf16.mxu0 0
        %2207 = vmatpush1.bf16.msra.mxu0 0
        %2208 = vmatprep.subr.bf16.mxu0 0
        %2209 = vmatpush1.bf16.msra.mxu0 0
        %2210 = vmatprep.subr.bf16.mxu0 0
        %2211 = vmatpush1.bf16.msra.mxu0 0
        %2212 = vmatprep.subr.bf16.mxu0 0
        %2213 = vmatpush1.bf16.msra.mxu0 0
        %2214 = vmatprep.subr.bf16.mxu0 0
        %2215 = vmatpush1.bf16.msra.mxu0 0
        %2216 = vmatprep.subr.bf16.mxu0 0
        %2217 = vmatpush1.bf16.msra.mxu0 0
        %2218 = vmatprep.subr.bf16.mxu0 0
        %2219 = vmatpush1.bf16.msra.mxu0 0
        %2220 = vmatprep.subr.bf16.mxu0 0
        %2221 = vmatpush1.bf16.msra.mxu0 0
        %2222 = vmatprep.subr.bf16.mxu0 0
        %2223 = vmatpush1.bf16.msra.mxu0 0
        %2224 = vmatprep.subr.bf16.mxu0 0
        %2225 = vmatpush1.bf16.msra.mxu0 0
        %2226 = vmatprep.mubr.bf16.mxu0 0
        %2227 = vmatmul.mubr.bf16.gmra.mrb[0].mxu0 %v2189
        %v2228 = vpop.f32.mrb[0].mxu0
        %v2229 = vadd.f32 %v2122, %v2228
        %v2230 = vpop.f32.mrb[0].mxu0
        %v2231 = vpop.f32.mrb[0].mxu0
        %v2232 = vpop.f32.mrb[0].mxu0
        %2233 = vdwg.mxu0
        %v2235 = vsel %vm1308, %v2100, 0
        %v2238 = vsel %vm1312, %v2148, 0
        %2240 = vmatprep.subr.bf16.mxu0 0
        %2241 = vmatpush1.bf16.msra.mxu0 %v2238
        %2242 = vmatprep.subr.bf16.mxu0 0
        %2243 = vmatpush1.bf16.msra.mxu0 0
        %2244 = vmatprep.subr.bf16.mxu0 0
        %2245 = vmatpush1.bf16.msra.mxu0 0
        %2246 = vmatprep.subr.bf16.mxu0 0
        %2247 = vmatpush1.bf16.msra.mxu0 0
        %2248 = vmatprep.subr.bf16.mxu0 0
        %2249 = vmatpush1.bf16.msra.mxu0 0
        %2250 = vmatprep.subr.bf16.mxu0 0
        %2251 = vmatpush1.bf16.msra.mxu0 0
        %2252 = vmatprep.subr.bf16.mxu0 0
        %2253 = vmatpush1.bf16.msra.mxu0 0
        %2254 = vmatprep.subr.bf16.mxu0 0
        %2255 = vmatpush1.bf16.msra.mxu0 0
        %2256 = vmatprep.subr.bf16.mxu0 0
        %2257 = vmatpush1.bf16.msra.mxu0 0
        %2258 = vmatprep.subr.bf16.mxu0 0
        %2259 = vmatpush1.bf16.msra.mxu0 0
        %2260 = vmatprep.subr.bf16.mxu0 0
        %2261 = vmatpush1.bf16.msra.mxu0 0
        %2262 = vmatprep.subr.bf16.mxu0 0
        %2263 = vmatpush1.bf16.msra.mxu0 0
        %2264 = vmatprep.subr.bf16.mxu0 0
        %2265 = vmatpush1.bf16.msra.mxu0 0
        %2266 = vmatprep.subr.bf16.mxu0 0
        %2267 = vmatpush1.bf16.msra.mxu0 0
        %2268 = vmatprep.subr.bf16.mxu0 0
        %2269 = vmatpush1.bf16.msra.mxu0 0
        %2270 = vmatprep.subr.bf16.mxu0 0
        %2271 = vmatpush1.bf16.msra.mxu0 0
        %2272 = vmatprep.mubr.bf16.mxu0 0
        %2273 = vmatmul.mubr.bf16.gmra.mrb[0].mxu0 %v2235
        %v2274 = vpop.f32.mrb[0].mxu0
        %v2275 = vadd.f32 %v2122, %v2274
        %v2276 = vpop.f32.mrb[0].mxu0
        %v2277 = vpop.f32.mrb[0].mxu0
        %v2278 = vpop.f32.mrb[0].mxu0
        %2279 = vdwg.mxu0
        %v2281 = vsel %vm1308, %v2102, 0
        %v2284 = vsel %vm1312, %v2164, 0
        %2286 = vmatprep.subr.bf16.mxu0 0
        %2287 = vmatpush1.bf16.msra.mxu0 %v2284
        %2288 = vmatprep.subr.bf16.mxu0 0
        %2289 = vmatpush1.bf16.msra.mxu0 0
        %2290 = vmatprep.subr.bf16.mxu0 0
        %2291 = vmatpush1.bf16.msra.mxu0 0
        %2292 = vmatprep.subr.bf16.mxu0 0
        %2293 = vmatpush1.bf16.msra.mxu0 0
        %2294 = vmatprep.subr.bf16.mxu0 0
        %2295 = vmatpush1.bf16.msra.mxu0 0
        %2296 = vmatprep.subr.bf16.mxu0 0
        %2297 = vmatpush1.bf16.msra.mxu0 0
        %2298 = vmatprep.subr.bf16.mxu0 0
        %2299 = vmatpush1.bf16.msra.mxu0 0
        %2300 = vmatprep.subr.bf16.mxu0 0
        %2301 = vmatpush1.bf16.msra.mxu0 0
        %2302 = vmatprep.subr.bf16.mxu0 0
        %2303 = vmatpush1.bf16.msra.mxu0 0
        %2304 = vmatprep.subr.bf16.mxu0 0
        %2305 = vmatpush1.bf16.msra.mxu0 0
        %2306 = vmatprep.subr.bf16.mxu0 0
        %2307 = vmatpush1.bf16.msra.mxu0 0
        %2308 = vmatprep.subr.bf16.mxu0 0
        %2309 = vmatpush1.bf16.msra.mxu0 0
        %2310 = vmatprep.subr.bf16.mxu0 0
        %2311 = vmatpush1.bf16.msra.mxu0 0
        %2312 = vmatprep.subr.bf16.mxu0 0
        %2313 = vmatpush1.bf16.msra.mxu0 0
        %2314 = vmatprep.subr.bf16.mxu0 0
        %2315 = vmatpush1.bf16.msra.mxu0 0
        %2316 = vmatprep.subr.bf16.mxu0 0
        %2317 = vmatpush1.bf16.msra.mxu0 0
        %2318 = vmatprep.mubr.bf16.mxu0 0
        %2319 = vmatmul.mubr.bf16.gmra.mrb[0].mxu0 %v2281
        %v2320 = vpop.f32.mrb[0].mxu0
        %v2321 = vadd.f32 %v2122, %v2320
        %v2322 = vpop.f32.mrb[0].mxu0
        %v2323 = vpop.f32.mrb[0].mxu0
        %v2324 = vpop.f32.mrb[0].mxu0
        %2325 = vdwg.mxu0
        %v2327 = vsel %vm1308, %v2104, 0
        %v2330 = vsel %vm1312, %v2180, 0
        %2332 = vmatprep.subr.bf16.mxu0 0
        %2333 = vmatpush1.bf16.msra.mxu0 %v2330
        %2334 = vmatprep.subr.bf16.mxu0 0
        %2335 = vmatpush1.bf16.msra.mxu0 0
        %2336 = vmatprep.subr.bf16.mxu0 0
        %2337 = vmatpush1.bf16.msra.mxu0 0
        %2338 = vmatprep.subr.bf16.mxu0 0
        %2339 = vmatpush1.bf16.msra.mxu0 0
        %2340 = vmatprep.subr.bf16.mxu0 0
        %2341 = vmatpush1.bf16.msra.mxu0 0
        %2342 = vmatprep.subr.bf16.mxu0 0
        %2343 = vmatpush1.bf16.msra.mxu0 0
        %2344 = vmatprep.subr.bf16.mxu0 0
        %2345 = vmatpush1.bf16.msra.mxu0 0
        %2346 = vmatprep.subr.bf16.mxu0 0
        %2347 = vmatpush1.bf16.msra.mxu0 0
        %2348 = vmatprep.subr.bf16.mxu0 0
        %2349 = vmatpush1.bf16.msra.mxu0 0
        %2350 = vmatprep.subr.bf16.mxu0 0
        %2351 = vmatpush1.bf16.msra.mxu0 0
        %2352 = vmatprep.subr.bf16.mxu0 0
        %2353 = vmatpush1.bf16.msra.mxu0 0
        %2354 = vmatprep.subr.bf16.mxu0 0
        %2355 = vmatpush1.bf16.msra.mxu0 0
        %2356 = vmatprep.subr.bf16.mxu0 0
        %2357 = vmatpush1.bf16.msra.mxu0 0
        %2358 = vmatprep.subr.bf16.mxu0 0
        %2359 = vmatpush1.bf16.msra.mxu0 0
        %2360 = vmatprep.subr.bf16.mxu0 0
        %2361 = vmatpush1.bf16.msra.mxu0 0
        %2362 = vmatprep.subr.bf16.mxu0 0
        %2363 = vmatpush1.bf16.msra.mxu0 0
        %2364 = vmatprep.mubr.bf16.mxu0 0
        %2365 = vmatmul.mubr.bf16.gmra.mrb[0].mxu0 %v2327
        %v2366 = vpop.f32.mrb[0].mxu0
        %v2367 = vadd.f32 %v2122, %v2366
        %v2368 = vpop.f32.mrb[0].mxu0
        %v2369 = vpop.f32.mrb[0].mxu0
        %v2370 = vpop.f32.mrb[0].mxu0
        %2371 = vdwg.mxu0
        %v2372 = vsel %vm1883, %v2229, -inf
        %2373 = vmax.xlane.f32.xlu0 %v2372
        %v2374 = vpop.xlane.xlu0 %2373
        %v2375 = vsel %vm1883, %v2275, -inf
        %2376 = vmax.xlane.f32.xlu0 %v2375
        %v2377 = vpop.xlane.xlu0 %2376
        %v2378 = vsel %vm1883, %v2321, -inf
        %2379 = vmax.xlane.f32.xlu0 %v2378
        %v2380 = vpop.xlane.xlu0 %2379
        %v2381 = vsel %vm1883, %v2367, -inf
        %2382 = vmax.xlane.f32.xlu0 %v2381
        %v2383 = vpop.xlane.xlu0 %2382
        %v2384 = vsub.f32 %v2229, %v2374
        %v2385 = vsub.f32 %v2275, %v2377
        %v2386 = vsub.f32 %v2321, %v2380
        %v2387 = vsub.f32 %v2367, %v2383
        %v2388 = vmul.f32 %v2384, 1.442695
        %v2389 = vpow.pop %v2388
        %v2390 = vmul.f32 %v2385, 1.442695
        %v2391 = vpow.pop %v2390
        %v2392 = vmul.f32 %v2386, 1.442695
        %v2393 = vpow.pop %v2392
        %v2394 = vmul.f32 %v2387, 1.442695
        %v2395 = vpow.pop %v2394
        %v2396 = vsel %vm1883, %v2389, 0.0
        %2397 = vadd.xlane.f32.xlu0 %v2396
        %v2398 = vpop.xlane.xlu0 %2397
        %v2399 = vsel %vm1883, %v2391, 0.0
        %2400 = vadd.xlane.f32.xlu0 %v2399
        %v2401 = vpop.xlane.xlu0 %2400
        %v2402 = vsel %vm1883, %v2393, 0.0
        %2403 = vadd.xlane.f32.xlu0 %v2402
        %v2404 = vpop.xlane.xlu0 %2403
        %v2405 = vsel %vm1883, %v2395, 0.0
        %2406 = vadd.xlane.f32.xlu0 %v2405
        %v2407 = vpop.xlane.xlu0 %2406
        %v2408 = vrcp.pop %v2398
        %v2409 = vrcp.pop %v2401
        %v2410 = vrcp.pop %v2404
        %v2411 = vrcp.pop %v2407
        %v2412 = vmul.f32 %v2389, %v2408
        %v2413 = vmul.f32 %v2391, %v2409
        %v2414 = vmul.f32 %v2393, %v2410
        %v2415 = vmul.f32 %v2395, %v2411
        %v2416 = vpack.c.bf16 %v2412, %v2412
        %v2417 = vpack.c.bf16 %v2413, %v2413
        %v2418 = vpack.c.bf16 %v2414, %v2414
        %v2419 = vpack.c.bf16 %v2415, %v2415
        %2420 = vrot.lane.b32.xlu0 %v2096, 96
        %v2421 = vpop.permute.xlu0 %2420
        %v2424 = vsel %vm1883, %v2416, 0
        %2426 = vmatprep.subr.bf16.mxu0 0
        %2427 = vmatpush1.bf16.msra.mxu0 %v2421
        %2428 = vmatprep.subr.bf16.mxu0 0
        %2429 = vmatpush1.bf16.msra.mxu0 0
        %2430 = vmatprep.subr.bf16.mxu0 0
        %2431 = vmatpush1.bf16.msra.mxu0 0
        %2432 = vmatprep.subr.bf16.mxu0 0
        %2433 = vmatpush1.bf16.msra.mxu0 0
        %2434 = vmatprep.subr.bf16.mxu0 0
        %2435 = vmatpush1.bf16.msra.mxu0 0
        %2436 = vmatprep.subr.bf16.mxu0 0
        %2437 = vmatpush1.bf16.msra.mxu0 0
        %2438 = vmatprep.subr.bf16.mxu0 0
        %2439 = vmatpush1.bf16.msra.mxu0 0
        %2440 = vmatprep.subr.bf16.mxu0 0
        %2441 = vmatpush1.bf16.msra.mxu0 0
        %2442 = vmatprep.subr.bf16.mxu0 0
        %2443 = vmatpush1.bf16.msra.mxu0 0
        %2444 = vmatprep.subr.bf16.mxu0 0
        %2445 = vmatpush1.bf16.msra.mxu0 0
        %2446 = vmatprep.subr.bf16.mxu0 0
        %2447 = vmatpush1.bf16.msra.mxu0 0
        %2448 = vmatprep.subr.bf16.mxu0 0
        %2449 = vmatpush1.bf16.msra.mxu0 0
        %2450 = vmatprep.subr.bf16.mxu0 0
        %2451 = vmatpush1.bf16.msra.mxu0 0
        %2452 = vmatprep.subr.bf16.mxu0 0
        %2453 = vmatpush1.bf16.msra.mxu0 0
        %2454 = vmatprep.subr.bf16.mxu0 0
        %2455 = vmatpush1.bf16.msra.mxu0 0
        %2456 = vmatprep.subr.bf16.mxu0 0
        %2457 = vmatpush1.bf16.msra.mxu0 0
        %2458 = vmatprep.mubr.bf16.mxu0 0
        %2459 = vmatmul.mubr.bf16.gmra.mrb[0].mxu0 %v2424
        %v2460 = vpop.f32.mrb[0].mxu0
        %v2461 = vadd.f32 0.0, %v2460
        %v2462 = vpop.f32.mrb[0].mxu0
        %v2463 = vpop.f32.mrb[0].mxu0
        %v2464 = vpop.f32.mrb[0].mxu0
        %2465 = vdwg.mxu0
        %2466 = vrot.lane.b32.xlu0 %v2107, 96
        %v2467 = vpop.permute.xlu0 %2466
        %v2470 = vsel %vm1883, %v2417, 0
        %2472 = vmatprep.subr.bf16.mxu0 0
        %2473 = vmatpush1.bf16.msra.mxu0 %v2467
        %2474 = vmatprep.subr.bf16.mxu0 0
        %2475 = vmatpush1.bf16.msra.mxu0 0
        %2476 = vmatprep.subr.bf16.mxu0 0
        %2477 = vmatpush1.bf16.msra.mxu0 0
        %2478 = vmatprep.subr.bf16.mxu0 0
        %2479 = vmatpush1.bf16.msra.mxu0 0
        %2480 = vmatprep.subr.bf16.mxu0 0
        %2481 = vmatpush1.bf16.msra.mxu0 0
        %2482 = vmatprep.subr.bf16.mxu0 0
        %2483 = vmatpush1.bf16.msra.mxu0 0
        %2484 = vmatprep.subr.bf16.mxu0 0
        %2485 = vmatpush1.bf16.msra.mxu0 0
        %2486 = vmatprep.subr.bf16.mxu0 0
        %2487 = vmatpush1.bf16.msra.mxu0 0
        %2488 = vmatprep.subr.bf16.mxu0 0
        %2489 = vmatpush1.bf16.msra.mxu0 0
        %2490 = vmatprep.subr.bf16.mxu0 0
        %2491 = vmatpush1.bf16.msra.mxu0 0
        %2492 = vmatprep.subr.bf16.mxu0 0
        %2493 = vmatpush1.bf16.msra.mxu0 0
        %2494 = vmatprep.subr.bf16.mxu0 0
        %2495 = vmatpush1.bf16.msra.mxu0 0
        %2496 = vmatprep.subr.bf16.mxu0 0
        %2497 = vmatpush1.bf16.msra.mxu0 0
        %2498 = vmatprep.subr.bf16.mxu0 0
        %2499 = vmatpush1.bf16.msra.mxu0 0
        %2500 = vmatprep.subr.bf16.mxu0 0
        %2501 = vmatpush1.bf16.msra.mxu0 0
        %2502 = vmatprep.subr.bf16.mxu0 0
        %2503 = vmatpush1.bf16.msra.mxu0 0
        %2504 = vmatprep.mubr.bf16.mxu0 0
        %2505 = vmatmul.mubr.bf16.gmra.mrb[0].mxu0 %v2470
        %v2506 = vpop.f32.mrb[0].mxu0
        %v2507 = vadd.f32 0.0, %v2506
        %v2508 = vpop.f32.mrb[0].mxu0
        %v2509 = vpop.f32.mrb[0].mxu0
        %v2510 = vpop.f32.mrb[0].mxu0
        %2511 = vdwg.mxu0
        %2512 = vrot.lane.b32.xlu0 %v2110, 96
        %v2513 = vpop.permute.xlu0 %2512
        %v2516 = vsel %vm1883, %v2418, 0
        %2518 = vmatprep.subr.bf16.mxu0 0
        %2519 = vmatpush1.bf16.msra.mxu0 %v2513
        %2520 = vmatprep.subr.bf16.mxu0 0
        %2521 = vmatpush1.bf16.msra.mxu0 0
        %2522 = vmatprep.subr.bf16.mxu0 0
        %2523 = vmatpush1.bf16.msra.mxu0 0
        %2524 = vmatprep.subr.bf16.mxu0 0
        %2525 = vmatpush1.bf16.msra.mxu0 0
        %2526 = vmatprep.subr.bf16.mxu0 0
        %2527 = vmatpush1.bf16.msra.mxu0 0
        %2528 = vmatprep.subr.bf16.mxu0 0
        %2529 = vmatpush1.bf16.msra.mxu0 0
        %2530 = vmatprep.subr.bf16.mxu0 0
        %2531 = vmatpush1.bf16.msra.mxu0 0
        %2532 = vmatprep.subr.bf16.mxu0 0
        %2533 = vmatpush1.bf16.msra.mxu0 0
        %2534 = vmatprep.subr.bf16.mxu0 0
        %2535 = vmatpush1.bf16.msra.mxu0 0
        %2536 = vmatprep.subr.bf16.mxu0 0
        %2537 = vmatpush1.bf16.msra.mxu0 0
        %2538 = vmatprep.subr.bf16.mxu0 0
        %2539 = vmatpush1.bf16.msra.mxu0 0
        %2540 = vmatprep.subr.bf16.mxu0 0
        %2541 = vmatpush1.bf16.msra.mxu0 0
        %2542 = vmatprep.subr.bf16.mxu0 0
        %2543 = vmatpush1.bf16.msra.mxu0 0
        %2544 = vmatprep.subr.bf16.mxu0 0
        %2545 = vmatpush1.bf16.msra.mxu0 0
        %2546 = vmatprep.subr.bf16.mxu0 0
        %2547 = vmatpush1.bf16.msra.mxu0 0
        %2548 = vmatprep.subr.bf16.mxu0 0
        %2549 = vmatpush1.bf16.msra.mxu0 0
        %2550 = vmatprep.mubr.bf16.mxu0 0
        %2551 = vmatmul.mubr.bf16.gmra.mrb[0].mxu0 %v2516
        %v2552 = vpop.f32.mrb[0].mxu0
        %v2553 = vadd.f32 0.0, %v2552
        %v2554 = vpop.f32.mrb[0].mxu0
        %v2555 = vpop.f32.mrb[0].mxu0
        %v2556 = vpop.f32.mrb[0].mxu0
        %2557 = vdwg.mxu0
        %2558 = vrot.lane.b32.xlu0 %v2113, 96
        %v2559 = vpop.permute.xlu0 %2558
        %v2562 = vsel %vm1883, %v2419, 0
        %2564 = vmatprep.subr.bf16.mxu0 0
        %2565 = vmatpush1.bf16.msra.mxu0 %v2559
        %2566 = vmatprep.subr.bf16.mxu0 0
        %2567 = vmatpush1.bf16.msra.mxu0 0
        %2568 = vmatprep.subr.bf16.mxu0 0
        %2569 = vmatpush1.bf16.msra.mxu0 0
        %2570 = vmatprep.subr.bf16.mxu0 0
        %2571 = vmatpush1.bf16.msra.mxu0 0
        %2572 = vmatprep.subr.bf16.mxu0 0
        %2573 = vmatpush1.bf16.msra.mxu0 0
        %2574 = vmatprep.subr.bf16.mxu0 0
        %2575 = vmatpush1.bf16.msra.mxu0 0
        %2576 = vmatprep.subr.bf16.mxu0 0
        %2577 = vmatpush1.bf16.msra.mxu0 0
        %2578 = vmatprep.subr.bf16.mxu0 0
        %2579 = vmatpush1.bf16.msra.mxu0 0
        %2580 = vmatprep.subr.bf16.mxu0 0
        %2581 = vmatpush1.bf16.msra.mxu0 0
        %2582 = vmatprep.subr.bf16.mxu0 0
        %2583 = vmatpush1.bf16.msra.mxu0 0
        %2584 = vmatprep.subr.bf16.mxu0 0
        %2585 = vmatpush1.bf16.msra.mxu0 0
        %2586 = vmatprep.subr.bf16.mxu0 0
        %2587 = vmatpush1.bf16.msra.mxu0 0
        %2588 = vmatprep.subr.bf16.mxu0 0
        %2589 = vmatpush1.bf16.msra.mxu0 0
        %2590 = vmatprep.subr.bf16.mxu0 0
        %2591 = vmatpush1.bf16.msra.mxu0 0
        %2592 = vmatprep.subr.bf16.mxu0 0
        %2593 = vmatpush1.bf16.msra.mxu0 0
        %2594 = vmatprep.subr.bf16.mxu0 0
        %2595 = vmatpush1.bf16.msra.mxu0 0
        %2596 = vmatprep.mubr.bf16.mxu0 0
        %2597 = vmatmul.mubr.bf16.gmra.mrb[0].mxu0 %v2562
        %v2598 = vpop.f32.mrb[0].mxu0
        %v2599 = vadd.f32 0.0, %v2598
        %v2600 = vpop.f32.mrb[0].mxu0
        %v2601 = vpop.f32.mrb[0].mxu0
        %v2602 = vpop.f32.mrb[0].mxu0
        %2603 = vdwg.mxu0
        %v2604 = vcombine.low %v2461, %v2553
        %v2605 = vcombine.high %v2461, %v2553
        %v2607 = vunpack.c.l.s4 1983009808
        %v2608 = vunpack.c.0.s8 %v2607
        %v2609 = vlaneseq
        %v2610 = vshrl.u32 %v2609, 7
        %v2611 = vsub.s32 %v2608, %v2610
        %v2612 = vrot.slane %v2604, %v2611
        %v2614 = vunpack.c.l.s4 1983009808
        %v2615 = vunpack.c.0.s8 %v2614
        %v2616 = vlaneseq
        %v2617 = vshrl.u32 %v2616, 7
        %v2618 = vsub.s32 %v2615, %v2617
        %v2619 = vrot.slane %v2605, %v2618
        %v2620 = vcombine.low %v2507, %v2599
        %v2621 = vcombine.high %v2507, %v2599
        %v2623 = vunpack.c.l.s4 1983009808
        %v2624 = vunpack.c.0.s8 %v2623
        %v2625 = vlaneseq
        %v2626 = vshrl.u32 %v2625, 7
        %v2627 = vsub.s32 %v2624, %v2626
        %v2628 = vrot.slane %v2620, %v2627
        %v2630 = vunpack.c.l.s4 1983009808
        %v2631 = vunpack.c.0.s8 %v2630
        %v2632 = vlaneseq
        %v2633 = vshrl.u32 %v2632, 7
        %v2634 = vsub.s32 %v2631, %v2633
        %v2635 = vrot.slane %v2621, %v2634
        %v2636 = vcombine.low %v2612, %v2628
        %v2637 = vcombine.high %v2612, %v2628
        %v2639 = vunpack.c.l.s4 1934713408
        %v2640 = vunpack.c.0.s8 %v2639
        %v2641 = vlaneseq
        %v2642 = vshrl.u32 %v2641, 7
        %v2643 = vsub.s32 %v2640, %v2642
        %v2644 = vrot.slane %v2636, %v2643
        %v2646 = vunpack.c.l.s4 1934713408
        %v2647 = vunpack.c.0.s8 %v2646
        %v2648 = vlaneseq
        %v2649 = vshrl.u32 %v2648, 7
        %v2650 = vsub.s32 %v2647, %v2649
        %v2651 = vrot.slane %v2637, %v2650
        %v2652 = vcombine.low %v2619, %v2635
        %v2653 = vcombine.high %v2619, %v2635
        %v2655 = vunpack.c.l.s4 1934713408
        %v2656 = vunpack.c.0.s8 %v2655
        %v2657 = vlaneseq
        %v2658 = vshrl.u32 %v2657, 7
        %v2659 = vsub.s32 %v2656, %v2658
        %v2660 = vrot.slane %v2652, %v2659
        %v2662 = vunpack.c.l.s4 1934713408
        %v2663 = vunpack.c.0.s8 %v2662
        %v2664 = vlaneseq
        %v2665 = vshrl.u32 %v2664, 7
        %v2666 = vsub.s32 %v2663, %v2665
        %v2667 = vrot.slane %v2653, %v2666
        %v2668 = vcombine.high %v2644, 0.0
        %v2669 = vcombine.high %v2651, 0.0
        %v2670 = vcombine.high %v2660, 0.0
        %v2671 = vcombine.high %v2667, 0.0
        %v2672 = vcombine.low %v2644, %v2651
        %v2674 = vunpack.c.l.s4 1983009808
        %v2675 = vunpack.c.0.s8 %v2674
        %v2676 = vlaneseq
        %v2677 = vshrl.u32 %v2676, 7
        %v2678 = vsub.s32 %v2675, %v2677
        %v2679 = vrot.slane %v2672, %v2678
        %v2680 = vcombine.low %v2668, %v2669
        %v2682 = vunpack.c.l.s4 1983009808
        %v2683 = vunpack.c.0.s8 %v2682
        %v2684 = vlaneseq
        %v2685 = vshrl.u32 %v2684, 7
        %v2686 = vsub.s32 %v2683, %v2685
        %v2687 = vrot.slane %v2680, %v2686
        %v2688 = vcombine.low %v2660, %v2667
        %v2690 = vunpack.c.l.s4 1983009808
        %v2691 = vunpack.c.0.s8 %v2690
        %v2692 = vlaneseq
        %v2693 = vshrl.u32 %v2692, 7
        %v2694 = vsub.s32 %v2691, %v2693
        %v2695 = vrot.slane %v2688, %v2694
        %v2696 = vcombine.low %v2670, %v2671
        %v2698 = vunpack.c.l.s4 1983009808
        %v2699 = vunpack.c.0.s8 %v2698
        %v2700 = vlaneseq
        %v2701 = vshrl.u32 %v2700, 7
        %v2702 = vsub.s32 %v2699, %v2701
        %v2703 = vrot.slane %v2696, %v2702
        %v2704 = vcombine.low %v2679, %v2687
        %v2705 = vcombine.high %v2679, %v2687
        %v2707 = vunpack.c.l.s4 1934713408
        %v2708 = vunpack.c.0.s8 %v2707
        %v2709 = vlaneseq
        %v2710 = vshrl.u32 %v2709, 7
        %v2711 = vsub.s32 %v2708, %v2710
        %v2712 = vrot.slane %v2704, %v2711
        %v2714 = vunpack.c.l.s4 1934713408
        %v2715 = vunpack.c.0.s8 %v2714
        %v2716 = vlaneseq
        %v2717 = vshrl.u32 %v2716, 7
        %v2718 = vsub.s32 %v2715, %v2717
        %v2719 = vrot.slane %v2705, %v2718
        %v2720 = vcombine.low %v2695, %v2703
        %v2721 = vcombine.high %v2695, %v2703
        %v2723 = vunpack.c.l.s4 1934713408
        %v2724 = vunpack.c.0.s8 %v2723
        %v2725 = vlaneseq
        %v2726 = vshrl.u32 %v2725, 7
        %v2727 = vsub.s32 %v2724, %v2726
        %v2728 = vrot.slane %v2720, %v2727
        %v2730 = vunpack.c.l.s4 1934713408
        %v2731 = vunpack.c.0.s8 %v2730
        %v2732 = vlaneseq
        %v2733 = vshrl.u32 %v2732, 7
        %v2734 = vsub.s32 %v2731, %v2733
        %v2735 = vrot.slane %v2721, %v2734
        %v2736 = vcombine.low %v2712, %v2728
        %v2737 = vcombine.high %v2712, %v2728
        %v2738 = vcombine.low %v2719, %v2735
        %v2739 = vcombine.high %v2719, %v2735
        %2741 = vrot.lane.b32.xlu0 %v2737, 8
        %v2742 = vpop.permute.xlu0 %2741
        %2745 = vrot.lane.b32.xlu0 %v2738, 16
        %v2746 = vpop.permute.xlu0 %2745
        %2749 = vrot.lane.b32.xlu0 %v2739, 24
        %v2750 = vpop.permute.xlu0 %2749
        %v2752 = vsel %vm1308, %v2736, %v2742
        %v2753 = vsel %vm1883, %v2752, %v2746
        %v2754 = vsel %vm1885, %v2753, %v2750
        %v2755 = vpack.c.bf16 %v2754, %v2754
        %v2756 = vld [vmem:[%s957] sm:$0xf]
        %v2757 = vld [vmem:[%s957 + $0x4] sm:$0xf]
        %v2758 = vld [vmem:[%s957 + $0x8] sm:$0xf]
        %v2759 = vld [vmem:[%s957 + $0xc] sm:$0xf]
        %v2764 = vunpack.c.l.b16 %v2756
        %v2765 = vunpack.c.l.b16 %v2757
        %v2766 = vunpack.c.l.b16 %v2758
        %v2767 = vunpack.c.l.b16 %v2759
        %v2768 = vpack.c.b16 %v2765, %v2764
        %v2769 = vpack.c.b16 %v2767, %v2766
        %v2773 = vsel %vm1132, %v2755, 0
        %2775 = vmatprep.subr.bf16.mxu0 0
        %2776 = vmatpush1.bf16.msra.mxu0 %v2768
        %2777 = vmatprep.subr.bf16.mxu0 0
        %2778 = vmatpush1.bf16.msra.mxu0 %v2769
        %2779 = vmatprep.subr.bf16.mxu0 0
        %2780 = vmatpush1.bf16.msra.mxu0 0
        %2781 = vmatprep.subr.bf16.mxu0 0
        %2782 = vmatpush1.bf16.msra.mxu0 0
        %2783 = vmatprep.subr.bf16.mxu0 0
        %2784 = vmatpush1.bf16.msra.mxu0 0
        %2785 = vmatprep.subr.bf16.mxu0 0
        %2786 = vmatpush1.bf16.msra.mxu0 0
        %2787 = vmatprep.subr.bf16.mxu0 0
        %2788 = vmatpush1.bf16.msra.mxu0 0
        %2789 = vmatprep.subr.bf16.mxu0 0
        %2790 = vmatpush1.bf16.msra.mxu0 0
        %2791 = vmatprep.subr.bf16.mxu0 0
        %2792 = vmatpush1.bf16.msra.mxu0 0
        %2793 = vmatprep.subr.bf16.mxu0 0
        %2794 = vmatpush1.bf16.msra.mxu0 0
        %2795 = vmatprep.subr.bf16.mxu0 0
        %2796 = vmatpush1.bf16.msra.mxu0 0
        %2797 = vmatprep.subr.bf16.mxu0 0
        %2798 = vmatpush1.bf16.msra.mxu0 0
        %2799 = vmatprep.subr.bf16.mxu0 0
        %2800 = vmatpush1.bf16.msra.mxu0 0
        %2801 = vmatprep.subr.bf16.mxu0 0
        %2802 = vmatpush1.bf16.msra.mxu0 0
        %2803 = vmatprep.subr.bf16.mxu0 0
        %2804 = vmatpush1.bf16.msra.mxu0 0
        %2805 = vmatprep.subr.bf16.mxu0 0
        %2806 = vmatpush1.bf16.msra.mxu0 0
        %2807 = vmatprep.mubr.bf16.mxu0 0
        %2808 = vmatmul.mubr.bf16.gmra.mrb[0].mxu0 %v2773
        %v2809 = vpop.f32.mrb[0].mxu0
        %v2810 = vadd.f32 0.0, %v2809
        %v2811 = vpop.f32.mrb[0].mxu0
        %v2812 = vpop.f32.mrb[0].mxu0
        %v2813 = vpop.f32.mrb[0].mxu0
        %2814 = vdwg.mxu0
        %v2815 = vadd.f32 %v1947, %v2810
        %v2816 = vmul.f32 %v2815, %v2815
        %v2817 = vsel %vm1132, %v2816, 0.0
        %2818 = vadd.xlane.f32.xlu0 %v2817
        %v2819 = vpop.xlane.xlu0 %2818
        %v2820 = vmul.f32 %v2819, %v1136
        %v2821 = vadd.f32 %v2820, 1e-06
        %v2822 = vrsqrt.pop %v2821
        %v2823 = vmul.f32 %v2815, %v2822
        %v2824 = vld [vmem:[%s965] sm:$0x1]
        %v2826 = vlaneseq
        %v2827 = vshrl.u32 %v2826, 7
        %v2828 = vsub.s32 0, %v2827
        %v2829 = vrot.slane %v2824, %v2828
        %v2831 = vmul.f32 %v2823, %v2829
        %v2832 = vpack.c.bf16 %v2831, %v2831
        %v2833 = vld [vmem:[%s974] sm:$0xf]
        %v2834 = vld [vmem:[%s974 + $0x4] sm:$0xf]
        %v2835 = vld [vmem:[%s974 + $0x8] sm:$0xf]
        %v2836 = vld [vmem:[%s974 + $0xc] sm:$0xf]
        %v2841 = vunpack.c.l.b16 %v2833
        %v2842 = vunpack.c.l.b16 %v2834
        %v2843 = vunpack.c.l.b16 %v2835
        %v2844 = vunpack.c.l.b16 %v2836
        %v2845 = vpack.c.b16 %v2842, %v2841
        %v2846 = vpack.c.b16 %v2844, %v2843
        %v2850 = vsel %vm1132, %v2832, 0
        %2852 = vmatprep.subr.bf16.mxu0 0
        %2853 = vmatpush1.bf16.msra.mxu0 %v2845
        %2854 = vmatprep.subr.bf16.mxu0 0
        %2855 = vmatpush1.bf16.msra.mxu0 %v2846
        %2856 = vmatprep.subr.bf16.mxu0 0
        %2857 = vmatpush1.bf16.msra.mxu0 0
        %2858 = vmatprep.subr.bf16.mxu0 0
        %2859 = vmatpush1.bf16.msra.mxu0 0
        %2860 = vmatprep.subr.bf16.mxu0 0
        %2861 = vmatpush1.bf16.msra.mxu0 0
        %2862 = vmatprep.subr.bf16.mxu0 0
        %2863 = vmatpush1.bf16.msra.mxu0 0
        %2864 = vmatprep.subr.bf16.mxu0 0
        %2865 = vmatpush1.bf16.msra.mxu0 0
        %2866 = vmatprep.subr.bf16.mxu0 0
        %2867 = vmatpush1.bf16.msra.mxu0 0
        %2868 = vmatprep.subr.bf16.mxu0 0
        %2869 = vmatpush1.bf16.msra.mxu0 0
        %2870 = vmatprep.subr.bf16.mxu0 0
        %2871 = vmatpush1.bf16.msra.mxu0 0
        %2872 = vmatprep.subr.bf16.mxu0 0
        %2873 = vmatpush1.bf16.msra.mxu0 0
        %2874 = vmatprep.subr.bf16.mxu0 0
        %2875 = vmatpush1.bf16.msra.mxu0 0
        %2876 = vmatprep.subr.bf16.mxu0 0
        %2877 = vmatpush1.bf16.msra.mxu0 0
        %2878 = vmatprep.subr.bf16.mxu0 0
        %2879 = vmatpush1.bf16.msra.mxu0 0
        %2880 = vmatprep.subr.bf16.mxu0 0
        %2881 = vmatpush1.bf16.msra.mxu0 0
        %2882 = vmatprep.subr.bf16.mxu0 0
        %2883 = vmatpush1.bf16.msra.mxu0 0
        %2884 = vmatprep.mubr.bf16.mxu0 0
        %2885 = vmatmul.mubr.bf16.gmra.mrb[0].mxu0 %v2850
        %v2886 = vpop.f32.mrb[0].mxu0
        %v2887 = vadd.f32 0.0, %v2886
        %v2888 = vpop.f32.mrb[0].mxu0
        %v2889 = vpop.f32.mrb[0].mxu0
        %v2890 = vpop.f32.mrb[0].mxu0
        %2891 = vdwg.mxu0
        %v2892 = vmax.f32 %v2887, 0.0
        %v2893 = vpack.c.bf16 %v2892, %v2892
        %v2894 = vld [vmem:[%s983] sm:$0xf]
        %v2895 = vld [vmem:[%s983 + $0x4] sm:$0xf]
        %v2896 = vld [vmem:[%s983 + $0x8] sm:$0xf]
        %v2897 = vld [vmem:[%s983 + $0xc] sm:$0xf]
        %v2898 = vld [vmem:[%s983 + $0x10] sm:$0xf]
        %v2899 = vld [vmem:[%s983 + $0x14] sm:$0xf]
        %v2900 = vld [vmem:[%s983 + $0x18] sm:$0xf]
        %v2901 = vld [vmem:[%s983 + $0x1c] sm:$0xf]
        %v2910 = vunpack.c.l.b16 %v2894
        %v2911 = vunpack.c.l.b16 %v2895
        %v2912 = vunpack.c.l.b16 %v2896
        %v2913 = vunpack.c.l.b16 %v2897
        %v2914 = vunpack.c.l.b16 %v2898
        %v2915 = vunpack.c.l.b16 %v2899
        %v2916 = vunpack.c.l.b16 %v2900
        %v2917 = vunpack.c.l.b16 %v2901
        %v2918 = vpack.c.b16 %v2911, %v2910
        %v2919 = vpack.c.b16 %v2913, %v2912
        %v2920 = vpack.c.b16 %v2915, %v2914
        %v2921 = vpack.c.b16 %v2917, %v2916
        %vm2926 = vcmask 523264
        %v2928 = vsel %vm2926, %v2893, 0
        %2930 = vmatprep.subr.bf16.mxu0 0
        %2931 = vmatpush1.bf16.msra.mxu0 %v2918
        %2932 = vmatprep.subr.bf16.mxu0 0
        %2933 = vmatpush1.bf16.msra.mxu0 %v2919
        %2934 = vmatprep.subr.bf16.mxu0 0
        %2935 = vmatpush1.bf16.msra.mxu0 %v2920
        %2936 = vmatprep.subr.bf16.mxu0 0
        %2937 = vmatpush1.bf16.msra.mxu0 %v2921
        %2938 = vmatprep.subr.bf16.mxu0 0
        %2939 = vmatpush1.bf16.msra.mxu0 0
        %2940 = vmatprep.subr.bf16.mxu0 0
        %2941 = vmatpush1.bf16.msra.mxu0 0
        %2942 = vmatprep.subr.bf16.mxu0 0
        %2943 = vmatpush1.bf16.msra.mxu0 0
        %2944 = vmatprep.subr.bf16.mxu0 0
        %2945 = vmatpush1.bf16.msra.mxu0 0
        %2946 = vmatprep.subr.bf16.mxu0 0
        %2947 = vmatpush1.bf16.msra.mxu0 0
        %2948 = vmatprep.subr.bf16.mxu0 0
        %2949 = vmatpush1.bf16.msra.mxu0 0
        %2950 = vmatprep.subr.bf16.mxu0 0
        %2951 = vmatpush1.bf16.msra.mxu0 0
        %2952 = vmatprep.subr.bf16.mxu0 0
        %2953 = vmatpush1.bf16.msra.mxu0 0
        %2954 = vmatprep.subr.bf16.mxu0 0
        %2955 = vmatpush1.bf16.msra.mxu0 0
        %2956 = vmatprep.subr.bf16.mxu0 0
        %2957 = vmatpush1.bf16.msra.mxu0 0
        %2958 = vmatprep.subr.bf16.mxu0 0
        %2959 = vmatpush1.bf16.msra.mxu0 0
        %2960 = vmatprep.subr.bf16.mxu0 0
        %2961 = vmatpush1.bf16.msra.mxu0 0
        %2962 = vmatprep.mubr.bf16.mxu0 0
        %2963 = vmatmul.mubr.bf16.gmra.mrb[0].mxu0 %v2928
        %v2964 = vpop.f32.mrb[0].mxu0
        %v2965 = vadd.f32 0.0, %v2964
        %v2966 = vpop.f32.mrb[0].mxu0
        %v2967 = vpop.f32.mrb[0].mxu0
        %v2968 = vpop.f32.mrb[0].mxu0
        %2969 = vdwg.mxu0
        %v2970 = vadd.f32 %v2815, %v2965
        %2971 = vst.msk [vmem:[%s1083] sm:$0xff] %vm1132, %v2970
        %p2972 = scmp.eq.s32.totalorder %s55, 1
        // Predicated region
        $region137: #{t5_decoder_init.2} parent=75 // pred_check
          %p2973 = pneg %p2972
        $region138: #{t5_decoder_init.2} parent=75 // pred_check_branch
          %2975 = sbr.rel (%p2973) target = $region140
        $region139: #{t5_decoder_init.2} parent=75 // pred_region
          %v2976 = vmul.f32 %v2970, %v2970
          %v2977 = vsel %vm1132, %v2976, 0.0
          %2978 = vadd.xlane.f32.xlu0 %v2977
          %v2979 = vpop.xlane.xlu0 %2978
          %v2980 = vmul.f32 %v2979, %v1136
          %v2981 = vadd.f32 %v2980, 1e-06
          %v2982 = vrsqrt.pop %v2981
          %v2983 = vmul.f32 %v2970, %v2982
          %v2984 = vld [vmem:[#allocation8] sm:$0x1]
          %v2986 = vlaneseq
          %v2987 = vshrl.u32 %v2986, 7
          %v2988 = vsub.s32 0, %v2987
          %v2989 = vrot.slane %v2984, %v2988
          %v2991 = vmul.f32 %v2983, %v2989
          %v2992 = vpack.c.bf16 %v2991, %v2991
          %vm2993 = vcmask 257024
          %2994 = vst.msk [vmem:[%s1090] sm:$0xf] %vm2993, %v2992
        $region140: #{t5_decoder_init.2} parent=75 // pred_fallthru
          _
        %s2995 = sand.u32 %s429, 1
        %s2996 = scalar_lea.sflag [#allocation4], %s2995
        %s2997 = sand.u32 %s429, 1
        %s2998 = smul.addr %s2997, 8
        %s2999 = scalar_lea.vmem [#allocation20], %s2998
        %s3000 = sand.u32 %s50, 1
        %s3001 = scalar_lea.sflag [#allocation22], %s3000
        %s3002 = sand.u32 %s455, 1
        %s3003 = smul.addr %s3002, 4
        %s3004 = scalar_lea.vmem [#allocation21], %s3003
        %s3005 = sand.u32 %s50, 1
        %s3006 = scalar_lea.sflag [#allocation22], %s3005
        %s3007 = sand.u32 %s483, 1
        %s3008 = smul.addr %s3007, 8
        %s3009 = scalar_lea.vmem [#allocation23], %s3008
        %s3010 = sand.u32 %s50, 1
        %s3011 = scalar_lea.sflag [#allocation25], %s3010
        %s3012 = sand.u32 %s511, 1
        %s3013 = smul.addr %s3012, 8
        %s3014 = scalar_lea.vmem [#allocation24], %s3013
        %s3015 = sand.u32 %s50, 1
        %s3016 = scalar_lea.sflag [#allocation25], %s3015
        %s3017 = sand.u32 %s539, 1
        %s3018 = smul.addr %s3017, 16
        %s3019 = scalar_lea.vmem [#allocation26], %s3018
        %s3020 = sand.u32 %s567, 1
        %s3021 = scalar_lea.sflag [#allocation28], %s3020
        %s3022 = sand.u32 %s567, 1
        %s3023 = smul.addr %s3022, 16
        %s3024 = scalar_lea.vmem [#allocation27], %s3023
        // Predicated region
        $region141: #{t5_decoder_init.2} parent=75 // pred_check
          %p3025 = pneg %p439
        $region142: #{t5_decoder_init.2} parent=75 // pred_check_branch
          %3027 = sbr.rel (%p3025) target = $region144
        $region143: #{t5_decoder_init.2} parent=75 // pred_region
          %s3029 = ssub.s32 128, 128
          %3030 = vsyncadd %s2996, %s3029
          %s3031 = smul.addr %s54, 128
          %s3032 = scalar_lea.hbm %s14, %s3031
          %s3034 = sshll.u32 %s2999, 4
          %s3035 = int_to_ptr.vmem [resolvable:$true] %s3034
          %3037 = dma.vmem_to_hbm [thread:$0]  %s3035, 128, %s3032, %s2996
        $region144: #{t5_decoder_init.2} parent=75 // pred_fallthru
          _
        // Predicated region
        $region145: #{t5_decoder_init.2} parent=75 // pred_check
          %p3038 = pneg %p465
        $region146: #{t5_decoder_init.2} parent=75 // pred_check_branch
          %3040 = sbr.rel (%p3038) target = $region148
        $region147: #{t5_decoder_init.2} parent=75 // pred_region
          %s3042 = ssub.s32 64, 64
          %3043 = vsyncadd %s3001, %s3042
          %s3044 = smul.addr %s54, 64
          %s3045 = scalar_lea.hbm %s15, %s3044
          %s3047 = sshll.u32 %s3004, 4
          %s3048 = int_to_ptr.vmem [resolvable:$true] %s3047
          %3050 = dma.vmem_to_hbm [thread:$0]  %s3048, 64, %s3045, %s3001
        $region148: #{t5_decoder_init.2} parent=75 // pred_fallthru
          _
        // Predicated region
        $region149: #{t5_decoder_init.2} parent=75 // pred_check
          %p3051 = pneg %p493
        $region150: #{t5_decoder_init.2} parent=75 // pred_check_branch
          %3053 = sbr.rel (%p3051) target = $region152
        $region151: #{t5_decoder_init.2} parent=75 // pred_region
          %s3055 = ssub.s32 128, 128
          %3056 = vsyncadd %s3006, %s3055
          %s3057 = smul.addr %s55, 2
          %s3058 = sadd.s32 %s54, %s3057
          %s3059 = smul.addr %s3058, 128
          %s3060 = scalar_lea.hbm %s16, %s3059
          %s3062 = sshll.u32 %s3009, 4
          %s3063 = int_to_ptr.vmem [resolvable:$true] %s3062
          %3065 = dma.vmem_to_hbm [thread:$0]  %s3063, 128, %s3060, %s3006
        $region152: #{t5_decoder_init.2} parent=75 // pred_fallthru
          _
        // Predicated region
        $region153: #{t5_decoder_init.2} parent=75 // pred_check
          %p3066 = pneg %p521
        $region154: #{t5_decoder_init.2} parent=75 // pred_check_branch
          %3068 = sbr.rel (%p3066) target = $region156
        $region155: #{t5_decoder_init.2} parent=75 // pred_region
          %s3070 = ssub.s32 128, 128
          %3071 = vsyncadd %s3011, %s3070
          %s3072 = smul.addr %s55, 2
          %s3073 = sadd.s32 %s54, %s3072
          %s3074 = smul.addr %s3073, 128
          %s3075 = scalar_lea.hbm %s17, %s3074
          %s3077 = sshll.u32 %s3014, 4
          %s3078 = int_to_ptr.vmem [resolvable:$true] %s3077
          %3080 = dma.vmem_to_hbm [thread:$0]  %s3078, 128, %s3075, %s3011
        $region156: #{t5_decoder_init.2} parent=75 // pred_fallthru
          _
        // Predicated region
        $region157: #{t5_decoder_init.2} parent=75 // pred_check
          %p3081 = pneg %p549
        $region158: #{t5_decoder_init.2} parent=75 // pred_check_branch
          %3083 = sbr.rel (%p3081) target = $region160
        $region159: #{t5_decoder_init.2} parent=75 // pred_region
          %s3085 = ssub.s32 256, 256
          %3086 = vsyncadd %s3016, %s3085
          %s3087 = smul.addr %s54, 2
          %s3088 = smul.addr %s55, 4
          %s3089 = sadd.s32 %s3087, %s3088
          %s3090 = smul.addr %s3089, 128
          %s3091 = scalar_lea.hbm %s18, %s3090
          %s3092 = sshll.u32 %s3019, 4
          %s3093 = int_to_ptr.vmem [resolvable:$true] %s3092
          %3098 = dma.vmem_to_hbm [thread:$0]  %s3093, 256, %s3091, %s3016, 128, 128, 8
        $region160: #{t5_decoder_init.2} parent=75 // pred_fallthru
          _
        // Predicated region
        $region161: #{t5_decoder_init.2} parent=75 // pred_check
          %p3099 = pneg %p577
        $region162: #{t5_decoder_init.2} parent=75 // pred_check_branch
          %3101 = sbr.rel (%p3099) target = $region164
        $region163: #{t5_decoder_init.2} parent=75 // pred_region
          %s3103 = ssub.s32 256, 256
          %3104 = vsyncadd %s3021, %s3103
          %s3105 = smul.addr %s54, 2
          %s3106 = smul.addr %s55, 4
          %s3107 = sadd.s32 %s3105, %s3106
          %s3108 = smul.addr %s3107, 128
          %s3109 = scalar_lea.hbm %s19, %s3108
          %s3110 = sshll.u32 %s3024, 4
          %s3111 = int_to_ptr.vmem [resolvable:$true] %s3110
          %3116 = dma.vmem_to_hbm [thread:$0]  %s3111, 256, %s3109, %s3021, 128, 128, 8
        $region164: #{t5_decoder_init.2} parent=75 // pred_fallthru
          _
      $region76: #{t5_decoder_init.2} parent=5 // pred_fallthru
        _
      %p3117 = scmp.le.s32.totalorder 2, %s45
      // Predicated region
      $region165: #{t5_decoder_init.2} parent=5 // pred_check
        %p3118 = pneg %p3117
      $region166: #{t5_decoder_init.2} parent=5 // pred_check_branch
        %3120 = sbr.rel (%p3118) target = $region168
      $region167: #{t5_decoder_init.2} parent=5 // pred_region
        %s3121 = ssub.s32 %s45, 2
        // Predicated region
        $region169: #{t5_decoder_init.2} parent=167 // pred_check
          %p3122 = pneg %p445
        $region170: #{t5_decoder_init.2} parent=167 // pred_check_branch
          %3124 = sbr.rel (%p3122) target = $region172
        $region171: #{t5_decoder_init.2} parent=167 // pred_region
          %s3125 = sand.u32 %s430, 1
          %s3126 = scalar_lea.sflag [#allocation4], %s3125
          %s3127 = sand.u32 %s430, 1
          %s3128 = smul.addr %s3127, 8
          %s3129 = scalar_lea.vmem [#allocation20], %s3128
          %3130 = dma.done %s3126, 128
        $region172: #{t5_decoder_init.2} parent=167 // pred_fallthru
          _
        // Predicated region
        $region173: #{t5_decoder_init.2} parent=167 // pred_check
          %p3131 = pneg %p471
        $region174: #{t5_decoder_init.2} parent=167 // pred_check_branch
          %3133 = sbr.rel (%p3131) target = $region176
        $region175: #{t5_decoder_init.2} parent=167 // pred_region
          %s3134 = sand.u32 %s51, 1
          %s3135 = scalar_lea.sflag [#allocation22], %s3134
          %s3136 = sand.u32 %s456, 1
          %s3137 = smul.addr %s3136, 4
          %s3138 = scalar_lea.vmem [#allocation21], %s3137
          %3139 = dma.done %s3135, 64
        $region176: #{t5_decoder_init.2} parent=167 // pred_fallthru
          _
        // Predicated region
        $region177: #{t5_decoder_init.2} parent=167 // pred_check
          %p3140 = pneg %p499
        $region178: #{t5_decoder_init.2} parent=167 // pred_check_branch
          %3142 = sbr.rel (%p3140) target = $region180
        $region179: #{t5_decoder_init.2} parent=167 // pred_region
          %s3143 = sand.u32 %s51, 1
          %s3144 = scalar_lea.sflag [#allocation22], %s3143
          %s3145 = sand.u32 %s484, 1
          %s3146 = smul.addr %s3145, 8
          %s3147 = scalar_lea.vmem [#allocation23], %s3146
          %3148 = dma.done %s3144, 128
        $region180: #{t5_decoder_init.2} parent=167 // pred_fallthru
          _
        // Predicated region
        $region181: #{t5_decoder_init.2} parent=167 // pred_check
          %p3149 = pneg %p527
        $region182: #{t5_decoder_init.2} parent=167 // pred_check_branch
          %3151 = sbr.rel (%p3149) target = $region184
        $region183: #{t5_decoder_init.2} parent=167 // pred_region
          %s3152 = sand.u32 %s51, 1
          %s3153 = scalar_lea.sflag [#allocation25], %s3152
          %s3154 = sand.u32 %s512, 1
          %s3155 = smul.addr %s3154, 8
          %s3156 = scalar_lea.vmem [#allocation24], %s3155
          %3157 = dma.done %s3153, 128
        $region184: #{t5_decoder_init.2} parent=167 // pred_fallthru
          _
        // Predicated region
        $region185: #{t5_decoder_init.2} parent=167 // pred_check
          %p3158 = pneg %p555
        $region186: #{t5_decoder_init.2} parent=167 // pred_check_branch
          %3160 = sbr.rel (%p3158) target = $region188
        $region187: #{t5_decoder_init.2} parent=167 // pred_region
          %s3161 = sand.u32 %s51, 1
          %s3162 = scalar_lea.sflag [#allocation25], %s3161
          %s3163 = sand.u32 %s540, 1
          %s3164 = smul.addr %s3163, 16
          %s3165 = scalar_lea.vmem [#allocation26], %s3164
          %3166 = dma.done %s3162, 256
        $region188: #{t5_decoder_init.2} parent=167 // pred_fallthru
          _
        // Predicated region
        $region189: #{t5_decoder_init.2} parent=167 // pred_check
          %p3167 = pneg %p583
        $region190: #{t5_decoder_init.2} parent=167 // pred_check_branch
          %3169 = sbr.rel (%p3167) target = $region192
        $region191: #{t5_decoder_init.2} parent=167 // pred_region
          %s3170 = sand.u32 %s568, 1
          %s3171 = scalar_lea.sflag [#allocation28], %s3170
          %s3172 = sand.u32 %s568, 1
          %s3173 = smul.addr %s3172, 16
          %s3174 = scalar_lea.vmem [#allocation27], %s3173
          %3175 = dma.done %s3171, 256
        $region192: #{t5_decoder_init.2} parent=167 // pred_fallthru
          _
      $region168: #{t5_decoder_init.2} parent=5 // pred_fallthru
        _
    $region6: #{t5_decoder_init.2} parent=1 // loop_footer
      %s49 = sadd.s32 1, %s45
    $region7: #{t5_decoder_init.2} parent=1 // loop_footer_branch
      %44 = sbr.rel target = $region3
    $region8: #{t5_decoder_init.2} parent=1 // loop_exit
      _
    %3176 = vsyncpa [#allocation3], 1
    %s3177 = scalar_lea.sflag [#allocation3], 1
    %3178 = vsyncpa %s3177, 1
    %3179 = vsyncpa [#allocation6], 1
    %s3180 = scalar_lea.sflag [#allocation6], 1
    %3181 = vsyncpa %s3180, 1
    %3182 = vsyncpa [#allocation9], 1
    %3183 = vsyncpa [#allocation4], 1
    %s3184 = scalar_lea.sflag [#allocation4], 1
    %3185 = vsyncpa %s3184, 1
    %3186 = vsyncpa [#allocation22], 1
    %s3187 = scalar_lea.sflag [#allocation22], 1
    %3188 = vsyncpa %s3187, 1
    %3189 = vsyncpa [#allocation25], 1
    %s3190 = scalar_lea.sflag [#allocation25], 1
    %3191 = vsyncpa %s3190, 1
    %3192 = vsyncpa [#allocation28], 1
    %s3193 = scalar_lea.sflag [#allocation28], 1
    %3194 = vsyncpa %s3193, 1

</llo_original>
